<compile_context>
chip_gen: v6e
topology: v6e:2x2x1
jax: 0.10.0
libtpu: 0.0.40
codegen_flags: <defaults>
</compile_context>

<pallas_src>
import jax
import jax.numpy as jnp
from jax.experimental import pallas as pl
from jax.experimental.pallas import tpu as pltpu

IN_FEATURES = 16       # len(feats) in the reference script
H1, H2, H3 = 216, 512, 216
OUT_FEATURES = 199
BN_EPS = 1e-5

LANE = 128


def _round_up(n, m):
    return ((n + m - 1) // m) * m


# Lane-dense (padded) layer widths.
H1P = _round_up(H1, LANE)             # 256
H2P = _round_up(H2, LANE)             # 512 (already dense)
H3P = _round_up(H3, LANE)             # 256
OUTP = _round_up(OUT_FEATURES, LANE)  # 256


def nfl_nn_kernel(x_ref,
                  w1_ref, b1_ref,
                  w2_ref, b2_ref,
                  w3_ref, b3_ref,
                  w4_ref, b4_ref,
                  out_ref):
    # fc1 (BatchNorm already folded into w1/b1 by the wrapper) + ReLU.
    # Bias add / ReLU run in f32 on the VPU; the cast to the weight dtype is a
    # pack op and feeds the next MXU dot directly (halves activation VMEM).
    x = x_ref[...].astype(w1_ref.dtype)
    a1 = jnp.dot(x, w1_ref[...], preferred_element_type=jnp.float32) + b1_ref[...]
    h1 = jnp.maximum(a1, 0.0).astype(w2_ref.dtype)
    # fc2 + ReLU
    a2 = jnp.dot(h1, w2_ref[...], preferred_element_type=jnp.float32) + b2_ref[...]
    h2 = jnp.maximum(a2, 0.0).astype(w3_ref.dtype)
    # fc3 + ReLU
    a3 = jnp.dot(h2, w3_ref[...], preferred_element_type=jnp.float32) + b3_ref[...]
    h3 = jnp.maximum(a3, 0.0).astype(w4_ref.dtype)
    # Dropout(0.2) is identity in eval mode; module returns pre-sigmoid a5.
    a5 = jnp.dot(h3, w4_ref[...], preferred_element_type=jnp.float32) + b4_ref[...]
    out_ref[...] = a5.astype(out_ref.dtype)


def _prepare_params(params, weight_dtype):
    """Fold BatchNorm into fc1 and zero-pad feature dims to lane multiples."""
    w1, b1 = params["w1"], params["b1"]
    gamma, beta = params["gamma"], params["beta"]
    rmean, rvar = params["rmean"], params["rvar"]
    w2, b2 = params["w2"], params["b2"]
    w3, b3 = params["w3"], params["b3"]
    w4, b4 = params["w4"], params["b4"]

    # Eval-mode BN fold (exact):  bn(x@w1 + b1) == x@(w1*s) + ((b1-rm)*s + beta)
    s = gamma * jax.lax.rsqrt(rvar + BN_EPS)          # (1, H1)
    w1f = w1 * s
    b1f = (b1 - rmean) * s + beta

    def pad(a, rows, cols):
        r, c = a.shape
        return jnp.pad(a, ((0, rows - r), (0, cols - c)))

    # Weights cast (bf16 fast path by default); biases stay f32.
    w1p = pad(w1f, IN_FEATURES, H1P).astype(weight_dtype)
    b1p = pad(b1f, 1, H1P)
    w2p = pad(w2, H1P, H2P).astype(weight_dtype)
    b2p = pad(b2, 1, H2P)
    w3p = pad(w3, H2P, H3P).astype(weight_dtype)
    b3p = pad(b3, 1, H3P)
    w4p = pad(w4, H3P, OUTP).astype(weight_dtype)
    b4p = pad(b4, 1, OUTP)
    return (w1p, b1p, w2p, b2p, w3p, b3p, w4p, b4p)


def nfl_nn_forward(x, params, *, batch_tile=1024, weight_dtype=jnp.bfloat16,
                   out_dtype=jnp.float32, trim_lanes=True):
    """x: (B, IN_FEATURES) float32; params: dict of weights/biases/bn stats.

    trim_lanes=True returns the exact (B, 199) module output; trim_lanes=False
    returns the lane-padded (B, 256) result (cols >=199 are zero) and avoids a
    second post-kernel B x 199 HBM copy.
    """
    B, F = x.shape
    assert F == IN_FEATURES

    # Effective batch tile: multiple of 8 (sublane), no larger than needed.
    tb = min(batch_tile, _round_up(B, 8))
    tb = _round_up(max(tb, 8), 8)
    # Megacore: v7x has 2 TensorCores; keep >= 2 parallel grid steps whenever
    # the batch allows so the ("parallel",) grid axis actually shards.
    if B > 8 and pl.cdiv(_round_up(B, 8), tb) < 2:
        tb = _round_up(pl.cdiv(B, 2), 8)
    Bp = _round_up(B, tb)
    if Bp != B:
        x = jnp.pad(x, ((0, Bp - B), (0, 0)))

    wp = _prepare_params(params, weight_dtype)
    grid = (Bp // tb,)

    weight_bytes = sum(int(a.size) * a.dtype.itemsize for a in wp)
    flops = 2 * Bp * (IN_FEATURES * H1P + H1P * H2P + H2P * H3P + H3P * OUTP)
    bytes_accessed = (Bp * IN_FEATURES * 4
                      + Bp * OUTP * jnp.dtype(out_dtype).itemsize
                      + weight_bytes)

    def _invoke(weight_buffering):
        def weight_spec(shape):
            # Grid-invariant operands (weights / biases): same block every
            # step, DMA'd once and VMEM-resident.  Buffered(1) drops the
            # redundant second buffer.
            if weight_buffering is not None:
                return pl.BlockSpec(shape, lambda i: (0, 0),
                                    pipeline_mode=pl.Buffered(weight_buffering))
            return pl.BlockSpec(shape, lambda i: (0, 0))

        in_specs = [pl.BlockSpec((tb, IN_FEATURES), lambda i: (i, 0))] + [
            weight_spec(a.shape) for a in wp
        ]
        out_spec = pl.BlockSpec((tb, OUTP), lambda i: (i, 0))

        return pl.pallas_call(
            nfl_nn_kernel,
            out_shape=jax.ShapeDtypeStruct((Bp, OUTP), out_dtype),
            grid_spec=pltpu.PrefetchScalarGridSpec(
                num_scalar_prefetch=0,
                grid=grid,
                in_specs=in_specs,
                out_specs=out_spec,
            ),
            compiler_params=pltpu.CompilerParams(
                dimension_semantics=("parallel",),
                vmem_limit_bytes=40 * 1024 * 1024,
            ),
            cost_estimate=pl.CostEstimate(
                flops=flops, transcendentals=0, bytes_accessed=bytes_accessed),
        )(x, *wp)

    out = None
    if hasattr(pl, "Buffered"):
        try:
            out = _invoke(weight_buffering=1)
        except Exception:  # pragma: no cover - version-dependent fallback
            out = None
    if out is None:
        out = _invoke(weight_buffering=None)

    if trim_lanes:
        # Exact module semantics: strip batch padding and the 57 zero lanes.
        return out[:B, :OUT_FEATURES]
    # Perf path: only strip batch padding; columns >= OUT_FEATURES are zero.
    return out[:B]


def init_params(key):
    """Deterministic synthetic init (shapes match the PyTorch module)."""
    ks = jax.random.split(key, 8)

    def linear(kw, kb, fan_in, fan_out):
        # PyTorch nn.Linear default: U(-1/sqrt(fan_in), 1/sqrt(fan_in))
        bound = 1.0 / jnp.sqrt(jnp.float32(fan_in))
        w = jax.random.uniform(kw, (fan_in, fan_out), jnp.float32, -bound, bound)
        b = jax.random.uniform(kb, (1, fan_out), jnp.float32, -bound, bound)
        return w, b

    w1, b1 = linear(ks[0], ks[1], IN_FEATURES, H1)
    w2, b2 = linear(ks[2], ks[3], H1, H2)
    w3, b3 = linear(ks[4], ks[5], H2, H3)
    w4, b4 = linear(ks[6], ks[7], H3, OUT_FEATURES)

    # BatchNorm1d(216): gamma=1, beta=0, running_mean=0, running_var=1
    gamma = jnp.ones((1, H1), jnp.float32)
    beta = jnp.zeros((1, H1), jnp.float32)
    rmean = jnp.zeros((1, H1), jnp.float32)
    rvar = jnp.ones((1, H1), jnp.float32)

    return dict(
        w1=w1, b1=b1, gamma=gamma, beta=beta, rmean=rmean, rvar=rvar,
        w2=w2, b2=b2, w3=w3, b3=b3, w4=w4, b4=b4,
    )


def reference_forward(x, p):
    """Pure-JAX reference (unfolded BN, unpadded dims) for validation."""
    a1 = x @ p["w1"] + p["b1"]
    bn1 = (a1 - p["rmean"]) / jnp.sqrt(p["rvar"] + BN_EPS) * p["gamma"] + p["beta"]
    h1 = jnp.maximum(bn1, 0.0)
    h2 = jnp.maximum(h1 @ p["w2"] + p["b2"], 0.0)
    h3 = jnp.maximum(h2 @ p["w3"] + p["b3"], 0.0)
    return h3 @ p["w4"] + p["b4"]


if __name__ == "__main__":
    key = jax.random.PRNGKey(0)
    k_param, k_x = jax.random.split(key)

    params = init_params(k_param)
    batch = 200  # not a tile multiple: exercises batch padding + 2-step grid
    x = jax.random.normal(k_x, (batch, IN_FEATURES), jnp.float32)

    ref = reference_forward(x, params)

    # Default path: bf16 weights/activations, f32 accumulation.
    out = jax.block_until_ready(nfl_nn_forward(x, params))
    assert out.shape == (batch, OUT_FEATURES)
    assert jnp.allclose(out, ref, atol=5e-2, rtol=5e-2), "bf16 mismatch vs reference"

    # f32-weight path (exact to reference within fp tolerance).
    out_f32 = jax.block_until_ready(
        nfl_nn_forward(x, params, weight_dtype=jnp.float32))
    assert jnp.allclose(out_f32, ref, atol=1e-4, rtol=1e-4), "f32 mismatch vs reference"

    # Lane-padded output path (no post-kernel 199-column copy).
    out_pad = jax.block_until_ready(nfl_nn_forward(x, params, trim_lanes=False))
    assert out_pad.shape == (batch, OUTP)
    assert jnp.allclose(out_pad[:, :OUT_FEATURES], ref, atol=5e-2, rtol=5e-2)
    assert jnp.allclose(out_pad[:, OUT_FEATURES:], 0.0)

    print("KERNEL_OK")
</pallas_src>

<mosaic_0001>
module attributes {stable_mosaic.version = 11 : i64} {
  func.func @nfl_nn_kernel(%arg0: i32, %arg1: memref<104x16xf32, #tpu.memory_space<vmem>>, %arg2: memref<16x256xbf16, #tpu.memory_space<vmem>>, %arg3: memref<1x256xf32, #tpu.memory_space<vmem>>, %arg4: memref<256x512xbf16, #tpu.memory_space<vmem>>, %arg5: memref<1x512xf32, #tpu.memory_space<vmem>>, %arg6: memref<512x256xbf16, #tpu.memory_space<vmem>>, %arg7: memref<1x256xf32, #tpu.memory_space<vmem>>, %arg8: memref<256x256xbf16, #tpu.memory_space<vmem>>, %arg9: memref<1x256xf32, #tpu.memory_space<vmem>>, %arg10: memref<104x256xf32, #tpu.memory_space<vmem>>) attributes {dimension_semantics = [#tpu.dimension_semantics<parallel>], iteration_bounds = array<i64: 2>, scalar_prefetch = 0 : i64, scratch_operands = 0 : i64, tpu.core_type = #tpu.core_type<tc>, window_params = [{transform_indices = @transform_0, window_bounds = array<i64: 104, 16>}, {pipeline_mode = #tpu.pipeline_mode<synchronous>, transform_indices = @transform_1, window_bounds = array<i64: 16, 256>}, {pipeline_mode = #tpu.pipeline_mode<synchronous>, transform_indices = @transform_2, window_bounds = array<i64: 1, 256>}, {pipeline_mode = #tpu.pipeline_mode<synchronous>, transform_indices = @transform_3, window_bounds = array<i64: 256, 512>}, {pipeline_mode = #tpu.pipeline_mode<synchronous>, transform_indices = @transform_4, window_bounds = array<i64: 1, 512>}, {pipeline_mode = #tpu.pipeline_mode<synchronous>, transform_indices = @transform_5, window_bounds = array<i64: 512, 256>}, {pipeline_mode = #tpu.pipeline_mode<synchronous>, transform_indices = @transform_6, window_bounds = array<i64: 1, 256>}, {pipeline_mode = #tpu.pipeline_mode<synchronous>, transform_indices = @transform_7, window_bounds = array<i64: 256, 256>}, {pipeline_mode = #tpu.pipeline_mode<synchronous>, transform_indices = @transform_8, window_bounds = array<i64: 1, 256>}, {transform_indices = @transform_9, window_bounds = array<i64: 104, 256>}]} {
    %c0 = arith.constant 0 : index
    %c0_0 = arith.constant 0 : index
    %0 = vector.load %arg1[%c0, %c0_0] : memref<104x16xf32, #tpu.memory_space<vmem>>, vector<104x16xf32>
    %1 = arith.truncf %0 : vector<104x16xf32> to vector<104x16xbf16>
    %c0_1 = arith.constant 0 : index
    %c0_2 = arith.constant 0 : index
    %2 = vector.load %arg2[%c0_1, %c0_2] : memref<16x256xbf16, #tpu.memory_space<vmem>>, vector<16x256xbf16>
    %cst = arith.constant dense<0.000000e+00> : vector<104x256xf32>
    %3 = tpu.matmul %1, %2, %cst {dimension_numbers = #tpu.dot_dimension_numbers<[1], [0], [0], [1], [0, 0, 1, 1], [], []>} : vector<104x16xbf16>, vector<16x256xbf16>, vector<104x256xf32> -> vector<104x256xf32>
    %c0_3 = arith.constant 0 : index
    %c0_4 = arith.constant 0 : index
    %4 = vector.load %arg3[%c0_3, %c0_4] : memref<1x256xf32, #tpu.memory_space<vmem>>, vector<1x256xf32>
    %5 = vector.broadcast %4 : vector<1x256xf32> to vector<104x256xf32>
    %6 = arith.addf %3, %5 : vector<104x256xf32>
    %cst_5 = arith.constant 0.000000e+00 : f32
    %7 = vector.broadcast %cst_5 : f32 to vector<104x256xf32>
    %8 = arith.maximumf %6, %7 : vector<104x256xf32>
    %9 = arith.truncf %8 : vector<104x256xf32> to vector<104x256xbf16>
    %c0_6 = arith.constant 0 : index
    %c0_7 = arith.constant 0 : index
    %10 = vector.load %arg4[%c0_6, %c0_7] : memref<256x512xbf16, #tpu.memory_space<vmem>>, vector<256x512xbf16>
    %cst_8 = arith.constant dense<0.000000e+00> : vector<104x512xf32>
    %11 = tpu.matmul %9, %10, %cst_8 {dimension_numbers = #tpu.dot_dimension_numbers<[1], [0], [0], [1], [0, 0, 1, 1], [], []>} : vector<104x256xbf16>, vector<256x512xbf16>, vector<104x512xf32> -> vector<104x512xf32>
    %c0_9 = arith.constant 0 : index
    %c0_10 = arith.constant 0 : index
    %12 = vector.load %arg5[%c0_9, %c0_10] : memref<1x512xf32, #tpu.memory_space<vmem>>, vector<1x512xf32>
    %13 = vector.broadcast %12 : vector<1x512xf32> to vector<104x512xf32>
    %14 = arith.addf %11, %13 : vector<104x512xf32>
    %cst_11 = arith.constant 0.000000e+00 : f32
    %15 = vector.broadcast %cst_11 : f32 to vector<104x512xf32>
    %16 = arith.maximumf %14, %15 : vector<104x512xf32>
    %17 = arith.truncf %16 : vector<104x512xf32> to vector<104x512xbf16>
    %c0_12 = arith.constant 0 : index
    %c0_13 = arith.constant 0 : index
    %18 = vector.load %arg6[%c0_12, %c0_13] : memref<512x256xbf16, #tpu.memory_space<vmem>>, vector<512x256xbf16>
    %cst_14 = arith.constant dense<0.000000e+00> : vector<104x256xf32>
    %19 = tpu.matmul %17, %18, %cst_14 {dimension_numbers = #tpu.dot_dimension_numbers<[1], [0], [0], [1], [0, 0, 1, 1], [], []>} : vector<104x512xbf16>, vector<512x256xbf16>, vector<104x256xf32> -> vector<104x256xf32>
    %c0_15 = arith.constant 0 : index
    %c0_16 = arith.constant 0 : index
    %20 = vector.load %arg7[%c0_15, %c0_16] : memref<1x256xf32, #tpu.memory_space<vmem>>, vector<1x256xf32>
    %21 = vector.broadcast %20 : vector<1x256xf32> to vector<104x256xf32>
    %22 = arith.addf %19, %21 : vector<104x256xf32>
    %cst_17 = arith.constant 0.000000e+00 : f32
    %23 = vector.broadcast %cst_17 : f32 to vector<104x256xf32>
    %24 = arith.maximumf %22, %23 : vector<104x256xf32>
    %25 = arith.truncf %24 : vector<104x256xf32> to vector<104x256xbf16>
    %c0_18 = arith.constant 0 : index
    %c0_19 = arith.constant 0 : index
    %26 = vector.load %arg8[%c0_18, %c0_19] : memref<256x256xbf16, #tpu.memory_space<vmem>>, vector<256x256xbf16>
    %cst_20 = arith.constant dense<0.000000e+00> : vector<104x256xf32>
    %27 = tpu.matmul %25, %26, %cst_20 {dimension_numbers = #tpu.dot_dimension_numbers<[1], [0], [0], [1], [0, 0, 1, 1], [], []>} : vector<104x256xbf16>, vector<256x256xbf16>, vector<104x256xf32> -> vector<104x256xf32>
    %c0_21 = arith.constant 0 : index
    %c0_22 = arith.constant 0 : index
    %28 = vector.load %arg9[%c0_21, %c0_22] : memref<1x256xf32, #tpu.memory_space<vmem>>, vector<1x256xf32>
    %29 = vector.broadcast %28 : vector<1x256xf32> to vector<104x256xf32>
    %30 = arith.addf %27, %29 : vector<104x256xf32>
    %c0_23 = arith.constant 0 : index
    %c0_24 = arith.constant 0 : index
    %31 = vector.load %arg10[%c0_23, %c0_24] : memref<104x256xf32, #tpu.memory_space<vmem>>, vector<104x256xf32>
    tpu.vector_store %arg10[%c0_23, %c0_24], %30 {strides = array<i32>} : memref<104x256xf32, #tpu.memory_space<vmem>>, vector<104x256xf32>,
    return
  }
  func.func @transform_0(%arg0: i32) -> (i32, i32) {
    %c0_i32 = arith.constant 0 : i32
    %c0_i32_0 = arith.constant 0 : i32
    return %arg0, %c0_i32 : i32, i32
  }
  func.func @transform_1(%arg0: i32) -> (i32, i32) {
    %c0_i32 = arith.constant 0 : i32
    %c0_i32_0 = arith.constant 0 : i32
    %c0_i32_1 = arith.constant 0 : i32
    return %c0_i32, %c0_i32_0 : i32, i32
  }
  func.func @transform_2(%arg0: i32) -> (i32, i32) {
    %c0_i32 = arith.constant 0 : i32
    %c0_i32_0 = arith.constant 0 : i32
    %c0_i32_1 = arith.constant 0 : i32
    return %c0_i32, %c0_i32_0 : i32, i32
  }
  func.func @transform_3(%arg0: i32) -> (i32, i32) {
    %c0_i32 = arith.constant 0 : i32
    %c0_i32_0 = arith.constant 0 : i32
    %c0_i32_1 = arith.constant 0 : i32
    return %c0_i32, %c0_i32_0 : i32, i32
  }
  func.func @transform_4(%arg0: i32) -> (i32, i32) {
    %c0_i32 = arith.constant 0 : i32
    %c0_i32_0 = arith.constant 0 : i32
    %c0_i32_1 = arith.constant 0 : i32
    return %c0_i32, %c0_i32_0 : i32, i32
  }
  func.func @transform_5(%arg0: i32) -> (i32, i32) {
    %c0_i32 = arith.constant 0 : i32
    %c0_i32_0 = arith.constant 0 : i32
    %c0_i32_1 = arith.constant 0 : i32
    return %c0_i32, %c0_i32_0 : i32, i32
  }
  func.func @transform_6(%arg0: i32) -> (i32, i32) {
    %c0_i32 = arith.constant 0 : i32
    %c0_i32_0 = arith.constant 0 : i32
    %c0_i32_1 = arith.constant 0 : i32
    return %c0_i32, %c0_i32_0 : i32, i32
  }
  func.func @transform_7(%arg0: i32) -> (i32, i32) {
    %c0_i32 = arith.constant 0 : i32
    %c0_i32_0 = arith.constant 0 : i32
    %c0_i32_1 = arith.constant 0 : i32
    return %c0_i32, %c0_i32_0 : i32, i32
  }
  func.func @transform_8(%arg0: i32) -> (i32, i32) {
    %c0_i32 = arith.constant 0 : i32
    %c0_i32_0 = arith.constant 0 : i32
    %c0_i32_1 = arith.constant 0 : i32
    return %c0_i32, %c0_i32_0 : i32, i32
  }
  func.func @transform_9(%arg0: i32) -> (i32, i32) {
    %c0_i32 = arith.constant 0 : i32
    %c0_i32_0 = arith.constant 0 : i32
    return %arg0, %c0_i32 : i32, i32
  }
}

module attributes {stable_mosaic.version = 11 : i64} {
  func.func @nfl_nn_kernel(%arg0: i32, %arg1: memref<104x16xf32, #tpu.memory_space<vmem>>, %arg2: memref<16x256xbf16, #tpu.memory_space<vmem>>, %arg3: memref<1x256xf32, #tpu.memory_space<vmem>>, %arg4: memref<256x512xbf16, #tpu.memory_space<vmem>>, %arg5: memref<1x512xf32, #tpu.memory_space<vmem>>, %arg6: memref<512x256xbf16, #tpu.memory_space<vmem>>, %arg7: memref<1x256xf32, #tpu.memory_space<vmem>>, %arg8: memref<256x256xbf16, #tpu.memory_space<vmem>>, %arg9: memref<1x256xf32, #tpu.memory_space<vmem>>, %arg10: memref<104x256xf32, #tpu.memory_space<vmem>>) attributes {dimension_semantics = [#tpu.dimension_semantics<parallel>], iteration_bounds = array<i64: 2>, scalar_prefetch = 0 : i64, scratch_operands = 0 : i64, tpu.core_type = #tpu.core_type<tc>, window_params = [{transform_indices = @transform_0, window_bounds = array<i64: 104, 16>}, {pipeline_mode = #tpu.pipeline_mode<synchronous>, transform_indices = @transform_1, window_bounds = array<i64: 16, 256>}, {pipeline_mode = #tpu.pipeline_mode<synchronous>, transform_indices = @transform_2, window_bounds = array<i64: 1, 256>}, {pipeline_mode = #tpu.pipeline_mode<synchronous>, transform_indices = @transform_3, window_bounds = array<i64: 256, 512>}, {pipeline_mode = #tpu.pipeline_mode<synchronous>, transform_indices = @transform_4, window_bounds = array<i64: 1, 512>}, {pipeline_mode = #tpu.pipeline_mode<synchronous>, transform_indices = @transform_5, window_bounds = array<i64: 512, 256>}, {pipeline_mode = #tpu.pipeline_mode<synchronous>, transform_indices = @transform_6, window_bounds = array<i64: 1, 256>}, {pipeline_mode = #tpu.pipeline_mode<synchronous>, transform_indices = @transform_7, window_bounds = array<i64: 256, 256>}, {pipeline_mode = #tpu.pipeline_mode<synchronous>, transform_indices = @transform_8, window_bounds = array<i64: 1, 256>}, {transform_indices = @transform_9, window_bounds = array<i64: 104, 256>}]} {
    %c0 = arith.constant 0 : index
    %c0_0 = arith.constant 0 : index
    %0 = vector.load %arg1[%c0, %c0_0] : memref<104x16xf32, #tpu.memory_space<vmem>>, vector<104x16xf32>
    %1 = arith.truncf %0 : vector<104x16xf32> to vector<104x16xbf16>
    %c0_1 = arith.constant 0 : index
    %c0_2 = arith.constant 0 : index
    %2 = vector.load %arg2[%c0_1, %c0_2] : memref<16x256xbf16, #tpu.memory_space<vmem>>, vector<16x256xbf16>
    %cst = arith.constant dense<0.000000e+00> : vector<104x256xf32>
    %3 = tpu.matmul %1, %2, %cst {dimension_numbers = #tpu.dot_dimension_numbers<[1], [0], [0], [1], [0, 0, 1, 1], [], []>} : vector<104x16xbf16>, vector<16x256xbf16>, vector<104x256xf32> -> vector<104x256xf32>
    %c0_3 = arith.constant 0 : index
    %c0_4 = arith.constant 0 : index
    %4 = vector.load %arg3[%c0_3, %c0_4] : memref<1x256xf32, #tpu.memory_space<vmem>>, vector<1x256xf32>
    %5 = vector.broadcast %4 : vector<1x256xf32> to vector<104x256xf32>
    %6 = arith.addf %3, %5 : vector<104x256xf32>
    %cst_5 = arith.constant 0.000000e+00 : f32
    %7 = vector.broadcast %cst_5 : f32 to vector<104x256xf32>
    %8 = arith.maximumf %6, %7 : vector<104x256xf32>
    %9 = arith.truncf %8 : vector<104x256xf32> to vector<104x256xbf16>
    %c0_6 = arith.constant 0 : index
    %c0_7 = arith.constant 0 : index
    %10 = vector.load %arg4[%c0_6, %c0_7] : memref<256x512xbf16, #tpu.memory_space<vmem>>, vector<256x512xbf16>
    %cst_8 = arith.constant dense<0.000000e+00> : vector<104x512xf32>
    %11 = tpu.matmul %9, %10, %cst_8 {dimension_numbers = #tpu.dot_dimension_numbers<[1], [0], [0], [1], [0, 0, 1, 1], [], []>} : vector<104x256xbf16>, vector<256x512xbf16>, vector<104x512xf32> -> vector<104x512xf32>
    %c0_9 = arith.constant 0 : index
    %c0_10 = arith.constant 0 : index
    %12 = vector.load %arg5[%c0_9, %c0_10] : memref<1x512xf32, #tpu.memory_space<vmem>>, vector<1x512xf32>
    %13 = vector.broadcast %12 : vector<1x512xf32> to vector<104x512xf32>
    %14 = arith.addf %11, %13 : vector<104x512xf32>
    %cst_11 = arith.constant 0.000000e+00 : f32
    %15 = vector.broadcast %cst_11 : f32 to vector<104x512xf32>
    %16 = arith.maximumf %14, %15 : vector<104x512xf32>
    %17 = arith.truncf %16 : vector<104x512xf32> to vector<104x512xbf16>
    %c0_12 = arith.constant 0 : index
    %c0_13 = arith.constant 0 : index
    %18 = vector.load %arg6[%c0_12, %c0_13] : memref<512x256xbf16, #tpu.memory_space<vmem>>, vector<512x256xbf16>
    %cst_14 = arith.constant dense<0.000000e+00> : vector<104x256xf32>
    %19 = tpu.matmul %17, %18, %cst_14 {dimension_numbers = #tpu.dot_dimension_numbers<[1], [0], [0], [1], [0, 0, 1, 1], [], []>} : vector<104x512xbf16>, vector<512x256xbf16>, vector<104x256xf32> -> vector<104x256xf32>
    %c0_15 = arith.constant 0 : index
    %c0_16 = arith.constant 0 : index
    %20 = vector.load %arg7[%c0_15, %c0_16] : memref<1x256xf32, #tpu.memory_space<vmem>>, vector<1x256xf32>
    %21 = vector.broadcast %20 : vector<1x256xf32> to vector<104x256xf32>
    %22 = arith.addf %19, %21 : vector<104x256xf32>
    %cst_17 = arith.constant 0.000000e+00 : f32
    %23 = vector.broadcast %cst_17 : f32 to vector<104x256xf32>
    %24 = arith.maximumf %22, %23 : vector<104x256xf32>
    %25 = arith.truncf %24 : vector<104x256xf32> to vector<104x256xbf16>
    %c0_18 = arith.constant 0 : index
    %c0_19 = arith.constant 0 : index
    %26 = vector.load %arg8[%c0_18, %c0_19] : memref<256x256xbf16, #tpu.memory_space<vmem>>, vector<256x256xbf16>
    %cst_20 = arith.constant dense<0.000000e+00> : vector<104x256xf32>
    %27 = tpu.matmul %25, %26, %cst_20 {dimension_numbers = #tpu.dot_dimension_numbers<[1], [0], [0], [1], [0, 0, 1, 1], [], []>} : vector<104x256xbf16>, vector<256x256xbf16>, vector<104x256xf32> -> vector<104x256xf32>
    %c0_21 = arith.constant 0 : index
    %c0_22 = arith.constant 0 : index
    %28 = vector.load %arg9[%c0_21, %c0_22] : memref<1x256xf32, #tpu.memory_space<vmem>>, vector<1x256xf32>
    %29 = vector.broadcast %28 : vector<1x256xf32> to vector<104x256xf32>
    %30 = arith.addf %27, %29 : vector<104x256xf32>
    %c0_23 = arith.constant 0 : index
    %c0_24 = arith.constant 0 : index
    %31 = vector.load %arg10[%c0_23, %c0_24] : memref<104x256xf32, #tpu.memory_space<vmem>>, vector<104x256xf32>
    tpu.vector_store %arg10[%c0_23, %c0_24], %30 {strides = array<i32>} : memref<104x256xf32, #tpu.memory_space<vmem>>, vector<104x256xf32>,
    return
  }
  func.func @transform_0(%arg0: i32) -> (i32, i32) {
    %c0_i32 = arith.constant 0 : i32
    %c0_i32_0 = arith.constant 0 : i32
    return %arg0, %c0_i32 : i32, i32
  }
  func.func @transform_1(%arg0: i32) -> (i32, i32) {
    %c0_i32 = arith.constant 0 : i32
    %c0_i32_0 = arith.constant 0 : i32
    %c0_i32_1 = arith.constant 0 : i32
    return %c0_i32, %c0_i32_0 : i32, i32
  }
  func.func @transform_2(%arg0: i32) -> (i32, i32) {
    %c0_i32 = arith.constant 0 : i32
    %c0_i32_0 = arith.constant 0 : i32
    %c0_i32_1 = arith.constant 0 : i32
    return %c0_i32, %c0_i32_0 : i32, i32
  }
  func.func @transform_3(%arg0: i32) -> (i32, i32) {
    %c0_i32 = arith.constant 0 : i32
    %c0_i32_0 = arith.constant 0 : i32
    %c0_i32_1 = arith.constant 0 : i32
    return %c0_i32, %c0_i32_0 : i32, i32
  }
  func.func @transform_4(%arg0: i32) -> (i32, i32) {
    %c0_i32 = arith.constant 0 : i32
    %c0_i32_0 = arith.constant 0 : i32
    %c0_i32_1 = arith.constant 0 : i32
    return %c0_i32, %c0_i32_0 : i32, i32
  }
  func.func @transform_5(%arg0: i32) -> (i32, i32) {
    %c0_i32 = arith.constant 0 : i32
    %c0_i32_0 = arith.constant 0 : i32
    %c0_i32_1 = arith.constant 0 : i32
    return %c0_i32, %c0_i32_0 : i32, i32
  }
  func.func @transform_6(%arg0: i32) -> (i32, i32) {
    %c0_i32 = arith.constant 0 : i32
    %c0_i32_0 = arith.constant 0 : i32
    %c0_i32_1 = arith.constant 0 : i32
    return %c0_i32, %c0_i32_0 : i32, i32
  }
  func.func @transform_7(%arg0: i32) -> (i32, i32) {
    %c0_i32 = arith.constant 0 : i32
    %c0_i32_0 = arith.constant 0 : i32
    %c0_i32_1 = arith.constant 0 : i32
    return %c0_i32, %c0_i32_0 : i32, i32
  }
  func.func @transform_8(%arg0: i32) -> (i32, i32) {
    %c0_i32 = arith.constant 0 : i32
    %c0_i32_0 = arith.constant 0 : i32
    %c0_i32_1 = arith.constant 0 : i32
    return %c0_i32, %c0_i32_0 : i32, i32
  }
  func.func @transform_9(%arg0: i32) -> (i32, i32) {
    %c0_i32 = arith.constant 0 : i32
    %c0_i32_0 = arith.constant 0 : i32
    return %arg0, %c0_i32 : i32, i32
  }
}

</mosaic_0001>

<llo_original>
// kernel: tpu_custom_call.1
$region0: #{tpu_custom_call.1}
  #allocation0 [shape = 'u32[]', space=smem, size = 0x4, offset = 0x4, fixed_abs, tag = 'smem constant byte address 0x4 - core index']
  #allocation1 [shape = 'u32[144,128]{1,0:T(1,128)}', space=vmem, size = 0x12000, scoped, tag = 'internal scratch']
  %s0 = inlined_call_operand.vmem [shape: f32[208,16], index: 0, kind: input, shape index: {}]
  %s1 = inlined_call_operand.vmem [shape: bf16[16,256], index: 1, kind: input, shape index: {}]
  %s2 = inlined_call_operand.vmem [shape: f32[1,256], index: 2, kind: input, shape index: {}]
  %s3 = inlined_call_operand.hbm [shape: bf16[256,512], index: 3, kind: input, shape index: {}]
  %s4 = inlined_call_operand.vmem [shape: f32[1,512], index: 4, kind: input, shape index: {}]
  %s5 = inlined_call_operand.hbm [shape: bf16[512,256], index: 5, kind: input, shape index: {}]
  %s6 = inlined_call_operand.vmem [shape: f32[1,256], index: 6, kind: input, shape index: {}]
  %s7 = inlined_call_operand.hbm [shape: bf16[256,256], index: 7, kind: input, shape index: {}]
  %s8 = inlined_call_operand.vmem [shape: f32[1,256], index: 8, kind: input, shape index: {}]
  %s9 = inlined_call_operand.hbm [shape: f32[208,256], index: 9, kind: output, shape index: {}]
  %s10 = sld [smem:[#allocation0]]
  $region81: #{tpu_custom_call.1} parent=0
    _
  %s12 = ssub.s32 1, %s10
  %s13 = scalar_select 0, %s12, %s10
  $region1: #{tpu_custom_call.1} parent=0
    #allocation2 [shape = 'u8[262144]{0}', space=vmem, size = 0x40000, scoped, tag = 'input window, operand 3, single buffered']
    #allocation3 [shape = 's32[2]{0}', space=sflag, size = 0x8, scoped, tag = 'scoped memory for tpu_custom_call.1']
    #allocation4 [shape = 's32[2]{0}', space=sflag, size = 0x8, scoped, tag = 'scoped memory for tpu_custom_call.1']
    #allocation5 [shape = 'u8[262144]{0}', space=vmem, size = 0x40000, scoped, tag = 'input window, operand 5, single buffered']
    #allocation6 [shape = 's32[1]{0}', space=sflag, size = 0x4, scoped, tag = 'scoped memory for tpu_custom_call.1']
    #allocation7 [shape = 'u8[131072]{0}', space=vmem, size = 0x20000, scoped, tag = 'input window, operand 7, single buffered']
    #allocation8 [shape = 'u8[212992]{0}', space=vmem, size = 0x34000, scoped, tag = 'output window, operand 0']
    %14 = vsyncpa [#allocation3], 0
    %15 = vsyncpa [#allocation6], 0
    %16 = vsyncpa [#allocation4], 0
    %s17 = scalar_lea.sflag [#allocation4], 1
    %18 = vsyncpa %s17, 0
    loop: start=0, step=1, limit=4
    $region2: #{tpu_custom_call.1} parent=1 // loop_pre_header
      _
    $region3: #{tpu_custom_call.1} parent=1 // loop_header
      %s20 = sphi 0, %s24
      %p21 = scmp.ge.s32.totalorder %s20, 4
      %s30 = sphi 0, %s32
      %s33 = sphi 0, %s30
      %s34 = sphi 0, %s33
      %s50 = sphi 0, %s34
      %s54 = sphi 0, %s54
      %s56 = sphi 0, %s54
      %s57 = sphi 0, %s56
      %s71 = sphi 0, %s57
      %s75 = sphi 0, %s75
      %s77 = sphi 0, %s75
      %s78 = sphi 0, %s77
      %s92 = sphi 0, %s78
      %s96 = sphi 0, %s96
      %s98 = sphi 0, %s96
      %s99 = sphi 0, %s98
      %s113 = sphi 0, %s99
      %s117 = sphi 0, %s117
      %s119 = sphi 0, %s117
      %s120 = sphi 0, %s119
      %s134 = sphi 0, %s120
      %s138 = sphi 0, %s138
      %s140 = sphi 0, %s138
      %s141 = sphi 0, %s140
      %s155 = sphi 0, %s141
      %s159 = sphi 0, %s159
      %s161 = sphi 0, %s159
      %s162 = sphi 0, %s161
      %s176 = sphi 0, %s162
      %s180 = sphi 0, %s180
      %s182 = sphi 0, %s180
      %s183 = sphi 0, %s182
      %s197 = sphi 0, %s183
      %s201 = sphi 0, %s201
      %s203 = sphi 0, %s201
      %s204 = sphi 0, %s203
      %s218 = sphi 0, %s204
      %s224 = sphi 0, %s226
      %s227 = sphi 0, %s224
      %s228 = sphi 0, %s227
      %s244 = sphi 0, %s228
    $region4: #{tpu_custom_call.1} parent=1 // loop_header_branch
      %23 = sbr.rel (%p21) target = $region8
    $region5: #{tpu_custom_call.1} parent=1 // loop_body
      %s25 = ssub.s32 %s20, 1
      %s26 = ssub.s32 %s20, 2
      %s27 = sadd.s32 %s20, 1
      %s28 = ssub.s32 %s20, %s27
      %p29 = scmp.eq.s32.totalorder %s28, 0
      %s31 = sadd.s32 %s30, 1
      %s32 = scalar_select %p29, %s30, %s31
      %p35 = pneg %p29
      %p36 = scmp.eq.s32.totalorder %s20, 1
      %p37 = por %p35, %p36
      %p38 = scmp.ne.s32.totalorder %s30, %s33
      %p39 = scmp.eq.s32.totalorder %s20, 0
      %p40 = por %p38, %p39
      %p41 = scmp.ne.s32.totalorder %s30, %s33
      %p42 = scmp.eq.s32.totalorder %s25, 1
      %p43 = por %p41, %p42
      %p44 = scmp.ne.s32.totalorder %s33, %s34
      %p45 = scmp.eq.s32.totalorder %s25, 0
      %p46 = por %p44, %p45
      %p47 = scmp.ne.s32.totalorder %s33, %s34
      %p48 = scmp.eq.s32.totalorder %s26, 1
      %p49 = por %p47, %p48
      %p51 = scmp.ne.s32.totalorder %s34, %s50
      %p52 = scmp.eq.s32.totalorder %s26, 0
      %p53 = por %p51, %p52
      %s55 = sadd.s32 %s54, 1
      %p58 = scmp.eq.s32.totalorder %s20, 1
      %p59 = scmp.ne.s32.totalorder %s54, %s56
      %p60 = scmp.eq.s32.totalorder %s20, 0
      %p61 = por %p59, %p60
      %p62 = scmp.ne.s32.totalorder %s54, %s56
      %p63 = scmp.eq.s32.totalorder %s25, 1
      %p64 = por %p62, %p63
      %p65 = scmp.ne.s32.totalorder %s56, %s57
      %p66 = scmp.eq.s32.totalorder %s25, 0
      %p67 = por %p65, %p66
      %p68 = scmp.ne.s32.totalorder %s56, %s57
      %p69 = scmp.eq.s32.totalorder %s26, 1
      %p70 = por %p68, %p69
      %p72 = scmp.ne.s32.totalorder %s57, %s71
      %p73 = scmp.eq.s32.totalorder %s26, 0
      %p74 = por %p72, %p73
      %s76 = sadd.s32 %s75, 1
      %p79 = scmp.eq.s32.totalorder %s20, 1
      %p80 = scmp.ne.s32.totalorder %s75, %s77
      %p81 = scmp.eq.s32.totalorder %s20, 0
      %p82 = por %p80, %p81
      %p83 = scmp.ne.s32.totalorder %s75, %s77
      %p84 = scmp.eq.s32.totalorder %s25, 1
      %p85 = por %p83, %p84
      %p86 = scmp.ne.s32.totalorder %s77, %s78
      %p87 = scmp.eq.s32.totalorder %s25, 0
      %p88 = por %p86, %p87
      %p89 = scmp.ne.s32.totalorder %s77, %s78
      %p90 = scmp.eq.s32.totalorder %s26, 1
      %p91 = por %p89, %p90
      %p93 = scmp.ne.s32.totalorder %s78, %s92
      %p94 = scmp.eq.s32.totalorder %s26, 0
      %p95 = por %p93, %p94
      %s97 = sadd.s32 %s96, 1
      %p100 = scmp.eq.s32.totalorder %s20, 1
      %p101 = scmp.ne.s32.totalorder %s96, %s98
      %p102 = scmp.eq.s32.totalorder %s20, 0
      %p103 = por %p101, %p102
      %p104 = scmp.ne.s32.totalorder %s96, %s98
      %p105 = scmp.eq.s32.totalorder %s25, 1
      %p106 = por %p104, %p105
      %p107 = scmp.ne.s32.totalorder %s98, %s99
      %p108 = scmp.eq.s32.totalorder %s25, 0
      %p109 = por %p107, %p108
      %p110 = scmp.ne.s32.totalorder %s98, %s99
      %p111 = scmp.eq.s32.totalorder %s26, 1
      %p112 = por %p110, %p111
      %p114 = scmp.ne.s32.totalorder %s99, %s113
      %p115 = scmp.eq.s32.totalorder %s26, 0
      %p116 = por %p114, %p115
      %s118 = sadd.s32 %s117, 1
      %p121 = scmp.eq.s32.totalorder %s20, 1
      %p122 = scmp.ne.s32.totalorder %s117, %s119
      %p123 = scmp.eq.s32.totalorder %s20, 0
      %p124 = por %p122, %p123
      %p125 = scmp.ne.s32.totalorder %s117, %s119
      %p126 = scmp.eq.s32.totalorder %s25, 1
      %p127 = por %p125, %p126
      %p128 = scmp.ne.s32.totalorder %s119, %s120
      %p129 = scmp.eq.s32.totalorder %s25, 0
      %p130 = por %p128, %p129
      %p131 = scmp.ne.s32.totalorder %s119, %s120
      %p132 = scmp.eq.s32.totalorder %s26, 1
      %p133 = por %p131, %p132
      %p135 = scmp.ne.s32.totalorder %s120, %s134
      %p136 = scmp.eq.s32.totalorder %s26, 0
      %p137 = por %p135, %p136
      %s139 = sadd.s32 %s138, 1
      %p142 = scmp.eq.s32.totalorder %s20, 1
      %p143 = scmp.ne.s32.totalorder %s138, %s140
      %p144 = scmp.eq.s32.totalorder %s20, 0
      %p145 = por %p143, %p144
      %p146 = scmp.ne.s32.totalorder %s138, %s140
      %p147 = scmp.eq.s32.totalorder %s25, 1
      %p148 = por %p146, %p147
      %p149 = scmp.ne.s32.totalorder %s140, %s141
      %p150 = scmp.eq.s32.totalorder %s25, 0
      %p151 = por %p149, %p150
      %p152 = scmp.ne.s32.totalorder %s140, %s141
      %p153 = scmp.eq.s32.totalorder %s26, 1
      %p154 = por %p152, %p153
      %p156 = scmp.ne.s32.totalorder %s141, %s155
      %p157 = scmp.eq.s32.totalorder %s26, 0
      %p158 = por %p156, %p157
      %s160 = sadd.s32 %s159, 1
      %p163 = scmp.eq.s32.totalorder %s20, 1
      %p164 = scmp.ne.s32.totalorder %s159, %s161
      %p165 = scmp.eq.s32.totalorder %s20, 0
      %p166 = por %p164, %p165
      %p167 = scmp.ne.s32.totalorder %s159, %s161
      %p168 = scmp.eq.s32.totalorder %s25, 1
      %p169 = por %p167, %p168
      %p170 = scmp.ne.s32.totalorder %s161, %s162
      %p171 = scmp.eq.s32.totalorder %s25, 0
      %p172 = por %p170, %p171
      %p173 = scmp.ne.s32.totalorder %s161, %s162
      %p174 = scmp.eq.s32.totalorder %s26, 1
      %p175 = por %p173, %p174
      %p177 = scmp.ne.s32.totalorder %s162, %s176
      %p178 = scmp.eq.s32.totalorder %s26, 0
      %p179 = por %p177, %p178
      %s181 = sadd.s32 %s180, 1
      %p184 = scmp.eq.s32.totalorder %s20, 1
      %p185 = scmp.ne.s32.totalorder %s180, %s182
      %p186 = scmp.eq.s32.totalorder %s20, 0
      %p187 = por %p185, %p186
      %p188 = scmp.ne.s32.totalorder %s180, %s182
      %p189 = scmp.eq.s32.totalorder %s25, 1
      %p190 = por %p188, %p189
      %p191 = scmp.ne.s32.totalorder %s182, %s183
      %p192 = scmp.eq.s32.totalorder %s25, 0
      %p193 = por %p191, %p192
      %p194 = scmp.ne.s32.totalorder %s182, %s183
      %p195 = scmp.eq.s32.totalorder %s26, 1
      %p196 = por %p194, %p195
      %p198 = scmp.ne.s32.totalorder %s183, %s197
      %p199 = scmp.eq.s32.totalorder %s26, 0
      %p200 = por %p198, %p199
      %s202 = sadd.s32 %s201, 1
      %p205 = scmp.eq.s32.totalorder %s20, 1
      %p206 = scmp.ne.s32.totalorder %s201, %s203
      %p207 = scmp.eq.s32.totalorder %s20, 0
      %p208 = por %p206, %p207
      %p209 = scmp.ne.s32.totalorder %s201, %s203
      %p210 = scmp.eq.s32.totalorder %s25, 1
      %p211 = por %p209, %p210
      %p212 = scmp.ne.s32.totalorder %s203, %s204
      %p213 = scmp.eq.s32.totalorder %s25, 0
      %p214 = por %p212, %p213
      %p215 = scmp.ne.s32.totalorder %s203, %s204
      %p216 = scmp.eq.s32.totalorder %s26, 1
      %p217 = por %p215, %p216
      %p219 = scmp.ne.s32.totalorder %s204, %s218
      %p220 = scmp.eq.s32.totalorder %s26, 0
      %p221 = por %p219, %p220
      %s222 = ssub.s32 %s20, %s27
      %p223 = scmp.eq.s32.totalorder %s222, 0
      %s225 = sadd.s32 %s224, 1
      %s226 = scalar_select %p223, %s224, %s225
      %p229 = pneg %p223
      %p230 = scmp.eq.s32.totalorder %s20, 1
      %p231 = por %p229, %p230
      %p232 = scmp.ne.s32.totalorder %s224, %s227
      %p233 = scmp.eq.s32.totalorder %s20, 0
      %p234 = por %p232, %p233
      %p235 = scmp.ne.s32.totalorder %s224, %s227
      %p236 = scmp.eq.s32.totalorder %s25, 1
      %p237 = por %p235, %p236
      %p238 = scmp.ne.s32.totalorder %s227, %s228
      %p239 = scmp.eq.s32.totalorder %s25, 0
      %p240 = por %p238, %p239
      %p241 = scmp.ne.s32.totalorder %s227, %s228
      %p242 = scmp.eq.s32.totalorder %s26, 1
      %p243 = por %p241, %p242
      %p245 = scmp.ne.s32.totalorder %s228, %s244
      %p246 = scmp.eq.s32.totalorder %s26, 0
      %p247 = por %p245, %p246
      %p248 = scmp.le.s32.totalorder 1, %s20
      %p249 = scmp.lt.s32.totalorder %s20, 3
      %p250 = pnand %p248, %p249
      %p251 = pneg %p250
      // Predicated region
      $region9: #{tpu_custom_call.1} parent=5 // pred_check
        _
      $region10: #{tpu_custom_call.1} parent=5 // pred_check_branch
        %253 = sbr.rel (%p250) target = $region12
      $region11: #{tpu_custom_call.1} parent=5 // pred_region
        %s254 = ssub.s32 %s20, 1
        // Predicated region
        $region13: #{tpu_custom_call.1} parent=11 // pred_check
          %p255 = pneg %p67
        $region14: #{tpu_custom_call.1} parent=11 // pred_check_branch
          %257 = sbr.rel (%p255) target = $region16
        $region15: #{tpu_custom_call.1} parent=11 // pred_region
          _
        $region16: #{tpu_custom_call.1} parent=11 // pred_fallthru
          _
        // Predicated region
        $region17: #{tpu_custom_call.1} parent=11 // pred_check
          %p258 = pneg %p88
        $region18: #{tpu_custom_call.1} parent=11 // pred_check_branch
          %260 = sbr.rel (%p258) target = $region20
        $region19: #{tpu_custom_call.1} parent=11 // pred_region
          _
        $region20: #{tpu_custom_call.1} parent=11 // pred_fallthru
          _
        // Predicated region
        $region21: #{tpu_custom_call.1} parent=11 // pred_check
          %p261 = pneg %p109
        $region22: #{tpu_custom_call.1} parent=11 // pred_check_branch
          %263 = sbr.rel (%p261) target = $region24
        $region23: #{tpu_custom_call.1} parent=11 // pred_region
          %s265 = ssub.s32 8192, 8192
          %266 = vsyncadd [#allocation3], %s265
          %s267 = sshll.u32 [#allocation2], 4
          %s268 = int_to_ptr.vmem [resolvable:$true] %s267
          %273 = dma.hbm_to_vmem [thread:$0]  %s3, 8192, %s268, [#allocation3], 256, 256, 16
        $region24: #{tpu_custom_call.1} parent=11 // pred_fallthru
          _
        // Predicated region
        $region25: #{tpu_custom_call.1} parent=11 // pred_check
          %p274 = pneg %p130
        $region26: #{tpu_custom_call.1} parent=11 // pred_check_branch
          %276 = sbr.rel (%p274) target = $region28
        $region27: #{tpu_custom_call.1} parent=11 // pred_region
          _
        $region28: #{tpu_custom_call.1} parent=11 // pred_fallthru
          _
        // Predicated region
        $region29: #{tpu_custom_call.1} parent=11 // pred_check
          %p277 = pneg %p151
        $region30: #{tpu_custom_call.1} parent=11 // pred_check_branch
          %279 = sbr.rel (%p277) target = $region32
        $region31: #{tpu_custom_call.1} parent=11 // pred_region
          %s281 = ssub.s32 8192, 8192
          %282 = vsyncadd [#allocation6], %s281
          %s283 = sshll.u32 [#allocation5], 4
          %s284 = int_to_ptr.vmem [resolvable:$true] %s283
          %289 = dma.hbm_to_vmem [thread:$0]  %s5, 8192, %s284, [#allocation6], 128, 128, 8
        $region32: #{tpu_custom_call.1} parent=11 // pred_fallthru
          _
        // Predicated region
        $region33: #{tpu_custom_call.1} parent=11 // pred_check
          %p290 = pneg %p172
        $region34: #{tpu_custom_call.1} parent=11 // pred_check_branch
          %292 = sbr.rel (%p290) target = $region36
        $region35: #{tpu_custom_call.1} parent=11 // pred_region
          _
        $region36: #{tpu_custom_call.1} parent=11 // pred_fallthru
          _
        // Predicated region
        $region37: #{tpu_custom_call.1} parent=11 // pred_check
          %p293 = pneg %p193
        $region38: #{tpu_custom_call.1} parent=11 // pred_check_branch
          %295 = sbr.rel (%p293) target = $region40
        $region39: #{tpu_custom_call.1} parent=11 // pred_region
          %s297 = ssub.s32 4096, 4096
          %298 = vsyncadd [#allocation6], %s297
          %s299 = sshll.u32 [#allocation7], 4
          %s300 = int_to_ptr.vmem [resolvable:$true] %s299
          %305 = dma.hbm_to_vmem [thread:$0]  %s7, 4096, %s300, [#allocation6], 128, 128, 8
        $region40: #{tpu_custom_call.1} parent=11 // pred_fallthru
          _
        // Predicated region
        $region41: #{tpu_custom_call.1} parent=11 // pred_check
          %p306 = pneg %p214
        $region42: #{tpu_custom_call.1} parent=11 // pred_check_branch
          %308 = sbr.rel (%p306) target = $region44
        $region43: #{tpu_custom_call.1} parent=11 // pred_region
          _
        $region44: #{tpu_custom_call.1} parent=11 // pred_fallthru
          _
      $region12: #{tpu_custom_call.1} parent=5 // pred_fallthru
        _
      %p309 = scmp.lt.s32.totalorder %s20, 2
      // Predicated region
      $region45: #{tpu_custom_call.1} parent=5 // pred_check
        %p310 = pneg %p309
      $region46: #{tpu_custom_call.1} parent=5 // pred_check_branch
        %312 = sbr.rel (%p310) target = $region48
      $region47: #{tpu_custom_call.1} parent=5 // pred_region
        // Predicated region
        $region49: #{tpu_custom_call.1} parent=47 // pred_check
          %p313 = pneg %p40
        $region50: #{tpu_custom_call.1} parent=47 // pred_check_branch
          %315 = sbr.rel (%p313) target = $region52
        $region51: #{tpu_custom_call.1} parent=47 // pred_region
          %s316 = smul.u32 13, %s20
          %p317 = scmp.lt.s32.totalorder %s316, 25
          %s318 = scalar_select %p317, %s316, 25
          %s319 = smul.addr %s318, 8
          %s320 = scalar_lea.vmem %s0, %s319
          %s321 = smul.u32 13, %s20
        $region52: #{tpu_custom_call.1} parent=47 // pred_fallthru
          _
      $region48: #{tpu_custom_call.1} parent=5 // pred_fallthru
        _
      %p322 = scmp.le.s32.totalorder 1, %s20
      %p323 = scmp.lt.s32.totalorder %s20, 3
      %p324 = pnand %p322, %p323
      %p325 = pneg %p324
      // Predicated region
      $region53: #{tpu_custom_call.1} parent=5 // pred_check
        _
      $region54: #{tpu_custom_call.1} parent=5 // pred_check_branch
        %327 = sbr.rel (%p324) target = $region56
      $region55: #{tpu_custom_call.1} parent=5 // pred_region
        %s328 = ssub.s32 %s20, 1
        // Predicated region
        $region57: #{tpu_custom_call.1} parent=55 // pred_check
          %p329 = pneg %p109
        $region58: #{tpu_custom_call.1} parent=55 // pred_check_branch
          %331 = sbr.rel (%p329) target = $region60
        $region59: #{tpu_custom_call.1} parent=55 // pred_region
          %332 = dma.done [#allocation3], 8192
        $region60: #{tpu_custom_call.1} parent=55 // pred_fallthru
          _
        // Predicated region
        $region61: #{tpu_custom_call.1} parent=55 // pred_check
          %p333 = pneg %p151
        $region62: #{tpu_custom_call.1} parent=55 // pred_check_branch
          %335 = sbr.rel (%p333) target = $region64
        $region63: #{tpu_custom_call.1} parent=55 // pred_region
          %336 = dma.done [#allocation6], 8192
        $region64: #{tpu_custom_call.1} parent=55 // pred_fallthru
          _
        // Predicated region
        $region65: #{tpu_custom_call.1} parent=55 // pred_check
          %p337 = pneg %p193
        $region66: #{tpu_custom_call.1} parent=55 // pred_check_branch
          %339 = sbr.rel (%p337) target = $region68
        $region67: #{tpu_custom_call.1} parent=55 // pred_region
          %340 = dma.done [#allocation6], 4096
        $region68: #{tpu_custom_call.1} parent=55 // pred_fallthru
          _
        %s341 = smul.u32 13, %s25
        %p342 = scmp.lt.s32.totalorder %s341, 25
        %s343 = scalar_select %p342, %s341, 25
        %s344 = smul.addr %s343, 8
        %s345 = scalar_lea.vmem %s0, %s344
        %p346 = pneg %p46
        %p347 = pneg %p43
        %p348 = pneg %p67
        %p349 = pneg %p64
        %p350 = pneg %p88
        %p351 = pneg %p85
        %p352 = pneg %p109
        %p353 = pneg %p106
        %p354 = pneg %p130
        %p355 = pneg %p127
        %p356 = pneg %p151
        %p357 = pneg %p148
        %p358 = pneg %p172
        %p359 = pneg %p169
        %p360 = pneg %p193
        %p361 = pneg %p190
        %p362 = pneg %p214
        %p363 = pneg %p211
        %p364 = pneg %p240
        %p365 = pneg %p237
        %s366 = sand.u32 %s227, 1
        %s367 = scalar_lea.sflag [#allocation4], %s366
        %s368 = sand.u32 %s227, 1
        %s369 = smul.addr %s368, 208
        %s370 = scalar_lea.vmem [#allocation8], %s369
        %s371 = smul.u32 13, %s25
        %p372 = scmp.lt.s32.totalorder %s371, 25
        %s373 = scalar_select %p372, %s371, 25
        %s374 = smul.addr %s373, 8
        %s375 = scalar_lea.vmem %s0, %s374
        %s376 = smul.u32 13, %s25
        %s377 = smul.u32 13, %s25
        %v379 = vld [vmem:[%s375] sm:$0xff]
        %v380 = vld [vmem:[%s375 + $0x8] sm:$0xff]
        %v381 = vld [vmem:[%s375 + $0x10] sm:$0xff]
        %v382 = vld [vmem:[%s375 + $0x18] sm:$0xff]
        %v383 = vld [vmem:[%s375 + $0x20] sm:$0xff]
        %v384 = vld [vmem:[%s375 + $0x28] sm:$0xff]
        %v385 = vld [vmem:[%s375 + $0x30] sm:$0xff]
        %v386 = vld [vmem:[%s375 + $0x38] sm:$0xff]
        %v387 = vld [vmem:[%s375 + $0x40] sm:$0xff]
        %v388 = vld [vmem:[%s375 + $0x48] sm:$0xff]
        %v389 = vld [vmem:[%s375 + $0x50] sm:$0xff]
        %v390 = vld [vmem:[%s375 + $0x58] sm:$0xff]
        %v391 = vld [vmem:[%s375 + $0x60] sm:$0xff]
        %v392 = vpack.c.bf16 %v380, %v379
        %v393 = vpack.c.bf16 %v382, %v381
        %v394 = vpack.c.bf16 %v384, %v383
        %v395 = vpack.c.bf16 %v386, %v385
        %v396 = vpack.c.bf16 %v388, %v387
        %v397 = vpack.c.bf16 %v390, %v389
        %v398 = vpack.c.bf16 %v391, %v391
        %v399 = vld [vmem:[%s1] sm:$0xff]
        %v400 = vld [vmem:[%s1 + $0x8] sm:$0xff]
        %v401 = vld [vmem:[%s2] sm:$0x3]
        %v403 = vlaneseq
        %v404 = vshrl.u32 %v403, 7
        %v405 = vsub.s32 0, %v404
        %v406 = vrot.slane %v401, %v405
        %v407 = vlaneseq
        %v408 = vshrl.u32 %v407, 7
        %v409 = vsub.s32 1, %v408
        %v410 = vrot.slane %v401, %v409
        %v415 = vunpack.c.l.b16 %v399
        %v416 = vunpack.c.h.b16 %v399
        %v417 = vunpack.c.l.b16 %v400
        %v418 = vunpack.c.h.b16 %v400
        %v419 = vpack.c.b16 %v417, %v415
        %v420 = vpack.c.b16 %v418, %v416
        %vm423 = vcmask 130048
        %v425 = vsel %vm423, %v392, 0
        %v428 = vsel %vm423, %v393, 0
        %v431 = vsel %vm423, %v394, 0
        %v434 = vsel %vm423, %v395, 0
        %v437 = vsel %vm423, %v396, 0
        %v440 = vsel %vm423, %v397, 0
        %v443 = vsel %vm423, %v398, 0
        %445 = vmatprep.subr.bf16.mxu0 0
        %446 = vmatpush1.bf16.msra.mxu0 0
        %447 = vmatprep.subr.bf16.mxu0 0
        %448 = vmatpush1.bf16.msra.mxu0 0
        %449 = vmatprep.subr.bf16.mxu0 0
        %450 = vmatpush1.bf16.msra.mxu0 0
        %451 = vmatprep.subr.bf16.mxu0 0
        %452 = vmatpush1.bf16.msra.mxu0 0
        %453 = vmatprep.subr.bf16.mxu0 0
        %454 = vmatpush1.bf16.msra.mxu0 0
        %455 = vmatprep.subr.bf16.mxu0 0
        %456 = vmatpush1.bf16.msra.mxu0 0
        %457 = vmatprep.subr.bf16.mxu0 0
        %458 = vmatpush1.bf16.msra.mxu0 0
        %459 = vmatprep.subr.bf16.mxu0 %v420
        %460 = vmatpush1.bf16.msra.mxu0 %v419
        %461 = vmatprep.subr.bf16.mxu0 0
        %462 = vmatpush2.bf16.msra.mxu0 0
        %463 = vmatprep.subr.bf16.mxu0 0
        %464 = vmatpush2.bf16.msra.mxu0 0
        %465 = vmatprep.subr.bf16.mxu0 0
        %466 = vmatpush2.bf16.msra.mxu0 0
        %467 = vmatprep.subr.bf16.mxu0 0
        %468 = vmatpush2.bf16.msra.mxu0 0
        %469 = vmatprep.subr.bf16.mxu0 0
        %470 = vmatpush2.bf16.msra.mxu0 0
        %471 = vmatprep.subr.bf16.mxu0 0
        %472 = vmatpush2.bf16.msra.mxu0 0
        %473 = vmatprep.subr.bf16.mxu0 0
        %474 = vmatpush2.bf16.msra.mxu0 0
        %475 = vmatprep.subr.bf16.mxu0 0
        %476 = vmatpush2.bf16.msra.mxu0 0
        %477 = vmatprep.mubr.bf16.mxu0 0
        %478 = vmatmul.mubr.bf16.gmra.mxu0 %v425
        %v479 = vpop.f32.mrf.mxu0
        %v480 = vadd.f32 %v406, %v479
        %v481 = vpop.f32.mrf.mxu0
        %v482 = vadd.f32 %v410, %v481
        %v483 = vpop.f32.mrf.mxu0
        %v484 = vadd.f32 %v406, %v483
        %v485 = vpop.f32.mrf.mxu0
        %v486 = vadd.f32 %v410, %v485
        %487 = vmatprep.mubr.bf16.mxu0 0
        %488 = vmatmul.mubr.bf16.gmra.mxu0 %v428
        %v489 = vpop.f32.mrf.mxu0
        %v490 = vadd.f32 %v406, %v489
        %v491 = vpop.f32.mrf.mxu0
        %v492 = vadd.f32 %v410, %v491
        %v493 = vpop.f32.mrf.mxu0
        %v494 = vadd.f32 %v406, %v493
        %v495 = vpop.f32.mrf.mxu0
        %v496 = vadd.f32 %v410, %v495
        %497 = vmatprep.mubr.bf16.mxu0 0
        %498 = vmatmul.mubr.bf16.gmra.mxu0 %v431
        %v499 = vpop.f32.mrf.mxu0
        %v500 = vadd.f32 %v406, %v499
        %v501 = vpop.f32.mrf.mxu0
        %v502 = vadd.f32 %v410, %v501
        %v503 = vpop.f32.mrf.mxu0
        %v504 = vadd.f32 %v406, %v503
        %v505 = vpop.f32.mrf.mxu0
        %v506 = vadd.f32 %v410, %v505
        %507 = vmatprep.mubr.bf16.mxu0 0
        %508 = vmatmul.mubr.bf16.gmra.mxu0 %v434
        %v509 = vpop.f32.mrf.mxu0
        %v510 = vadd.f32 %v406, %v509
        %v511 = vpop.f32.mrf.mxu0
        %v512 = vadd.f32 %v410, %v511
        %v513 = vpop.f32.mrf.mxu0
        %v514 = vadd.f32 %v406, %v513
        %v515 = vpop.f32.mrf.mxu0
        %v516 = vadd.f32 %v410, %v515
        %517 = vmatprep.mubr.bf16.mxu0 0
        %518 = vmatmul.mubr.bf16.gmra.mxu0 %v437
        %v519 = vpop.f32.mrf.mxu0
        %v520 = vadd.f32 %v406, %v519
        %v521 = vpop.f32.mrf.mxu0
        %v522 = vadd.f32 %v410, %v521
        %v523 = vpop.f32.mrf.mxu0
        %v524 = vadd.f32 %v406, %v523
        %v525 = vpop.f32.mrf.mxu0
        %v526 = vadd.f32 %v410, %v525
        %527 = vmatprep.mubr.bf16.mxu0 0
        %528 = vmatmul.mubr.bf16.gmra.mxu0 %v440
        %v529 = vpop.f32.mrf.mxu0
        %v530 = vadd.f32 %v406, %v529
        %v531 = vpop.f32.mrf.mxu0
        %v532 = vadd.f32 %v410, %v531
        %v533 = vpop.f32.mrf.mxu0
        %v534 = vadd.f32 %v406, %v533
        %v535 = vpop.f32.mrf.mxu0
        %v536 = vadd.f32 %v410, %v535
        %537 = vmatprep.mubr.bf16.mxu0 0
        %538 = vmatmul.mubr.bf16.gmra.mxu0 %v443
        %v539 = vpop.f32.mrf.mxu0
        %v540 = vadd.f32 %v406, %v539
        %v541 = vpop.f32.mrf.mxu0
        %v542 = vadd.f32 %v410, %v541
        %v543 = vpop.f32.mrf.mxu0
        %v544 = vpop.f32.mrf.mxu0
        %545 = vdwg.mxu0
        %v546 = vmax.f32 %v480, 0.0
        %v547 = vmax.f32 %v482, 0.0
        %v548 = vmax.f32 %v484, 0.0
        %v549 = vmax.f32 %v486, 0.0
        %v550 = vmax.f32 %v490, 0.0
        %v551 = vmax.f32 %v492, 0.0
        %v552 = vmax.f32 %v494, 0.0
        %v553 = vmax.f32 %v496, 0.0
        %v554 = vmax.f32 %v500, 0.0
        %v555 = vmax.f32 %v502, 0.0
        %v556 = vmax.f32 %v504, 0.0
        %v557 = vmax.f32 %v506, 0.0
        %v558 = vmax.f32 %v510, 0.0
        %v559 = vmax.f32 %v512, 0.0
        %v560 = vmax.f32 %v514, 0.0
        %v561 = vmax.f32 %v516, 0.0
        %v562 = vmax.f32 %v520, 0.0
        %v563 = vmax.f32 %v522, 0.0
        %v564 = vmax.f32 %v524, 0.0
        %v565 = vmax.f32 %v526, 0.0
        %v566 = vmax.f32 %v530, 0.0
        %v567 = vmax.f32 %v532, 0.0
        %v568 = vmax.f32 %v534, 0.0
        %v569 = vmax.f32 %v536, 0.0
        %v570 = vmax.f32 %v540, 0.0
        %v571 = vmax.f32 %v542, 0.0
        %v572 = vpack.c.bf16 %v548, %v546
        %v573 = vpack.c.bf16 %v549, %v547
        %v574 = vpack.c.bf16 %v552, %v550
        %v575 = vpack.c.bf16 %v553, %v551
        %v576 = vpack.c.bf16 %v556, %v554
        %v577 = vpack.c.bf16 %v557, %v555
        %v578 = vpack.c.bf16 %v560, %v558
        %v579 = vpack.c.bf16 %v561, %v559
        %v580 = vpack.c.bf16 %v564, %v562
        %v581 = vpack.c.bf16 %v565, %v563
        %v582 = vpack.c.bf16 %v568, %v566
        %v583 = vpack.c.bf16 %v569, %v567
        %v584 = vpack.c.bf16 %v570, %v570
        %v585 = vpack.c.bf16 %v571, %v571
        %v586 = vld [vmem:[#allocation2] sm:$0xff]
        %v587 = vld [vmem:[#allocation2 + $0x8] sm:$0xff]
        %v588 = vld [vmem:[#allocation2 + $0x10] sm:$0xff]
        %v589 = vld [vmem:[#allocation2 + $0x18] sm:$0xff]
        %v590 = vld [vmem:[#allocation2 + $0x20] sm:$0xff]
        %v591 = vld [vmem:[#allocation2 + $0x28] sm:$0xff]
        %v592 = vld [vmem:[#allocation2 + $0x30] sm:$0xff]
        %v593 = vld [vmem:[#allocation2 + $0x38] sm:$0xff]
        %v594 = vld [vmem:[#allocation2 + $0x40] sm:$0xff]
        %v595 = vld [vmem:[#allocation2 + $0x48] sm:$0xff]
        %v596 = vld [vmem:[#allocation2 + $0x50] sm:$0xff]
        %v597 = vld [vmem:[#allocation2 + $0x58] sm:$0xff]
        %v598 = vld [vmem:[#allocation2 + $0x60] sm:$0xff]
        %v599 = vld [vmem:[#allocation2 + $0x68] sm:$0xff]
        %v600 = vld [vmem:[#allocation2 + $0x70] sm:$0xff]
        %v601 = vld [vmem:[#allocation2 + $0x78] sm:$0xff]
        %v602 = vld [vmem:[#allocation2 + $0x80] sm:$0xff]
        %v603 = vld [vmem:[#allocation2 + $0x88] sm:$0xff]
        %v604 = vld [vmem:[#allocation2 + $0x90] sm:$0xff]
        %v605 = vld [vmem:[#allocation2 + $0x98] sm:$0xff]
        %v606 = vld [vmem:[#allocation2 + $0xa0] sm:$0xff]
        %v607 = vld [vmem:[#allocation2 + $0xa8] sm:$0xff]
        %v608 = vld [vmem:[#allocation2 + $0xb0] sm:$0xff]
        %v609 = vld [vmem:[#allocation2 + $0xb8] sm:$0xff]
        %v610 = vld [vmem:[#allocation2 + $0xc0] sm:$0xff]
        %v611 = vld [vmem:[#allocation2 + $0xc8] sm:$0xff]
        %v612 = vld [vmem:[#allocation2 + $0xd0] sm:$0xff]
        %v613 = vld [vmem:[#allocation2 + $0xd8] sm:$0xff]
        %v614 = vld [vmem:[#allocation2 + $0xe0] sm:$0xff]
        %v615 = vld [vmem:[#allocation2 + $0xe8] sm:$0xff]
        %v616 = vld [vmem:[#allocation2 + $0xf0] sm:$0xff]
        %v617 = vld [vmem:[#allocation2 + $0xf8] sm:$0xff]
        %v618 = vld [vmem:[#allocation2 + $0x100] sm:$0xff]
        %v619 = vld [vmem:[#allocation2 + $0x108] sm:$0xff]
        %v620 = vld [vmem:[#allocation2 + $0x110] sm:$0xff]
        %v621 = vld [vmem:[#allocation2 + $0x118] sm:$0xff]
        %v622 = vld [vmem:[#allocation2 + $0x120] sm:$0xff]
        %v623 = vld [vmem:[#allocation2 + $0x128] sm:$0xff]
        %v624 = vld [vmem:[#allocation2 + $0x130] sm:$0xff]
        %v625 = vld [vmem:[#allocation2 + $0x138] sm:$0xff]
        %v626 = vld [vmem:[#allocation2 + $0x140] sm:$0xff]
        %v627 = vld [vmem:[#allocation2 + $0x148] sm:$0xff]
        %v628 = vld [vmem:[#allocation2 + $0x150] sm:$0xff]
        %v629 = vld [vmem:[#allocation2 + $0x158] sm:$0xff]
        %v630 = vld [vmem:[#allocation2 + $0x160] sm:$0xff]
        %v631 = vld [vmem:[#allocation2 + $0x168] sm:$0xff]
        %v632 = vld [vmem:[#allocation2 + $0x170] sm:$0xff]
        %v633 = vld [vmem:[#allocation2 + $0x178] sm:$0xff]
        %v634 = vld [vmem:[#allocation2 + $0x180] sm:$0xff]
        %v635 = vld [vmem:[#allocation2 + $0x188] sm:$0xff]
        %v636 = vld [vmem:[#allocation2 + $0x190] sm:$0xff]
        %v637 = vld [vmem:[#allocation2 + $0x198] sm:$0xff]
        %v638 = vld [vmem:[#allocation2 + $0x1a0] sm:$0xff]
        %v639 = vld [vmem:[#allocation2 + $0x1a8] sm:$0xff]
        %v640 = vld [vmem:[#allocation2 + $0x1b0] sm:$0xff]
        %v641 = vld [vmem:[#allocation2 + $0x1b8] sm:$0xff]
        %v642 = vld [vmem:[#allocation2 + $0x1c0] sm:$0xff]
        %v643 = vld [vmem:[#allocation2 + $0x1c8] sm:$0xff]
        %v644 = vld [vmem:[#allocation2 + $0x1d0] sm:$0xff]
        %v645 = vld [vmem:[#allocation2 + $0x1d8] sm:$0xff]
        %v646 = vld [vmem:[#allocation2 + $0x1e0] sm:$0xff]
        %v647 = vld [vmem:[#allocation2 + $0x1e8] sm:$0xff]
        %v648 = vld [vmem:[#allocation2 + $0x1f0] sm:$0xff]
        %v649 = vld [vmem:[#allocation2 + $0x1f8] sm:$0xff]
        %v650 = vld [vmem:[%s4] sm:$0xf]
        %v652 = vlaneseq
        %v653 = vshrl.u32 %v652, 7
        %v654 = vsub.s32 0, %v653
        %v655 = vrot.slane %v650, %v654
        %v656 = vlaneseq
        %v657 = vshrl.u32 %v656, 7
        %v658 = vsub.s32 1, %v657
        %v659 = vrot.slane %v650, %v658
        %v660 = vlaneseq
        %v661 = vshrl.u32 %v660, 7
        %v662 = vsub.s32 2, %v661
        %v663 = vrot.slane %v650, %v662
        %v664 = vlaneseq
        %v665 = vshrl.u32 %v664, 7
        %v666 = vsub.s32 3, %v665
        %v667 = vrot.slane %v650, %v666
        %v736 = vunpack.c.l.b16 %v586
        %v737 = vunpack.c.h.b16 %v586
        %v738 = vunpack.c.l.b16 %v587
        %v739 = vunpack.c.h.b16 %v587
        %v740 = vunpack.c.l.b16 %v588
        %v741 = vunpack.c.h.b16 %v588
        %v742 = vunpack.c.l.b16 %v589
        %v743 = vunpack.c.h.b16 %v589
        %v744 = vunpack.c.l.b16 %v590
        %v745 = vunpack.c.h.b16 %v590
        %v746 = vunpack.c.l.b16 %v591
        %v747 = vunpack.c.h.b16 %v591
        %v748 = vunpack.c.l.b16 %v592
        %v749 = vunpack.c.h.b16 %v592
        %v750 = vunpack.c.l.b16 %v593
        %v751 = vunpack.c.h.b16 %v593
        %v752 = vunpack.c.l.b16 %v594
        %v753 = vunpack.c.h.b16 %v594
        %v754 = vunpack.c.l.b16 %v595
        %v755 = vunpack.c.h.b16 %v595
        %v756 = vunpack.c.l.b16 %v596
        %v757 = vunpack.c.h.b16 %v596
        %v758 = vunpack.c.l.b16 %v597
        %v759 = vunpack.c.h.b16 %v597
        %v760 = vunpack.c.l.b16 %v598
        %v761 = vunpack.c.h.b16 %v598
        %v762 = vunpack.c.l.b16 %v599
        %v763 = vunpack.c.h.b16 %v599
        %v764 = vunpack.c.l.b16 %v600
        %v765 = vunpack.c.h.b16 %v600
        %v766 = vunpack.c.l.b16 %v601
        %v767 = vunpack.c.h.b16 %v601
        %v768 = vunpack.c.l.b16 %v602
        %v769 = vunpack.c.h.b16 %v602
        %v770 = vunpack.c.l.b16 %v603
        %v771 = vunpack.c.h.b16 %v603
        %v772 = vunpack.c.l.b16 %v604
        %v773 = vunpack.c.h.b16 %v604
        %v774 = vunpack.c.l.b16 %v605
        %v775 = vunpack.c.h.b16 %v605
        %v776 = vunpack.c.l.b16 %v606
        %v777 = vunpack.c.h.b16 %v606
        %v778 = vunpack.c.l.b16 %v607
        %v779 = vunpack.c.h.b16 %v607
        %v780 = vunpack.c.l.b16 %v608
        %v781 = vunpack.c.h.b16 %v608
        %v782 = vunpack.c.l.b16 %v609
        %v783 = vunpack.c.h.b16 %v609
        %v784 = vunpack.c.l.b16 %v610
        %v785 = vunpack.c.h.b16 %v610
        %v786 = vunpack.c.l.b16 %v611
        %v787 = vunpack.c.h.b16 %v611
        %v788 = vunpack.c.l.b16 %v612
        %v789 = vunpack.c.h.b16 %v612
        %v790 = vunpack.c.l.b16 %v613
        %v791 = vunpack.c.h.b16 %v613
        %v792 = vunpack.c.l.b16 %v614
        %v793 = vunpack.c.h.b16 %v614
        %v794 = vunpack.c.l.b16 %v615
        %v795 = vunpack.c.h.b16 %v615
        %v796 = vunpack.c.l.b16 %v616
        %v797 = vunpack.c.h.b16 %v616
        %v798 = vunpack.c.l.b16 %v617
        %v799 = vunpack.c.h.b16 %v617
        %v800 = vunpack.c.l.b16 %v618
        %v801 = vunpack.c.h.b16 %v618
        %v802 = vunpack.c.l.b16 %v619
        %v803 = vunpack.c.h.b16 %v619
        %v804 = vunpack.c.l.b16 %v620
        %v805 = vunpack.c.h.b16 %v620
        %v806 = vunpack.c.l.b16 %v621
        %v807 = vunpack.c.h.b16 %v621
        %v808 = vunpack.c.l.b16 %v622
        %v809 = vunpack.c.h.b16 %v622
        %v810 = vunpack.c.l.b16 %v623
        %v811 = vunpack.c.h.b16 %v623
        %v812 = vunpack.c.l.b16 %v624
        %v813 = vunpack.c.h.b16 %v624
        %v814 = vunpack.c.l.b16 %v625
        %v815 = vunpack.c.h.b16 %v625
        %v816 = vunpack.c.l.b16 %v626
        %v817 = vunpack.c.h.b16 %v626
        %v818 = vunpack.c.l.b16 %v627
        %v819 = vunpack.c.h.b16 %v627
        %v820 = vunpack.c.l.b16 %v628
        %v821 = vunpack.c.h.b16 %v628
        %v822 = vunpack.c.l.b16 %v629
        %v823 = vunpack.c.h.b16 %v629
        %v824 = vunpack.c.l.b16 %v630
        %v825 = vunpack.c.h.b16 %v630
        %v826 = vunpack.c.l.b16 %v631
        %v827 = vunpack.c.h.b16 %v631
        %v828 = vunpack.c.l.b16 %v632
        %v829 = vunpack.c.h.b16 %v632
        %v830 = vunpack.c.l.b16 %v633
        %v831 = vunpack.c.h.b16 %v633
        %v832 = vunpack.c.l.b16 %v634
        %v833 = vunpack.c.h.b16 %v634
        %v834 = vunpack.c.l.b16 %v635
        %v835 = vunpack.c.h.b16 %v635
        %v836 = vunpack.c.l.b16 %v636
        %v837 = vunpack.c.h.b16 %v636
        %v838 = vunpack.c.l.b16 %v637
        %v839 = vunpack.c.h.b16 %v637
        %v840 = vunpack.c.l.b16 %v638
        %v841 = vunpack.c.h.b16 %v638
        %v842 = vunpack.c.l.b16 %v639
        %v843 = vunpack.c.h.b16 %v639
        %v844 = vunpack.c.l.b16 %v640
        %v845 = vunpack.c.h.b16 %v640
        %v846 = vunpack.c.l.b16 %v641
        %v847 = vunpack.c.h.b16 %v641
        %v848 = vunpack.c.l.b16 %v642
        %v849 = vunpack.c.h.b16 %v642
        %v850 = vunpack.c.l.b16 %v643
        %v851 = vunpack.c.h.b16 %v643
        %v852 = vunpack.c.l.b16 %v644
        %v853 = vunpack.c.h.b16 %v644
        %v854 = vunpack.c.l.b16 %v645
        %v855 = vunpack.c.h.b16 %v645
        %v856 = vunpack.c.l.b16 %v646
        %v857 = vunpack.c.h.b16 %v646
        %v858 = vunpack.c.l.b16 %v647
        %v859 = vunpack.c.h.b16 %v647
        %v860 = vunpack.c.l.b16 %v648
        %v861 = vunpack.c.h.b16 %v648
        %v862 = vunpack.c.l.b16 %v649
        %v863 = vunpack.c.h.b16 %v649
        %v864 = vpack.c.b16 %v740, %v736
        %v865 = vpack.c.b16 %v741, %v737
        %v866 = vpack.c.b16 %v742, %v738
        %v867 = vpack.c.b16 %v743, %v739
        %v868 = vpack.c.b16 %v748, %v744
        %v869 = vpack.c.b16 %v749, %v745
        %v870 = vpack.c.b16 %v750, %v746
        %v871 = vpack.c.b16 %v751, %v747
        %v872 = vpack.c.b16 %v756, %v752
        %v873 = vpack.c.b16 %v757, %v753
        %v874 = vpack.c.b16 %v758, %v754
        %v875 = vpack.c.b16 %v759, %v755
        %v876 = vpack.c.b16 %v764, %v760
        %v877 = vpack.c.b16 %v765, %v761
        %v878 = vpack.c.b16 %v766, %v762
        %v879 = vpack.c.b16 %v767, %v763
        %v880 = vpack.c.b16 %v772, %v768
        %v881 = vpack.c.b16 %v773, %v769
        %v882 = vpack.c.b16 %v774, %v770
        %v883 = vpack.c.b16 %v775, %v771
        %v884 = vpack.c.b16 %v780, %v776
        %v885 = vpack.c.b16 %v781, %v777
        %v886 = vpack.c.b16 %v782, %v778
        %v887 = vpack.c.b16 %v783, %v779
        %v888 = vpack.c.b16 %v788, %v784
        %v889 = vpack.c.b16 %v789, %v785
        %v890 = vpack.c.b16 %v790, %v786
        %v891 = vpack.c.b16 %v791, %v787
        %v892 = vpack.c.b16 %v796, %v792
        %v893 = vpack.c.b16 %v797, %v793
        %v894 = vpack.c.b16 %v798, %v794
        %v895 = vpack.c.b16 %v799, %v795
        %v896 = vpack.c.b16 %v804, %v800
        %v897 = vpack.c.b16 %v805, %v801
        %v898 = vpack.c.b16 %v806, %v802
        %v899 = vpack.c.b16 %v807, %v803
        %v900 = vpack.c.b16 %v812, %v808
        %v901 = vpack.c.b16 %v813, %v809
        %v902 = vpack.c.b16 %v814, %v810
        %v903 = vpack.c.b16 %v815, %v811
        %v904 = vpack.c.b16 %v820, %v816
        %v905 = vpack.c.b16 %v821, %v817
        %v906 = vpack.c.b16 %v822, %v818
        %v907 = vpack.c.b16 %v823, %v819
        %v908 = vpack.c.b16 %v828, %v824
        %v909 = vpack.c.b16 %v829, %v825
        %v910 = vpack.c.b16 %v830, %v826
        %v911 = vpack.c.b16 %v831, %v827
        %v912 = vpack.c.b16 %v836, %v832
        %v913 = vpack.c.b16 %v837, %v833
        %v914 = vpack.c.b16 %v838, %v834
        %v915 = vpack.c.b16 %v839, %v835
        %v916 = vpack.c.b16 %v844, %v840
        %v917 = vpack.c.b16 %v845, %v841
        %v918 = vpack.c.b16 %v846, %v842
        %v919 = vpack.c.b16 %v847, %v843
        %v920 = vpack.c.b16 %v852, %v848
        %v921 = vpack.c.b16 %v853, %v849
        %v922 = vpack.c.b16 %v854, %v850
        %v923 = vpack.c.b16 %v855, %v851
        %v924 = vpack.c.b16 %v860, %v856
        %v925 = vpack.c.b16 %v861, %v857
        %v926 = vpack.c.b16 %v862, %v858
        %v927 = vpack.c.b16 %v863, %v859
        %992 = vmatprep.subr.bf16.mxu0 %v893
        %993 = vmatpush1.bf16.msra.mxu0 %v892
        %994 = vmatprep.subr.bf16.mxu0 %v889
        %995 = vmatpush1.bf16.msra.mxu0 %v888
        %996 = vmatprep.subr.bf16.mxu0 %v885
        %997 = vmatpush1.bf16.msra.mxu0 %v884
        %998 = vmatprep.subr.bf16.mxu0 %v881
        %999 = vmatpush1.bf16.msra.mxu0 %v880
        %1000 = vmatprep.subr.bf16.mxu0 %v877
        %1001 = vmatpush1.bf16.msra.mxu0 %v876
        %1002 = vmatprep.subr.bf16.mxu0 %v873
        %1003 = vmatpush1.bf16.msra.mxu0 %v872
        %1004 = vmatprep.subr.bf16.mxu0 %v869
        %1005 = vmatpush1.bf16.msra.mxu0 %v868
        %1006 = vmatprep.subr.bf16.mxu0 %v865
        %1007 = vmatpush1.bf16.msra.mxu0 %v864
        %1008 = vmatprep.subr.bf16.mxu0 %v925
        %1009 = vmatpush2.bf16.msra.mxu0 %v924
        %1010 = vmatprep.subr.bf16.mxu0 %v921
        %1011 = vmatpush2.bf16.msra.mxu0 %v920
        %1012 = vmatprep.subr.bf16.mxu0 %v917
        %1013 = vmatpush2.bf16.msra.mxu0 %v916
        %1014 = vmatprep.subr.bf16.mxu0 %v913
        %1015 = vmatpush2.bf16.msra.mxu0 %v912
        %1016 = vmatprep.subr.bf16.mxu0 %v909
        %1017 = vmatpush2.bf16.msra.mxu0 %v908
        %1018 = vmatprep.subr.bf16.mxu0 %v905
        %1019 = vmatpush2.bf16.msra.mxu0 %v904
        %1020 = vmatprep.subr.bf16.mxu0 %v901
        %1021 = vmatpush2.bf16.msra.mxu0 %v900
        %1022 = vmatprep.subr.bf16.mxu0 %v897
        %1023 = vmatpush2.bf16.msra.mxu0 %v896
        %1024 = vmatprep.mubr.bf16.mxu0 %v573
        %1025 = vmatmul.mubr.bf16.gmra.mxu0 %v572
        %v1026 = vpop.f32.mrf.mxu0
        %v1027 = vadd.f32 %v655, %v1026
        %v1028 = vpop.f32.mrf.mxu0
        %v1029 = vadd.f32 %v659, %v1028
        %v1030 = vpop.f32.mrf.mxu0
        %v1031 = vadd.f32 %v655, %v1030
        %v1032 = vpop.f32.mrf.mxu0
        %v1033 = vadd.f32 %v659, %v1032
        %1034 = vmatprep.mubr.bf16.mxu0 %v575
        %1035 = vmatmul.mubr.bf16.gmra.mxu0 %v574
        %v1036 = vpop.f32.mrf.mxu0
        %v1037 = vadd.f32 %v655, %v1036
        %v1038 = vpop.f32.mrf.mxu0
        %v1039 = vadd.f32 %v659, %v1038
        %v1040 = vpop.f32.mrf.mxu0
        %v1041 = vadd.f32 %v655, %v1040
        %v1042 = vpop.f32.mrf.mxu0
        %v1043 = vadd.f32 %v659, %v1042
        %1044 = vmatprep.mubr.bf16.mxu0 %v577
        %1045 = vmatmul.mubr.bf16.gmra.mxu0 %v576
        %v1046 = vpop.f32.mrf.mxu0
        %v1047 = vadd.f32 %v655, %v1046
        %v1048 = vpop.f32.mrf.mxu0
        %v1049 = vadd.f32 %v659, %v1048
        %v1050 = vpop.f32.mrf.mxu0
        %v1051 = vadd.f32 %v655, %v1050
        %v1052 = vpop.f32.mrf.mxu0
        %v1053 = vadd.f32 %v659, %v1052
        %1054 = vmatprep.mubr.bf16.mxu0 %v579
        %1055 = vmatmul.mubr.bf16.gmra.mxu0 %v578
        %v1056 = vpop.f32.mrf.mxu0
        %v1057 = vadd.f32 %v655, %v1056
        %v1058 = vpop.f32.mrf.mxu0
        %v1059 = vadd.f32 %v659, %v1058
        %v1060 = vpop.f32.mrf.mxu0
        %v1061 = vadd.f32 %v655, %v1060
        %v1062 = vpop.f32.mrf.mxu0
        %v1063 = vadd.f32 %v659, %v1062
        %1064 = vmatprep.mubr.bf16.mxu0 %v581
        %1065 = vmatmul.mubr.bf16.gmra.mxu0 %v580
        %v1066 = vpop.f32.mrf.mxu0
        %v1067 = vadd.f32 %v655, %v1066
        %v1068 = vpop.f32.mrf.mxu0
        %v1069 = vadd.f32 %v659, %v1068
        %v1070 = vpop.f32.mrf.mxu0
        %v1071 = vadd.f32 %v655, %v1070
        %v1072 = vpop.f32.mrf.mxu0
        %v1073 = vadd.f32 %v659, %v1072
        %1074 = vmatprep.mubr.bf16.mxu0 %v583
        %1075 = vmatmul.mubr.bf16.gmra.mxu0 %v582
        %v1076 = vpop.f32.mrf.mxu0
        %v1077 = vadd.f32 %v655, %v1076
        %v1078 = vpop.f32.mrf.mxu0
        %v1079 = vadd.f32 %v659, %v1078
        %v1080 = vpop.f32.mrf.mxu0
        %v1081 = vadd.f32 %v655, %v1080
        %v1082 = vpop.f32.mrf.mxu0
        %v1083 = vadd.f32 %v659, %v1082
        %1084 = vmatprep.mubr.bf16.mxu0 %v585
        %1085 = vmatmul.mubr.bf16.gmra.mxu0 %v584
        %v1086 = vpop.f32.mrf.mxu0
        %v1087 = vadd.f32 %v655, %v1086
        %v1088 = vpop.f32.mrf.mxu0
        %v1089 = vadd.f32 %v659, %v1088
        %v1090 = vpop.f32.mrf.mxu0
        %v1091 = vpop.f32.mrf.mxu0
        %1092 = vdwg.mxu0
        %1093 = vmatprep.subr.bf16.mxu0 %v895
        %1094 = vmatpush1.bf16.msra.mxu0 %v894
        %1095 = vmatprep.subr.bf16.mxu0 %v891
        %1096 = vmatpush1.bf16.msra.mxu0 %v890
        %1097 = vmatprep.subr.bf16.mxu0 %v887
        %1098 = vmatpush1.bf16.msra.mxu0 %v886
        %1099 = vmatprep.subr.bf16.mxu0 %v883
        %1100 = vmatpush1.bf16.msra.mxu0 %v882
        %1101 = vmatprep.subr.bf16.mxu0 %v879
        %1102 = vmatpush1.bf16.msra.mxu0 %v878
        %1103 = vmatprep.subr.bf16.mxu0 %v875
        %1104 = vmatpush1.bf16.msra.mxu0 %v874
        %1105 = vmatprep.subr.bf16.mxu0 %v871
        %1106 = vmatpush1.bf16.msra.mxu0 %v870
        %1107 = vmatprep.subr.bf16.mxu0 %v867
        %1108 = vmatpush1.bf16.msra.mxu0 %v866
        %1109 = vmatprep.subr.bf16.mxu0 %v927
        %1110 = vmatpush2.bf16.msra.mxu0 %v926
        %1111 = vmatprep.subr.bf16.mxu0 %v923
        %1112 = vmatpush2.bf16.msra.mxu0 %v922
        %1113 = vmatprep.subr.bf16.mxu0 %v919
        %1114 = vmatpush2.bf16.msra.mxu0 %v918
        %1115 = vmatprep.subr.bf16.mxu0 %v915
        %1116 = vmatpush2.bf16.msra.mxu0 %v914
        %1117 = vmatprep.subr.bf16.mxu0 %v911
        %1118 = vmatpush2.bf16.msra.mxu0 %v910
        %1119 = vmatprep.subr.bf16.mxu0 %v907
        %1120 = vmatpush2.bf16.msra.mxu0 %v906
        %1121 = vmatprep.subr.bf16.mxu0 %v903
        %1122 = vmatpush2.bf16.msra.mxu0 %v902
        %1123 = vmatprep.subr.bf16.mxu0 %v899
        %1124 = vmatpush2.bf16.msra.mxu0 %v898
        %1125 = vmatprep.mubr.bf16.mxu0 %v573
        %1126 = vmatmul.mubr.bf16.gmra.mxu0 %v572
        %v1127 = vpop.f32.mrf.mxu0
        %v1128 = vadd.f32 %v663, %v1127
        %v1129 = vpop.f32.mrf.mxu0
        %v1130 = vadd.f32 %v667, %v1129
        %v1131 = vpop.f32.mrf.mxu0
        %v1132 = vadd.f32 %v663, %v1131
        %v1133 = vpop.f32.mrf.mxu0
        %v1134 = vadd.f32 %v667, %v1133
        %1135 = vmatprep.mubr.bf16.mxu0 %v575
        %1136 = vmatmul.mubr.bf16.gmra.mxu0 %v574
        %v1137 = vpop.f32.mrf.mxu0
        %v1138 = vadd.f32 %v663, %v1137
        %v1139 = vpop.f32.mrf.mxu0
        %v1140 = vadd.f32 %v667, %v1139
        %v1141 = vpop.f32.mrf.mxu0
        %v1142 = vadd.f32 %v663, %v1141
        %v1143 = vpop.f32.mrf.mxu0
        %v1144 = vadd.f32 %v667, %v1143
        %1145 = vmatprep.mubr.bf16.mxu0 %v577
        %1146 = vmatmul.mubr.bf16.gmra.mxu0 %v576
        %v1147 = vpop.f32.mrf.mxu0
        %v1148 = vadd.f32 %v663, %v1147
        %v1149 = vpop.f32.mrf.mxu0
        %v1150 = vadd.f32 %v667, %v1149
        %v1151 = vpop.f32.mrf.mxu0
        %v1152 = vadd.f32 %v663, %v1151
        %v1153 = vpop.f32.mrf.mxu0
        %v1154 = vadd.f32 %v667, %v1153
        %1155 = vmatprep.mubr.bf16.mxu0 %v579
        %1156 = vmatmul.mubr.bf16.gmra.mxu0 %v578
        %v1157 = vpop.f32.mrf.mxu0
        %v1158 = vadd.f32 %v663, %v1157
        %v1159 = vpop.f32.mrf.mxu0
        %v1160 = vadd.f32 %v667, %v1159
        %v1161 = vpop.f32.mrf.mxu0
        %v1162 = vadd.f32 %v663, %v1161
        %v1163 = vpop.f32.mrf.mxu0
        %v1164 = vadd.f32 %v667, %v1163
        %1165 = vmatprep.mubr.bf16.mxu0 %v581
        %1166 = vmatmul.mubr.bf16.gmra.mxu0 %v580
        %v1167 = vpop.f32.mrf.mxu0
        %v1168 = vadd.f32 %v663, %v1167
        %v1169 = vpop.f32.mrf.mxu0
        %v1170 = vadd.f32 %v667, %v1169
        %v1171 = vpop.f32.mrf.mxu0
        %v1172 = vadd.f32 %v663, %v1171
        %v1173 = vpop.f32.mrf.mxu0
        %v1174 = vadd.f32 %v667, %v1173
        %1175 = vmatprep.mubr.bf16.mxu0 %v583
        %1176 = vmatmul.mubr.bf16.gmra.mxu0 %v582
        %v1177 = vpop.f32.mrf.mxu0
        %v1178 = vadd.f32 %v663, %v1177
        %v1179 = vpop.f32.mrf.mxu0
        %v1180 = vadd.f32 %v667, %v1179
        %v1181 = vpop.f32.mrf.mxu0
        %v1182 = vadd.f32 %v663, %v1181
        %v1183 = vpop.f32.mrf.mxu0
        %v1184 = vadd.f32 %v667, %v1183
        %1185 = vmatprep.mubr.bf16.mxu0 %v585
        %1186 = vmatmul.mubr.bf16.gmra.mxu0 %v584
        %v1187 = vpop.f32.mrf.mxu0
        %v1188 = vadd.f32 %v663, %v1187
        %v1189 = vpop.f32.mrf.mxu0
        %v1190 = vadd.f32 %v667, %v1189
        %v1191 = vpop.f32.mrf.mxu0
        %v1192 = vpop.f32.mrf.mxu0
        %1193 = vdwg.mxu0
        %v1194 = vmax.f32 %v1027, 0.0
        %v1195 = vmax.f32 %v1029, 0.0
        %v1196 = vmax.f32 %v1128, 0.0
        %v1197 = vmax.f32 %v1130, 0.0
        %v1198 = vmax.f32 %v1031, 0.0
        %v1199 = vmax.f32 %v1033, 0.0
        %v1200 = vmax.f32 %v1132, 0.0
        %v1201 = vmax.f32 %v1134, 0.0
        %v1202 = vmax.f32 %v1037, 0.0
        %v1203 = vmax.f32 %v1039, 0.0
        %v1204 = vmax.f32 %v1138, 0.0
        %v1205 = vmax.f32 %v1140, 0.0
        %v1206 = vmax.f32 %v1041, 0.0
        %v1207 = vmax.f32 %v1043, 0.0
        %v1208 = vmax.f32 %v1142, 0.0
        %v1209 = vmax.f32 %v1144, 0.0
        %v1210 = vmax.f32 %v1047, 0.0
        %v1211 = vmax.f32 %v1049, 0.0
        %v1212 = vmax.f32 %v1148, 0.0
        %v1213 = vmax.f32 %v1150, 0.0
        %v1214 = vmax.f32 %v1051, 0.0
        %v1215 = vmax.f32 %v1053, 0.0
        %v1216 = vmax.f32 %v1152, 0.0
        %v1217 = vmax.f32 %v1154, 0.0
        %v1218 = vmax.f32 %v1057, 0.0
        %v1219 = vmax.f32 %v1059, 0.0
        %v1220 = vmax.f32 %v1158, 0.0
        %v1221 = vmax.f32 %v1160, 0.0
        %v1222 = vmax.f32 %v1061, 0.0
        %v1223 = vmax.f32 %v1063, 0.0
        %v1224 = vmax.f32 %v1162, 0.0
        %v1225 = vmax.f32 %v1164, 0.0
        %v1226 = vmax.f32 %v1067, 0.0
        %v1227 = vmax.f32 %v1069, 0.0
        %v1228 = vmax.f32 %v1168, 0.0
        %v1229 = vmax.f32 %v1170, 0.0
        %v1230 = vmax.f32 %v1071, 0.0
        %v1231 = vmax.f32 %v1073, 0.0
        %v1232 = vmax.f32 %v1172, 0.0
        %v1233 = vmax.f32 %v1174, 0.0
        %v1234 = vmax.f32 %v1077, 0.0
        %v1235 = vmax.f32 %v1079, 0.0
        %v1236 = vmax.f32 %v1178, 0.0
        %v1237 = vmax.f32 %v1180, 0.0
        %v1238 = vmax.f32 %v1081, 0.0
        %v1239 = vmax.f32 %v1083, 0.0
        %v1240 = vmax.f32 %v1182, 0.0
        %v1241 = vmax.f32 %v1184, 0.0
        %v1242 = vmax.f32 %v1087, 0.0
        %v1243 = vmax.f32 %v1089, 0.0
        %v1244 = vmax.f32 %v1188, 0.0
        %v1245 = vmax.f32 %v1190, 0.0
        %v1246 = vpack.c.bf16 %v1198, %v1194
        %v1247 = vpack.c.bf16 %v1199, %v1195
        %v1248 = vpack.c.bf16 %v1200, %v1196
        %v1249 = vpack.c.bf16 %v1201, %v1197
        %v1250 = vpack.c.bf16 %v1206, %v1202
        %v1251 = vpack.c.bf16 %v1207, %v1203
        %v1252 = vpack.c.bf16 %v1208, %v1204
        %v1253 = vpack.c.bf16 %v1209, %v1205
        %v1254 = vpack.c.bf16 %v1214, %v1210
        %v1255 = vpack.c.bf16 %v1215, %v1211
        %v1256 = vpack.c.bf16 %v1216, %v1212
        %v1257 = vpack.c.bf16 %v1217, %v1213
        %v1258 = vpack.c.bf16 %v1222, %v1218
        %v1259 = vpack.c.bf16 %v1223, %v1219
        %v1260 = vpack.c.bf16 %v1224, %v1220
        %v1261 = vpack.c.bf16 %v1225, %v1221
        %v1262 = vpack.c.bf16 %v1230, %v1226
        %v1263 = vpack.c.bf16 %v1231, %v1227
        %v1264 = vpack.c.bf16 %v1232, %v1228
        %v1265 = vpack.c.bf16 %v1233, %v1229
        %v1266 = vpack.c.bf16 %v1238, %v1234
        %v1267 = vpack.c.bf16 %v1239, %v1235
        %v1268 = vpack.c.bf16 %v1240, %v1236
        %v1269 = vpack.c.bf16 %v1241, %v1237
        %v1270 = vpack.c.bf16 %v1242, %v1242
        %v1271 = vpack.c.bf16 %v1243, %v1243
        %v1272 = vpack.c.bf16 %v1244, %v1244
        %v1273 = vpack.c.bf16 %v1245, %v1245
        %v1274 = vld [vmem:[#allocation5] sm:$0xff]
        %v1275 = vld [vmem:[#allocation5 + $0x8] sm:$0xff]
        %v1276 = vld [vmem:[#allocation5 + $0x10] sm:$0xff]
        %v1277 = vld [vmem:[#allocation5 + $0x18] sm:$0xff]
        %v1278 = vld [vmem:[#allocation5 + $0x20] sm:$0xff]
        %v1279 = vld [vmem:[#allocation5 + $0x28] sm:$0xff]
        %v1280 = vld [vmem:[#allocation5 + $0x30] sm:$0xff]
        %v1281 = vld [vmem:[#allocation5 + $0x38] sm:$0xff]
        %v1282 = vld [vmem:[#allocation5 + $0x40] sm:$0xff]
        %v1283 = vld [vmem:[#allocation5 + $0x48] sm:$0xff]
        %v1284 = vld [vmem:[#allocation5 + $0x50] sm:$0xff]
        %v1285 = vld [vmem:[#allocation5 + $0x58] sm:$0xff]
        %v1286 = vld [vmem:[#allocation5 + $0x60] sm:$0xff]
        %v1287 = vld [vmem:[#allocation5 + $0x68] sm:$0xff]
        %v1288 = vld [vmem:[#allocation5 + $0x70] sm:$0xff]
        %v1289 = vld [vmem:[#allocation5 + $0x78] sm:$0xff]
        %v1290 = vld [vmem:[#allocation5 + $0x80] sm:$0xff]
        %v1291 = vld [vmem:[#allocation5 + $0x88] sm:$0xff]
        %v1292 = vld [vmem:[#allocation5 + $0x90] sm:$0xff]
        %v1293 = vld [vmem:[#allocation5 + $0x98] sm:$0xff]
        %v1294 = vld [vmem:[#allocation5 + $0xa0] sm:$0xff]
        %v1295 = vld [vmem:[#allocation5 + $0xa8] sm:$0xff]
        %v1296 = vld [vmem:[#allocation5 + $0xb0] sm:$0xff]
        %v1297 = vld [vmem:[#allocation5 + $0xb8] sm:$0xff]
        %v1298 = vld [vmem:[#allocation5 + $0xc0] sm:$0xff]
        %v1299 = vld [vmem:[#allocation5 + $0xc8] sm:$0xff]
        %v1300 = vld [vmem:[#allocation5 + $0xd0] sm:$0xff]
        %v1301 = vld [vmem:[#allocation5 + $0xd8] sm:$0xff]
        %v1302 = vld [vmem:[#allocation5 + $0xe0] sm:$0xff]
        %v1303 = vld [vmem:[#allocation5 + $0xe8] sm:$0xff]
        %v1304 = vld [vmem:[#allocation5 + $0xf0] sm:$0xff]
        %v1305 = vld [vmem:[#allocation5 + $0xf8] sm:$0xff]
        %v1306 = vld [vmem:[#allocation5 + $0x100] sm:$0xff]
        %v1307 = vld [vmem:[#allocation5 + $0x108] sm:$0xff]
        %v1308 = vld [vmem:[#allocation5 + $0x110] sm:$0xff]
        %v1309 = vld [vmem:[#allocation5 + $0x118] sm:$0xff]
        %v1310 = vld [vmem:[#allocation5 + $0x120] sm:$0xff]
        %v1311 = vld [vmem:[#allocation5 + $0x128] sm:$0xff]
        %v1312 = vld [vmem:[#allocation5 + $0x130] sm:$0xff]
        %v1313 = vld [vmem:[#allocation5 + $0x138] sm:$0xff]
        %v1314 = vld [vmem:[#allocation5 + $0x140] sm:$0xff]
        %v1315 = vld [vmem:[#allocation5 + $0x148] sm:$0xff]
        %v1316 = vld [vmem:[#allocation5 + $0x150] sm:$0xff]
        %v1317 = vld [vmem:[#allocation5 + $0x158] sm:$0xff]
        %v1318 = vld [vmem:[#allocation5 + $0x160] sm:$0xff]
        %v1319 = vld [vmem:[#allocation5 + $0x168] sm:$0xff]
        %v1320 = vld [vmem:[#allocation5 + $0x170] sm:$0xff]
        %v1321 = vld [vmem:[#allocation5 + $0x178] sm:$0xff]
        %v1322 = vld [vmem:[#allocation5 + $0x180] sm:$0xff]
        %v1323 = vld [vmem:[#allocation5 + $0x188] sm:$0xff]
        %v1324 = vld [vmem:[#allocation5 + $0x190] sm:$0xff]
        %v1325 = vld [vmem:[#allocation5 + $0x198] sm:$0xff]
        %v1326 = vld [vmem:[#allocation5 + $0x1a0] sm:$0xff]
        %v1327 = vld [vmem:[#allocation5 + $0x1a8] sm:$0xff]
        %v1328 = vld [vmem:[#allocation5 + $0x1b0] sm:$0xff]
        %v1329 = vld [vmem:[#allocation5 + $0x1b8] sm:$0xff]
        %v1330 = vld [vmem:[#allocation5 + $0x1c0] sm:$0xff]
        %v1331 = vld [vmem:[#allocation5 + $0x1c8] sm:$0xff]
        %v1332 = vld [vmem:[#allocation5 + $0x1d0] sm:$0xff]
        %v1333 = vld [vmem:[#allocation5 + $0x1d8] sm:$0xff]
        %v1334 = vld [vmem:[#allocation5 + $0x1e0] sm:$0xff]
        %v1335 = vld [vmem:[#allocation5 + $0x1e8] sm:$0xff]
        %v1336 = vld [vmem:[#allocation5 + $0x1f0] sm:$0xff]
        %v1337 = vld [vmem:[#allocation5 + $0x1f8] sm:$0xff]
        %v1338 = vld [vmem:[%s6] sm:$0x3]
        %v1340 = vlaneseq
        %v1341 = vshrl.u32 %v1340, 7
        %v1342 = vsub.s32 0, %v1341
        %v1343 = vrot.slane %v1338, %v1342
        %v1344 = vlaneseq
        %v1345 = vshrl.u32 %v1344, 7
        %v1346 = vsub.s32 1, %v1345
        %v1347 = vrot.slane %v1338, %v1346
        %v1414 = vunpack.c.l.b16 %v1274
        %v1415 = vunpack.c.h.b16 %v1274
        %v1416 = vunpack.c.l.b16 %v1275
        %v1417 = vunpack.c.h.b16 %v1275
        %v1418 = vunpack.c.l.b16 %v1276
        %v1419 = vunpack.c.h.b16 %v1276
        %v1420 = vunpack.c.l.b16 %v1277
        %v1421 = vunpack.c.h.b16 %v1277
        %v1422 = vunpack.c.l.b16 %v1278
        %v1423 = vunpack.c.h.b16 %v1278
        %v1424 = vunpack.c.l.b16 %v1279
        %v1425 = vunpack.c.h.b16 %v1279
        %v1426 = vunpack.c.l.b16 %v1280
        %v1427 = vunpack.c.h.b16 %v1280
        %v1428 = vunpack.c.l.b16 %v1281
        %v1429 = vunpack.c.h.b16 %v1281
        %v1430 = vunpack.c.l.b16 %v1282
        %v1431 = vunpack.c.h.b16 %v1282
        %v1432 = vunpack.c.l.b16 %v1283
        %v1433 = vunpack.c.h.b16 %v1283
        %v1434 = vunpack.c.l.b16 %v1284
        %v1435 = vunpack.c.h.b16 %v1284
        %v1436 = vunpack.c.l.b16 %v1285
        %v1437 = vunpack.c.h.b16 %v1285
        %v1438 = vunpack.c.l.b16 %v1286
        %v1439 = vunpack.c.h.b16 %v1286
        %v1440 = vunpack.c.l.b16 %v1287
        %v1441 = vunpack.c.h.b16 %v1287
        %v1442 = vunpack.c.l.b16 %v1288
        %v1443 = vunpack.c.h.b16 %v1288
        %v1444 = vunpack.c.l.b16 %v1289
        %v1445 = vunpack.c.h.b16 %v1289
        %v1446 = vunpack.c.l.b16 %v1290
        %v1447 = vunpack.c.h.b16 %v1290
        %v1448 = vunpack.c.l.b16 %v1291
        %v1449 = vunpack.c.h.b16 %v1291
        %v1450 = vunpack.c.l.b16 %v1292
        %v1451 = vunpack.c.h.b16 %v1292
        %v1452 = vunpack.c.l.b16 %v1293
        %v1453 = vunpack.c.h.b16 %v1293
        %v1454 = vunpack.c.l.b16 %v1294
        %v1455 = vunpack.c.h.b16 %v1294
        %v1456 = vunpack.c.l.b16 %v1295
        %v1457 = vunpack.c.h.b16 %v1295
        %v1458 = vunpack.c.l.b16 %v1296
        %v1459 = vunpack.c.h.b16 %v1296
        %v1460 = vunpack.c.l.b16 %v1297
        %v1461 = vunpack.c.h.b16 %v1297
        %v1462 = vunpack.c.l.b16 %v1298
        %v1463 = vunpack.c.h.b16 %v1298
        %v1464 = vunpack.c.l.b16 %v1299
        %v1465 = vunpack.c.h.b16 %v1299
        %v1466 = vunpack.c.l.b16 %v1300
        %v1467 = vunpack.c.h.b16 %v1300
        %v1468 = vunpack.c.l.b16 %v1301
        %v1469 = vunpack.c.h.b16 %v1301
        %v1470 = vunpack.c.l.b16 %v1302
        %v1471 = vunpack.c.h.b16 %v1302
        %v1472 = vunpack.c.l.b16 %v1303
        %v1473 = vunpack.c.h.b16 %v1303
        %v1474 = vunpack.c.l.b16 %v1304
        %v1475 = vunpack.c.h.b16 %v1304
        %v1476 = vunpack.c.l.b16 %v1305
        %v1477 = vunpack.c.h.b16 %v1305
        %v1478 = vunpack.c.l.b16 %v1306
        %v1479 = vunpack.c.h.b16 %v1306
        %v1480 = vunpack.c.l.b16 %v1307
        %v1481 = vunpack.c.h.b16 %v1307
        %v1482 = vunpack.c.l.b16 %v1308
        %v1483 = vunpack.c.h.b16 %v1308
        %v1484 = vunpack.c.l.b16 %v1309
        %v1485 = vunpack.c.h.b16 %v1309
        %v1486 = vunpack.c.l.b16 %v1310
        %v1487 = vunpack.c.h.b16 %v1310
        %v1488 = vunpack.c.l.b16 %v1311
        %v1489 = vunpack.c.h.b16 %v1311
        %v1490 = vunpack.c.l.b16 %v1312
        %v1491 = vunpack.c.h.b16 %v1312
        %v1492 = vunpack.c.l.b16 %v1313
        %v1493 = vunpack.c.h.b16 %v1313
        %v1494 = vunpack.c.l.b16 %v1314
        %v1495 = vunpack.c.h.b16 %v1314
        %v1496 = vunpack.c.l.b16 %v1315
        %v1497 = vunpack.c.h.b16 %v1315
        %v1498 = vunpack.c.l.b16 %v1316
        %v1499 = vunpack.c.h.b16 %v1316
        %v1500 = vunpack.c.l.b16 %v1317
        %v1501 = vunpack.c.h.b16 %v1317
        %v1502 = vunpack.c.l.b16 %v1318
        %v1503 = vunpack.c.h.b16 %v1318
        %v1504 = vunpack.c.l.b16 %v1319
        %v1505 = vunpack.c.h.b16 %v1319
        %v1506 = vunpack.c.l.b16 %v1320
        %v1507 = vunpack.c.h.b16 %v1320
        %v1508 = vunpack.c.l.b16 %v1321
        %v1509 = vunpack.c.h.b16 %v1321
        %v1510 = vunpack.c.l.b16 %v1322
        %v1511 = vunpack.c.h.b16 %v1322
        %v1512 = vunpack.c.l.b16 %v1323
        %v1513 = vunpack.c.h.b16 %v1323
        %v1514 = vunpack.c.l.b16 %v1324
        %v1515 = vunpack.c.h.b16 %v1324
        %v1516 = vunpack.c.l.b16 %v1325
        %v1517 = vunpack.c.h.b16 %v1325
        %v1518 = vunpack.c.l.b16 %v1326
        %v1519 = vunpack.c.h.b16 %v1326
        %v1520 = vunpack.c.l.b16 %v1327
        %v1521 = vunpack.c.h.b16 %v1327
        %v1522 = vunpack.c.l.b16 %v1328
        %v1523 = vunpack.c.h.b16 %v1328
        %v1524 = vunpack.c.l.b16 %v1329
        %v1525 = vunpack.c.h.b16 %v1329
        %v1526 = vunpack.c.l.b16 %v1330
        %v1527 = vunpack.c.h.b16 %v1330
        %v1528 = vunpack.c.l.b16 %v1331
        %v1529 = vunpack.c.h.b16 %v1331
        %v1530 = vunpack.c.l.b16 %v1332
        %v1531 = vunpack.c.h.b16 %v1332
        %v1532 = vunpack.c.l.b16 %v1333
        %v1533 = vunpack.c.h.b16 %v1333
        %v1534 = vunpack.c.l.b16 %v1334
        %v1535 = vunpack.c.h.b16 %v1334
        %v1536 = vunpack.c.l.b16 %v1335
        %v1537 = vunpack.c.h.b16 %v1335
        %v1538 = vunpack.c.l.b16 %v1336
        %v1539 = vunpack.c.h.b16 %v1336
        %v1540 = vunpack.c.l.b16 %v1337
        %v1541 = vunpack.c.h.b16 %v1337
        %v1542 = vpack.c.b16 %v1416, %v1414
        %v1543 = vpack.c.b16 %v1417, %v1415
        %v1544 = vpack.c.b16 %v1420, %v1418
        %v1545 = vpack.c.b16 %v1421, %v1419
        %v1546 = vpack.c.b16 %v1424, %v1422
        %v1547 = vpack.c.b16 %v1425, %v1423
        %v1548 = vpack.c.b16 %v1428, %v1426
        %v1549 = vpack.c.b16 %v1429, %v1427
        %v1550 = vpack.c.b16 %v1432, %v1430
        %v1551 = vpack.c.b16 %v1433, %v1431
        %v1552 = vpack.c.b16 %v1436, %v1434
        %v1553 = vpack.c.b16 %v1437, %v1435
        %v1554 = vpack.c.b16 %v1440, %v1438
        %v1555 = vpack.c.b16 %v1441, %v1439
        %v1556 = vpack.c.b16 %v1444, %v1442
        %v1557 = vpack.c.b16 %v1445, %v1443
        %v1558 = vpack.c.b16 %v1448, %v1446
        %v1559 = vpack.c.b16 %v1449, %v1447
        %v1560 = vpack.c.b16 %v1452, %v1450
        %v1561 = vpack.c.b16 %v1453, %v1451
        %v1562 = vpack.c.b16 %v1456, %v1454
        %v1563 = vpack.c.b16 %v1457, %v1455
        %v1564 = vpack.c.b16 %v1460, %v1458
        %v1565 = vpack.c.b16 %v1461, %v1459
        %v1566 = vpack.c.b16 %v1464, %v1462
        %v1567 = vpack.c.b16 %v1465, %v1463
        %v1568 = vpack.c.b16 %v1468, %v1466
        %v1569 = vpack.c.b16 %v1469, %v1467
        %v1570 = vpack.c.b16 %v1472, %v1470
        %v1571 = vpack.c.b16 %v1473, %v1471
        %v1572 = vpack.c.b16 %v1476, %v1474
        %v1573 = vpack.c.b16 %v1477, %v1475
        %v1574 = vpack.c.b16 %v1480, %v1478
        %v1575 = vpack.c.b16 %v1481, %v1479
        %v1576 = vpack.c.b16 %v1484, %v1482
        %v1577 = vpack.c.b16 %v1485, %v1483
        %v1578 = vpack.c.b16 %v1488, %v1486
        %v1579 = vpack.c.b16 %v1489, %v1487
        %v1580 = vpack.c.b16 %v1492, %v1490
        %v1581 = vpack.c.b16 %v1493, %v1491
        %v1582 = vpack.c.b16 %v1496, %v1494
        %v1583 = vpack.c.b16 %v1497, %v1495
        %v1584 = vpack.c.b16 %v1500, %v1498
        %v1585 = vpack.c.b16 %v1501, %v1499
        %v1586 = vpack.c.b16 %v1504, %v1502
        %v1587 = vpack.c.b16 %v1505, %v1503
        %v1588 = vpack.c.b16 %v1508, %v1506
        %v1589 = vpack.c.b16 %v1509, %v1507
        %v1590 = vpack.c.b16 %v1512, %v1510
        %v1591 = vpack.c.b16 %v1513, %v1511
        %v1592 = vpack.c.b16 %v1516, %v1514
        %v1593 = vpack.c.b16 %v1517, %v1515
        %v1594 = vpack.c.b16 %v1520, %v1518
        %v1595 = vpack.c.b16 %v1521, %v1519
        %v1596 = vpack.c.b16 %v1524, %v1522
        %v1597 = vpack.c.b16 %v1525, %v1523
        %v1598 = vpack.c.b16 %v1528, %v1526
        %v1599 = vpack.c.b16 %v1529, %v1527
        %v1600 = vpack.c.b16 %v1532, %v1530
        %v1601 = vpack.c.b16 %v1533, %v1531
        %v1602 = vpack.c.b16 %v1536, %v1534
        %v1603 = vpack.c.b16 %v1537, %v1535
        %v1604 = vpack.c.b16 %v1540, %v1538
        %v1605 = vpack.c.b16 %v1541, %v1539
        %1670 = vmatprep.subr.bf16.mxu0 %v1557
        %1671 = vmatpush1.bf16.msra.mxu0 %v1556
        %1672 = vmatprep.subr.bf16.mxu0 %v1555
        %1673 = vmatpush1.bf16.msra.mxu0 %v1554
        %1674 = vmatprep.subr.bf16.mxu0 %v1553
        %1675 = vmatpush1.bf16.msra.mxu0 %v1552
        %1676 = vmatprep.subr.bf16.mxu0 %v1551
        %1677 = vmatpush1.bf16.msra.mxu0 %v1550
        %1678 = vmatprep.subr.bf16.mxu0 %v1549
        %1679 = vmatpush1.bf16.msra.mxu0 %v1548
        %1680 = vmatprep.subr.bf16.mxu0 %v1547
        %1681 = vmatpush1.bf16.msra.mxu0 %v1546
        %1682 = vmatprep.subr.bf16.mxu0 %v1545
        %1683 = vmatpush1.bf16.msra.mxu0 %v1544
        %1684 = vmatprep.subr.bf16.mxu0 %v1543
        %1685 = vmatpush1.bf16.msra.mxu0 %v1542
        %1686 = vmatprep.subr.bf16.mxu0 %v1573
        %1687 = vmatpush2.bf16.msra.mxu0 %v1572
        %1688 = vmatprep.subr.bf16.mxu0 %v1571
        %1689 = vmatpush2.bf16.msra.mxu0 %v1570
        %1690 = vmatprep.subr.bf16.mxu0 %v1569
        %1691 = vmatpush2.bf16.msra.mxu0 %v1568
        %1692 = vmatprep.subr.bf16.mxu0 %v1567
        %1693 = vmatpush2.bf16.msra.mxu0 %v1566
        %1694 = vmatprep.subr.bf16.mxu0 %v1565
        %1695 = vmatpush2.bf16.msra.mxu0 %v1564
        %1696 = vmatprep.subr.bf16.mxu0 %v1563
        %1697 = vmatpush2.bf16.msra.mxu0 %v1562
        %1698 = vmatprep.subr.bf16.mxu0 %v1561
        %1699 = vmatpush2.bf16.msra.mxu0 %v1560
        %1700 = vmatprep.subr.bf16.mxu0 %v1559
        %1701 = vmatpush2.bf16.msra.mxu0 %v1558
        %1702 = vmatprep.mubr.bf16.mxu0 %v1247
        %1703 = vmatmul.mubr.bf16.gmra.mxu0 %v1246
        %v1704 = vpop.f32.mrf.mxu0
        %v1705 = vadd.f32 %v1343, %v1704
        %v1706 = vpop.f32.mrf.mxu0
        %v1707 = vadd.f32 %v1347, %v1706
        %v1708 = vpop.f32.mrf.mxu0
        %v1709 = vadd.f32 %v1343, %v1708
        %v1710 = vpop.f32.mrf.mxu0
        %v1711 = vadd.f32 %v1347, %v1710
        %1712 = vmatprep.mubr.bf16.mxu0 %v1251
        %1713 = vmatmul.mubr.bf16.gmra.mxu0 %v1250
        %v1714 = vpop.f32.mrf.mxu0
        %v1715 = vadd.f32 %v1343, %v1714
        %v1716 = vpop.f32.mrf.mxu0
        %v1717 = vadd.f32 %v1347, %v1716
        %v1718 = vpop.f32.mrf.mxu0
        %v1719 = vadd.f32 %v1343, %v1718
        %v1720 = vpop.f32.mrf.mxu0
        %v1721 = vadd.f32 %v1347, %v1720
        %1722 = vmatprep.mubr.bf16.mxu0 %v1255
        %1723 = vmatmul.mubr.bf16.gmra.mxu0 %v1254
        %v1724 = vpop.f32.mrf.mxu0
        %v1725 = vadd.f32 %v1343, %v1724
        %v1726 = vpop.f32.mrf.mxu0
        %v1727 = vadd.f32 %v1347, %v1726
        %v1728 = vpop.f32.mrf.mxu0
        %v1729 = vadd.f32 %v1343, %v1728
        %v1730 = vpop.f32.mrf.mxu0
        %v1731 = vadd.f32 %v1347, %v1730
        %1732 = vmatprep.mubr.bf16.mxu0 %v1259
        %1733 = vmatmul.mubr.bf16.gmra.mxu0 %v1258
        %v1734 = vpop.f32.mrf.mxu0
        %v1735 = vadd.f32 %v1343, %v1734
        %v1736 = vpop.f32.mrf.mxu0
        %v1737 = vadd.f32 %v1347, %v1736
        %v1738 = vpop.f32.mrf.mxu0
        %v1739 = vadd.f32 %v1343, %v1738
        %v1740 = vpop.f32.mrf.mxu0
        %v1741 = vadd.f32 %v1347, %v1740
        %1742 = vmatprep.mubr.bf16.mxu0 %v1263
        %1743 = vmatmul.mubr.bf16.gmra.mxu0 %v1262
        %v1744 = vpop.f32.mrf.mxu0
        %v1745 = vadd.f32 %v1343, %v1744
        %v1746 = vpop.f32.mrf.mxu0
        %v1747 = vadd.f32 %v1347, %v1746
        %v1748 = vpop.f32.mrf.mxu0
        %v1749 = vadd.f32 %v1343, %v1748
        %v1750 = vpop.f32.mrf.mxu0
        %v1751 = vadd.f32 %v1347, %v1750
        %1752 = vmatprep.mubr.bf16.mxu0 %v1267
        %1753 = vmatmul.mubr.bf16.gmra.mxu0 %v1266
        %v1754 = vpop.f32.mrf.mxu0
        %v1755 = vadd.f32 %v1343, %v1754
        %v1756 = vpop.f32.mrf.mxu0
        %v1757 = vadd.f32 %v1347, %v1756
        %v1758 = vpop.f32.mrf.mxu0
        %v1759 = vadd.f32 %v1343, %v1758
        %v1760 = vpop.f32.mrf.mxu0
        %v1761 = vadd.f32 %v1347, %v1760
        %1762 = vmatprep.mubr.bf16.mxu0 %v1271
        %1763 = vmatmul.mubr.bf16.gmra.mxu0 %v1270
        %v1764 = vpop.f32.mrf.mxu0
        %v1765 = vadd.f32 %v1343, %v1764
        %v1766 = vpop.f32.mrf.mxu0
        %v1767 = vadd.f32 %v1347, %v1766
        %v1768 = vpop.f32.mrf.mxu0
        %v1769 = vpop.f32.mrf.mxu0
        %1770 = vdwg.mxu0
        %1771 = vmatprep.subr.bf16.mxu0 %v1589
        %1772 = vmatpush1.bf16.msra.mxu0 %v1588
        %1773 = vmatprep.subr.bf16.mxu0 %v1587
        %1774 = vmatpush1.bf16.msra.mxu0 %v1586
        %1775 = vmatprep.subr.bf16.mxu0 %v1585
        %1776 = vmatpush1.bf16.msra.mxu0 %v1584
        %1777 = vmatprep.subr.bf16.mxu0 %v1583
        %1778 = vmatpush1.bf16.msra.mxu0 %v1582
        %1779 = vmatprep.subr.bf16.mxu0 %v1581
        %1780 = vmatpush1.bf16.msra.mxu0 %v1580
        %1781 = vmatprep.subr.bf16.mxu0 %v1579
        %1782 = vmatpush1.bf16.msra.mxu0 %v1578
        %1783 = vmatprep.subr.bf16.mxu0 %v1577
        %1784 = vmatpush1.bf16.msra.mxu0 %v1576
        %1785 = vmatprep.subr.bf16.mxu0 %v1575
        %1786 = vmatpush1.bf16.msra.mxu0 %v1574
        %1787 = vmatprep.subr.bf16.mxu0 %v1605
        %1788 = vmatpush2.bf16.msra.mxu0 %v1604
        %1789 = vmatprep.subr.bf16.mxu0 %v1603
        %1790 = vmatpush2.bf16.msra.mxu0 %v1602
        %1791 = vmatprep.subr.bf16.mxu0 %v1601
        %1792 = vmatpush2.bf16.msra.mxu0 %v1600
        %1793 = vmatprep.subr.bf16.mxu0 %v1599
        %1794 = vmatpush2.bf16.msra.mxu0 %v1598
        %1795 = vmatprep.subr.bf16.mxu0 %v1597
        %1796 = vmatpush2.bf16.msra.mxu0 %v1596
        %1797 = vmatprep.subr.bf16.mxu0 %v1595
        %1798 = vmatpush2.bf16.msra.mxu0 %v1594
        %1799 = vmatprep.subr.bf16.mxu0 %v1593
        %1800 = vmatpush2.bf16.msra.mxu0 %v1592
        %1801 = vmatprep.subr.bf16.mxu0 %v1591
        %1802 = vmatpush2.bf16.msra.mxu0 %v1590
        %1803 = vmatprep.mubr.bf16.mxu0 %v1249
        %1804 = vmatmul.mubr.bf16.gmra.mxu0 %v1248
        %v1805 = vpop.f32.mrf.mxu0
        %v1806 = vadd.f32 %v1705, %v1805
        %v1807 = vpop.f32.mrf.mxu0
        %v1808 = vadd.f32 %v1707, %v1807
        %v1809 = vpop.f32.mrf.mxu0
        %v1810 = vadd.f32 %v1709, %v1809
        %v1811 = vpop.f32.mrf.mxu0
        %v1812 = vadd.f32 %v1711, %v1811
        %1813 = vmatprep.mubr.bf16.mxu0 %v1253
        %1814 = vmatmul.mubr.bf16.gmra.mxu0 %v1252
        %v1815 = vpop.f32.mrf.mxu0
        %v1816 = vadd.f32 %v1715, %v1815
        %v1817 = vpop.f32.mrf.mxu0
        %v1818 = vadd.f32 %v1717, %v1817
        %v1819 = vpop.f32.mrf.mxu0
        %v1820 = vadd.f32 %v1719, %v1819
        %v1821 = vpop.f32.mrf.mxu0
        %v1822 = vadd.f32 %v1721, %v1821
        %1823 = vmatprep.mubr.bf16.mxu0 %v1257
        %1824 = vmatmul.mubr.bf16.gmra.mxu0 %v1256
        %v1825 = vpop.f32.mrf.mxu0
        %v1826 = vadd.f32 %v1725, %v1825
        %v1827 = vpop.f32.mrf.mxu0
        %v1828 = vadd.f32 %v1727, %v1827
        %v1829 = vpop.f32.mrf.mxu0
        %v1830 = vadd.f32 %v1729, %v1829
        %v1831 = vpop.f32.mrf.mxu0
        %v1832 = vadd.f32 %v1731, %v1831
        %1833 = vmatprep.mubr.bf16.mxu0 %v1261
        %1834 = vmatmul.mubr.bf16.gmra.mxu0 %v1260
        %v1835 = vpop.f32.mrf.mxu0
        %v1836 = vadd.f32 %v1735, %v1835
        %v1837 = vpop.f32.mrf.mxu0
        %v1838 = vadd.f32 %v1737, %v1837
        %v1839 = vpop.f32.mrf.mxu0
        %v1840 = vadd.f32 %v1739, %v1839
        %v1841 = vpop.f32.mrf.mxu0
        %v1842 = vadd.f32 %v1741, %v1841
        %1843 = vmatprep.mubr.bf16.mxu0 %v1265
        %1844 = vmatmul.mubr.bf16.gmra.mxu0 %v1264
        %v1845 = vpop.f32.mrf.mxu0
        %v1846 = vadd.f32 %v1745, %v1845
        %v1847 = vpop.f32.mrf.mxu0
        %v1848 = vadd.f32 %v1747, %v1847
        %v1849 = vpop.f32.mrf.mxu0
        %v1850 = vadd.f32 %v1749, %v1849
        %v1851 = vpop.f32.mrf.mxu0
        %v1852 = vadd.f32 %v1751, %v1851
        %1853 = vmatprep.mubr.bf16.mxu0 %v1269
        %1854 = vmatmul.mubr.bf16.gmra.mxu0 %v1268
        %v1855 = vpop.f32.mrf.mxu0
        %v1856 = vadd.f32 %v1755, %v1855
        %v1857 = vpop.f32.mrf.mxu0
        %v1858 = vadd.f32 %v1757, %v1857
        %v1859 = vpop.f32.mrf.mxu0
        %v1860 = vadd.f32 %v1759, %v1859
        %v1861 = vpop.f32.mrf.mxu0
        %v1862 = vadd.f32 %v1761, %v1861
        %1863 = vmatprep.mubr.bf16.mxu0 %v1273
        %1864 = vmatmul.mubr.bf16.gmra.mxu0 %v1272
        %v1865 = vpop.f32.mrf.mxu0
        %v1866 = vadd.f32 %v1765, %v1865
        %v1867 = vpop.f32.mrf.mxu0
        %v1868 = vadd.f32 %v1767, %v1867
        %v1869 = vpop.f32.mrf.mxu0
        %v1870 = vpop.f32.mrf.mxu0
        %1871 = vdwg.mxu0
        %v1872 = vmax.f32 %v1806, 0.0
        %v1873 = vmax.f32 %v1808, 0.0
        %v1874 = vmax.f32 %v1810, 0.0
        %v1875 = vmax.f32 %v1812, 0.0
        %v1876 = vmax.f32 %v1816, 0.0
        %v1877 = vmax.f32 %v1818, 0.0
        %v1878 = vmax.f32 %v1820, 0.0
        %v1879 = vmax.f32 %v1822, 0.0
        %v1880 = vmax.f32 %v1826, 0.0
        %v1881 = vmax.f32 %v1828, 0.0
        %v1882 = vmax.f32 %v1830, 0.0
        %v1883 = vmax.f32 %v1832, 0.0
        %v1884 = vmax.f32 %v1836, 0.0
        %v1885 = vmax.f32 %v1838, 0.0
        %v1886 = vmax.f32 %v1840, 0.0
        %v1887 = vmax.f32 %v1842, 0.0
        %v1888 = vmax.f32 %v1846, 0.0
        %v1889 = vmax.f32 %v1848, 0.0
        %v1890 = vmax.f32 %v1850, 0.0
        %v1891 = vmax.f32 %v1852, 0.0
        %v1892 = vmax.f32 %v1856, 0.0
        %v1893 = vmax.f32 %v1858, 0.0
        %v1894 = vmax.f32 %v1860, 0.0
        %v1895 = vmax.f32 %v1862, 0.0
        %v1896 = vmax.f32 %v1866, 0.0
        %v1897 = vmax.f32 %v1868, 0.0
        %v1898 = vpack.c.bf16 %v1874, %v1872
        %v1899 = vpack.c.bf16 %v1875, %v1873
        %v1900 = vpack.c.bf16 %v1878, %v1876
        %v1901 = vpack.c.bf16 %v1879, %v1877
        %v1902 = vpack.c.bf16 %v1882, %v1880
        %v1903 = vpack.c.bf16 %v1883, %v1881
        %v1904 = vpack.c.bf16 %v1886, %v1884
        %v1905 = vpack.c.bf16 %v1887, %v1885
        %v1906 = vpack.c.bf16 %v1890, %v1888
        %v1907 = vpack.c.bf16 %v1891, %v1889
        %v1908 = vpack.c.bf16 %v1894, %v1892
        %v1909 = vpack.c.bf16 %v1895, %v1893
        %v1910 = vpack.c.bf16 %v1896, %v1896
        %v1911 = vpack.c.bf16 %v1897, %v1897
        %v1912 = vld [vmem:[#allocation7] sm:$0xff]
        %v1913 = vld [vmem:[#allocation7 + $0x8] sm:$0xff]
        %v1914 = vld [vmem:[#allocation7 + $0x10] sm:$0xff]
        %v1915 = vld [vmem:[#allocation7 + $0x18] sm:$0xff]
        %v1916 = vld [vmem:[#allocation7 + $0x20] sm:$0xff]
        %v1917 = vld [vmem:[#allocation7 + $0x28] sm:$0xff]
        %v1918 = vld [vmem:[#allocation7 + $0x30] sm:$0xff]
        %v1919 = vld [vmem:[#allocation7 + $0x38] sm:$0xff]
        %v1920 = vld [vmem:[#allocation7 + $0x40] sm:$0xff]
        %v1921 = vld [vmem:[#allocation7 + $0x48] sm:$0xff]
        %v1922 = vld [vmem:[#allocation7 + $0x50] sm:$0xff]
        %v1923 = vld [vmem:[#allocation7 + $0x58] sm:$0xff]
        %v1924 = vld [vmem:[#allocation7 + $0x60] sm:$0xff]
        %v1925 = vld [vmem:[#allocation7 + $0x68] sm:$0xff]
        %v1926 = vld [vmem:[#allocation7 + $0x70] sm:$0xff]
        %v1927 = vld [vmem:[#allocation7 + $0x78] sm:$0xff]
        %v1928 = vld [vmem:[#allocation7 + $0x80] sm:$0xff]
        %v1929 = vld [vmem:[#allocation7 + $0x88] sm:$0xff]
        %v1930 = vld [vmem:[#allocation7 + $0x90] sm:$0xff]
        %v1931 = vld [vmem:[#allocation7 + $0x98] sm:$0xff]
        %v1932 = vld [vmem:[#allocation7 + $0xa0] sm:$0xff]
        %v1933 = vld [vmem:[#allocation7 + $0xa8] sm:$0xff]
        %v1934 = vld [vmem:[#allocation7 + $0xb0] sm:$0xff]
        %v1935 = vld [vmem:[#allocation7 + $0xb8] sm:$0xff]
        %v1936 = vld [vmem:[#allocation7 + $0xc0] sm:$0xff]
        %v1937 = vld [vmem:[#allocation7 + $0xc8] sm:$0xff]
        %v1938 = vld [vmem:[#allocation7 + $0xd0] sm:$0xff]
        %v1939 = vld [vmem:[#allocation7 + $0xd8] sm:$0xff]
        %v1940 = vld [vmem:[#allocation7 + $0xe0] sm:$0xff]
        %v1941 = vld [vmem:[#allocation7 + $0xe8] sm:$0xff]
        %v1942 = vld [vmem:[#allocation7 + $0xf0] sm:$0xff]
        %v1943 = vld [vmem:[#allocation7 + $0xf8] sm:$0xff]
        %v1944 = vld [vmem:[%s8] sm:$0x3]
        %v1946 = vlaneseq
        %v1947 = vshrl.u32 %v1946, 7
        %v1948 = vsub.s32 0, %v1947
        %v1949 = vrot.slane %v1944, %v1948
        %v1950 = vlaneseq
        %v1951 = vshrl.u32 %v1950, 7
        %v1952 = vsub.s32 1, %v1951
        %v1953 = vrot.slane %v1944, %v1952
        %v1988 = vunpack.c.l.b16 %v1912
        %v1989 = vunpack.c.h.b16 %v1912
        %v1990 = vunpack.c.l.b16 %v1913
        %v1991 = vunpack.c.h.b16 %v1913
        %v1992 = vunpack.c.l.b16 %v1914
        %v1993 = vunpack.c.h.b16 %v1914
        %v1994 = vunpack.c.l.b16 %v1915
        %v1995 = vunpack.c.h.b16 %v1915
        %v1996 = vunpack.c.l.b16 %v1916
        %v1997 = vunpack.c.h.b16 %v1916
        %v1998 = vunpack.c.l.b16 %v1917
        %v1999 = vunpack.c.h.b16 %v1917
        %v2000 = vunpack.c.l.b16 %v1918
        %v2001 = vunpack.c.h.b16 %v1918
        %v2002 = vunpack.c.l.b16 %v1919
        %v2003 = vunpack.c.h.b16 %v1919
        %v2004 = vunpack.c.l.b16 %v1920
        %v2005 = vunpack.c.h.b16 %v1920
        %v2006 = vunpack.c.l.b16 %v1921
        %v2007 = vunpack.c.h.b16 %v1921
        %v2008 = vunpack.c.l.b16 %v1922
        %v2009 = vunpack.c.h.b16 %v1922
        %v2010 = vunpack.c.l.b16 %v1923
        %v2011 = vunpack.c.h.b16 %v1923
        %v2012 = vunpack.c.l.b16 %v1924
        %v2013 = vunpack.c.h.b16 %v1924
        %v2014 = vunpack.c.l.b16 %v1925
        %v2015 = vunpack.c.h.b16 %v1925
        %v2016 = vunpack.c.l.b16 %v1926
        %v2017 = vunpack.c.h.b16 %v1926
        %v2018 = vunpack.c.l.b16 %v1927
        %v2019 = vunpack.c.h.b16 %v1927
        %v2020 = vunpack.c.l.b16 %v1928
        %v2021 = vunpack.c.h.b16 %v1928
        %v2022 = vunpack.c.l.b16 %v1929
        %v2023 = vunpack.c.h.b16 %v1929
        %v2024 = vunpack.c.l.b16 %v1930
        %v2025 = vunpack.c.h.b16 %v1930
        %v2026 = vunpack.c.l.b16 %v1931
        %v2027 = vunpack.c.h.b16 %v1931
        %v2028 = vunpack.c.l.b16 %v1932
        %v2029 = vunpack.c.h.b16 %v1932
        %v2030 = vunpack.c.l.b16 %v1933
        %v2031 = vunpack.c.h.b16 %v1933
        %v2032 = vunpack.c.l.b16 %v1934
        %v2033 = vunpack.c.h.b16 %v1934
        %v2034 = vunpack.c.l.b16 %v1935
        %v2035 = vunpack.c.h.b16 %v1935
        %v2036 = vunpack.c.l.b16 %v1936
        %v2037 = vunpack.c.h.b16 %v1936
        %v2038 = vunpack.c.l.b16 %v1937
        %v2039 = vunpack.c.h.b16 %v1937
        %v2040 = vunpack.c.l.b16 %v1938
        %v2041 = vunpack.c.h.b16 %v1938
        %v2042 = vunpack.c.l.b16 %v1939
        %v2043 = vunpack.c.h.b16 %v1939
        %v2044 = vunpack.c.l.b16 %v1940
        %v2045 = vunpack.c.h.b16 %v1940
        %v2046 = vunpack.c.l.b16 %v1941
        %v2047 = vunpack.c.h.b16 %v1941
        %v2048 = vunpack.c.l.b16 %v1942
        %v2049 = vunpack.c.h.b16 %v1942
        %v2050 = vunpack.c.l.b16 %v1943
        %v2051 = vunpack.c.h.b16 %v1943
        %v2052 = vpack.c.b16 %v1990, %v1988
        %v2053 = vpack.c.b16 %v1991, %v1989
        %v2054 = vpack.c.b16 %v1994, %v1992
        %v2055 = vpack.c.b16 %v1995, %v1993
        %v2056 = vpack.c.b16 %v1998, %v1996
        %v2057 = vpack.c.b16 %v1999, %v1997
        %v2058 = vpack.c.b16 %v2002, %v2000
        %v2059 = vpack.c.b16 %v2003, %v2001
        %v2060 = vpack.c.b16 %v2006, %v2004
        %v2061 = vpack.c.b16 %v2007, %v2005
        %v2062 = vpack.c.b16 %v2010, %v2008
        %v2063 = vpack.c.b16 %v2011, %v2009
        %v2064 = vpack.c.b16 %v2014, %v2012
        %v2065 = vpack.c.b16 %v2015, %v2013
        %v2066 = vpack.c.b16 %v2018, %v2016
        %v2067 = vpack.c.b16 %v2019, %v2017
        %v2068 = vpack.c.b16 %v2022, %v2020
        %v2069 = vpack.c.b16 %v2023, %v2021
        %v2070 = vpack.c.b16 %v2026, %v2024
        %v2071 = vpack.c.b16 %v2027, %v2025
        %v2072 = vpack.c.b16 %v2030, %v2028
        %v2073 = vpack.c.b16 %v2031, %v2029
        %v2074 = vpack.c.b16 %v2034, %v2032
        %v2075 = vpack.c.b16 %v2035, %v2033
        %v2076 = vpack.c.b16 %v2038, %v2036
        %v2077 = vpack.c.b16 %v2039, %v2037
        %v2078 = vpack.c.b16 %v2042, %v2040
        %v2079 = vpack.c.b16 %v2043, %v2041
        %v2080 = vpack.c.b16 %v2046, %v2044
        %v2081 = vpack.c.b16 %v2047, %v2045
        %v2082 = vpack.c.b16 %v2050, %v2048
        %v2083 = vpack.c.b16 %v2051, %v2049
        %2116 = vmatprep.subr.bf16.mxu0 %v2067
        %2117 = vmatpush1.bf16.msra.mxu0 %v2066
        %2118 = vmatprep.subr.bf16.mxu0 %v2065
        %2119 = vmatpush1.bf16.msra.mxu0 %v2064
        %2120 = vmatprep.subr.bf16.mxu0 %v2063
        %2121 = vmatpush1.bf16.msra.mxu0 %v2062
        %2122 = vmatprep.subr.bf16.mxu0 %v2061
        %2123 = vmatpush1.bf16.msra.mxu0 %v2060
        %2124 = vmatprep.subr.bf16.mxu0 %v2059
        %2125 = vmatpush1.bf16.msra.mxu0 %v2058
        %2126 = vmatprep.subr.bf16.mxu0 %v2057
        %2127 = vmatpush1.bf16.msra.mxu0 %v2056
        %2128 = vmatprep.subr.bf16.mxu0 %v2055
        %2129 = vmatpush1.bf16.msra.mxu0 %v2054
        %2130 = vmatprep.subr.bf16.mxu0 %v2053
        %2131 = vmatpush1.bf16.msra.mxu0 %v2052
        %2132 = vmatprep.subr.bf16.mxu0 %v2083
        %2133 = vmatpush2.bf16.msra.mxu0 %v2082
        %2134 = vmatprep.subr.bf16.mxu0 %v2081
        %2135 = vmatpush2.bf16.msra.mxu0 %v2080
        %2136 = vmatprep.subr.bf16.mxu0 %v2079
        %2137 = vmatpush2.bf16.msra.mxu0 %v2078
        %2138 = vmatprep.subr.bf16.mxu0 %v2077
        %2139 = vmatpush2.bf16.msra.mxu0 %v2076
        %2140 = vmatprep.subr.bf16.mxu0 %v2075
        %2141 = vmatpush2.bf16.msra.mxu0 %v2074
        %2142 = vmatprep.subr.bf16.mxu0 %v2073
        %2143 = vmatpush2.bf16.msra.mxu0 %v2072
        %2144 = vmatprep.subr.bf16.mxu0 %v2071
        %2145 = vmatpush2.bf16.msra.mxu0 %v2070
        %2146 = vmatprep.subr.bf16.mxu0 %v2069
        %2147 = vmatpush2.bf16.msra.mxu0 %v2068
        %2148 = vmatprep.mubr.bf16.mxu0 %v1899
        %2149 = vmatmul.mubr.bf16.gmra.mxu0 %v1898
        %v2150 = vpop.f32.mrf.mxu0
        %v2151 = vadd.f32 %v1949, %v2150
        %v2152 = vpop.f32.mrf.mxu0
        %v2153 = vadd.f32 %v1953, %v2152
        %v2154 = vpop.f32.mrf.mxu0
        %v2155 = vadd.f32 %v1949, %v2154
        %v2156 = vpop.f32.mrf.mxu0
        %v2157 = vadd.f32 %v1953, %v2156
        %2158 = vmatprep.mubr.bf16.mxu0 %v1901
        %2159 = vmatmul.mubr.bf16.gmra.mxu0 %v1900
        %v2160 = vpop.f32.mrf.mxu0
        %v2161 = vadd.f32 %v1949, %v2160
        %v2162 = vpop.f32.mrf.mxu0
        %v2163 = vadd.f32 %v1953, %v2162
        %v2164 = vpop.f32.mrf.mxu0
        %v2165 = vadd.f32 %v1949, %v2164
        %v2166 = vpop.f32.mrf.mxu0
        %v2167 = vadd.f32 %v1953, %v2166
        %2168 = vmatprep.mubr.bf16.mxu0 %v1903
        %2169 = vmatmul.mubr.bf16.gmra.mxu0 %v1902
        %v2170 = vpop.f32.mrf.mxu0
        %v2171 = vadd.f32 %v1949, %v2170
        %v2172 = vpop.f32.mrf.mxu0
        %v2173 = vadd.f32 %v1953, %v2172
        %v2174 = vpop.f32.mrf.mxu0
        %v2175 = vadd.f32 %v1949, %v2174
        %v2176 = vpop.f32.mrf.mxu0
        %v2177 = vadd.f32 %v1953, %v2176
        %2178 = vmatprep.mubr.bf16.mxu0 %v1905
        %2179 = vmatmul.mubr.bf16.gmra.mxu0 %v1904
        %v2180 = vpop.f32.mrf.mxu0
        %v2181 = vadd.f32 %v1949, %v2180
        %v2182 = vpop.f32.mrf.mxu0
        %v2183 = vadd.f32 %v1953, %v2182
        %v2184 = vpop.f32.mrf.mxu0
        %v2185 = vadd.f32 %v1949, %v2184
        %v2186 = vpop.f32.mrf.mxu0
        %v2187 = vadd.f32 %v1953, %v2186
        %2188 = vmatprep.mubr.bf16.mxu0 %v1907
        %2189 = vmatmul.mubr.bf16.gmra.mxu0 %v1906
        %v2190 = vpop.f32.mrf.mxu0
        %v2191 = vadd.f32 %v1949, %v2190
        %v2192 = vpop.f32.mrf.mxu0
        %v2193 = vadd.f32 %v1953, %v2192
        %v2194 = vpop.f32.mrf.mxu0
        %v2195 = vadd.f32 %v1949, %v2194
        %v2196 = vpop.f32.mrf.mxu0
        %v2197 = vadd.f32 %v1953, %v2196
        %2198 = vmatprep.mubr.bf16.mxu0 %v1909
        %2199 = vmatmul.mubr.bf16.gmra.mxu0 %v1908
        %v2200 = vpop.f32.mrf.mxu0
        %v2201 = vadd.f32 %v1949, %v2200
        %v2202 = vpop.f32.mrf.mxu0
        %v2203 = vadd.f32 %v1953, %v2202
        %v2204 = vpop.f32.mrf.mxu0
        %v2205 = vadd.f32 %v1949, %v2204
        %v2206 = vpop.f32.mrf.mxu0
        %v2207 = vadd.f32 %v1953, %v2206
        %2208 = vmatprep.mubr.bf16.mxu0 %v1911
        %2209 = vmatmul.mubr.bf16.gmra.mxu0 %v1910
        %v2210 = vpop.f32.mrf.mxu0
        %v2211 = vadd.f32 %v1949, %v2210
        %v2212 = vpop.f32.mrf.mxu0
        %v2213 = vadd.f32 %v1953, %v2212
        %v2214 = vpop.f32.mrf.mxu0
        %v2215 = vpop.f32.mrf.mxu0
        %2216 = vdwg.mxu0
        %2217 = vst [vmem:[%s370] sm:$0xff] %v2151
        %2218 = vst [vmem:[%s370 + $0x8] sm:$0xff] %v2153
        %2219 = vst [vmem:[%s370 + $0x10] sm:$0xff] %v2155
        %2220 = vst [vmem:[%s370 + $0x18] sm:$0xff] %v2157
        %2221 = vst [vmem:[%s370 + $0x20] sm:$0xff] %v2161
        %2222 = vst [vmem:[%s370 + $0x28] sm:$0xff] %v2163
        %2223 = vst [vmem:[%s370 + $0x30] sm:$0xff] %v2165
        %2224 = vst [vmem:[%s370 + $0x38] sm:$0xff] %v2167
        %2225 = vst [vmem:[%s370 + $0x40] sm:$0xff] %v2171
        %2226 = vst [vmem:[%s370 + $0x48] sm:$0xff] %v2173
        %2227 = vst [vmem:[%s370 + $0x50] sm:$0xff] %v2175
        %2228 = vst [vmem:[%s370 + $0x58] sm:$0xff] %v2177
        %2229 = vst [vmem:[%s370 + $0x60] sm:$0xff] %v2181
        %2230 = vst [vmem:[%s370 + $0x68] sm:$0xff] %v2183
        %2231 = vst [vmem:[%s370 + $0x70] sm:$0xff] %v2185
        %2232 = vst [vmem:[%s370 + $0x78] sm:$0xff] %v2187
        %2233 = vst [vmem:[%s370 + $0x80] sm:$0xff] %v2191
        %2234 = vst [vmem:[%s370 + $0x88] sm:$0xff] %v2193
        %2235 = vst [vmem:[%s370 + $0x90] sm:$0xff] %v2195
        %2236 = vst [vmem:[%s370 + $0x98] sm:$0xff] %v2197
        %2237 = vst [vmem:[%s370 + $0xa0] sm:$0xff] %v2201
        %2238 = vst [vmem:[%s370 + $0xa8] sm:$0xff] %v2203
        %2239 = vst [vmem:[%s370 + $0xb0] sm:$0xff] %v2205
        %2240 = vst [vmem:[%s370 + $0xb8] sm:$0xff] %v2207
        %2241 = vst [vmem:[%s370 + $0xc0] sm:$0xff] %v2211
        %2242 = vst [vmem:[%s370 + $0xc8] sm:$0xff] %v2213
        %s2243 = sand.u32 %s227, 1
        %s2244 = scalar_lea.sflag [#allocation4], %s2243
        %s2245 = sand.u32 %s227, 1
        %s2246 = smul.addr %s2245, 208
        %s2247 = scalar_lea.vmem [#allocation8], %s2246
        // Predicated region
        $region69: #{tpu_custom_call.1} parent=55 // pred_check
          %p2248 = pneg %p237
        $region70: #{tpu_custom_call.1} parent=55 // pred_check_branch
          %2250 = sbr.rel (%p2248) target = $region72
        $region71: #{tpu_custom_call.1} parent=55 // pred_region
          %s2251 = smul.u32 13, %s25
          %s2253 = ssub.s32 3328, 3328
          %2254 = vsyncadd %s2244, %s2253
          %s2255 = smul.addr %s2251, 2
          %s2256 = smul.addr %s2255, 128
          %s2257 = scalar_lea.hbm %s9, %s2256
          %s2258 = sshll.u32 %s2247, 4
          %s2259 = int_to_ptr.vmem [resolvable:$true] %s2258
          %2264 = dma.vmem_to_hbm [thread:$0]  %s2259, 3328, %s2257, %s2244, 256, 256, 16
        $region72: #{tpu_custom_call.1} parent=55 // pred_fallthru
          _
      $region56: #{tpu_custom_call.1} parent=5 // pred_fallthru
        _
      %p2265 = scmp.le.s32.totalorder 2, %s20
      // Predicated region
      $region73: #{tpu_custom_call.1} parent=5 // pred_check
        %p2266 = pneg %p2265
      $region74: #{tpu_custom_call.1} parent=5 // pred_check_branch
        %2268 = sbr.rel (%p2266) target = $region76
      $region75: #{tpu_custom_call.1} parent=5 // pred_region
        %s2269 = ssub.s32 %s20, 2
        // Predicated region
        $region77: #{tpu_custom_call.1} parent=75 // pred_check
          %p2270 = pneg %p243
        $region78: #{tpu_custom_call.1} parent=75 // pred_check_branch
          %2272 = sbr.rel (%p2270) target = $region80
        $region79: #{tpu_custom_call.1} parent=75 // pred_region
          %s2273 = sand.u32 %s228, 1
          %s2274 = scalar_lea.sflag [#allocation4], %s2273
          %s2275 = sand.u32 %s228, 1
          %s2276 = smul.addr %s2275, 208
          %s2277 = scalar_lea.vmem [#allocation8], %s2276
          %2278 = dma.done %s2274, 3328
        $region80: #{tpu_custom_call.1} parent=75 // pred_fallthru
          _
      $region76: #{tpu_custom_call.1} parent=5 // pred_fallthru
        _
    $region6: #{tpu_custom_call.1} parent=1 // loop_footer
      %s24 = sadd.s32 1, %s20
    $region7: #{tpu_custom_call.1} parent=1 // loop_footer_branch
      %19 = sbr.rel target = $region3
    $region8: #{tpu_custom_call.1} parent=1 // loop_exit
      _
    %2279 = vsyncpa [#allocation3], 1
    %s2280 = scalar_lea.sflag [#allocation3], 1
    %2281 = vsyncpa %s2280, 1
    %2282 = vsyncpa [#allocation6], 1
    %2283 = vsyncpa [#allocation4], 1
    %s2284 = scalar_lea.sflag [#allocation4], 1
    %2285 = vsyncpa %s2284, 1

// kernel: tpu_custom_call.1
$region0: #{tpu_custom_call.1}
  #allocation0 [shape = 'u32[]', space=smem, size = 0x4, offset = 0x4, fixed_abs, tag = 'smem constant byte address 0x4 - core index']
  #allocation1 [shape = 'u32[144,128]{1,0:T(1,128)}', space=vmem, size = 0x12000, scoped, tag = 'internal scratch']
  %s0 = inlined_call_operand.vmem [shape: f32[208,16], index: 0, kind: input, shape index: {}]
  %s1 = inlined_call_operand.vmem [shape: bf16[16,256], index: 1, kind: input, shape index: {}]
  %s2 = inlined_call_operand.vmem [shape: f32[1,256], index: 2, kind: input, shape index: {}]
  %s3 = inlined_call_operand.hbm [shape: bf16[256,512], index: 3, kind: input, shape index: {}]
  %s4 = inlined_call_operand.vmem [shape: f32[1,512], index: 4, kind: input, shape index: {}]
  %s5 = inlined_call_operand.hbm [shape: bf16[512,256], index: 5, kind: input, shape index: {}]
  %s6 = inlined_call_operand.vmem [shape: f32[1,256], index: 6, kind: input, shape index: {}]
  %s7 = inlined_call_operand.hbm [shape: bf16[256,256], index: 7, kind: input, shape index: {}]
  %s8 = inlined_call_operand.vmem [shape: f32[1,256], index: 8, kind: input, shape index: {}]
  %s9 = inlined_call_operand.hbm [shape: f32[208,256], index: 9, kind: output, shape index: {}]
  %s10 = sld [smem:[#allocation0]]
  $region81: #{tpu_custom_call.1} parent=0
    _
  %s12 = ssub.s32 1, %s10
  %s13 = scalar_select 0, %s12, %s10
  $region1: #{tpu_custom_call.1} parent=0
    #allocation2 [shape = 'u8[262144]{0}', space=vmem, size = 0x40000, scoped, tag = 'input window, operand 3, single buffered']
    #allocation3 [shape = 's32[2]{0}', space=sflag, size = 0x8, scoped, tag = 'scoped memory for tpu_custom_call.1']
    #allocation4 [shape = 's32[2]{0}', space=sflag, size = 0x8, scoped, tag = 'scoped memory for tpu_custom_call.1']
    #allocation5 [shape = 'u8[262144]{0}', space=vmem, size = 0x40000, scoped, tag = 'input window, operand 5, single buffered']
    #allocation6 [shape = 's32[1]{0}', space=sflag, size = 0x4, scoped, tag = 'scoped memory for tpu_custom_call.1']
    #allocation7 [shape = 'u8[131072]{0}', space=vmem, size = 0x20000, scoped, tag = 'input window, operand 7, single buffered']
    #allocation8 [shape = 'u8[212992]{0}', space=vmem, size = 0x34000, scoped, tag = 'output window, operand 0']
    %14 = vsyncpa [#allocation3], 0
    %15 = vsyncpa [#allocation6], 0
    %16 = vsyncpa [#allocation4], 0
    %s17 = scalar_lea.sflag [#allocation4], 1
    %18 = vsyncpa %s17, 0
    loop: start=0, step=1, limit=4
    $region2: #{tpu_custom_call.1} parent=1 // loop_pre_header
      _
    $region3: #{tpu_custom_call.1} parent=1 // loop_header
      %s20 = sphi 0, %s24
      %p21 = scmp.ge.s32.totalorder %s20, 4
      %s30 = sphi 0, %s32
      %s33 = sphi 0, %s30
      %s34 = sphi 0, %s33
      %s50 = sphi 0, %s34
      %s54 = sphi 0, %s54
      %s56 = sphi 0, %s54
      %s57 = sphi 0, %s56
      %s71 = sphi 0, %s57
      %s75 = sphi 0, %s75
      %s77 = sphi 0, %s75
      %s78 = sphi 0, %s77
      %s92 = sphi 0, %s78
      %s96 = sphi 0, %s96
      %s98 = sphi 0, %s96
      %s99 = sphi 0, %s98
      %s113 = sphi 0, %s99
      %s117 = sphi 0, %s117
      %s119 = sphi 0, %s117
      %s120 = sphi 0, %s119
      %s134 = sphi 0, %s120
      %s138 = sphi 0, %s138
      %s140 = sphi 0, %s138
      %s141 = sphi 0, %s140
      %s155 = sphi 0, %s141
      %s159 = sphi 0, %s159
      %s161 = sphi 0, %s159
      %s162 = sphi 0, %s161
      %s176 = sphi 0, %s162
      %s180 = sphi 0, %s180
      %s182 = sphi 0, %s180
      %s183 = sphi 0, %s182
      %s197 = sphi 0, %s183
      %s201 = sphi 0, %s201
      %s203 = sphi 0, %s201
      %s204 = sphi 0, %s203
      %s218 = sphi 0, %s204
      %s224 = sphi 0, %s226
      %s227 = sphi 0, %s224
      %s228 = sphi 0, %s227
      %s244 = sphi 0, %s228
    $region4: #{tpu_custom_call.1} parent=1 // loop_header_branch
      %23 = sbr.rel (%p21) target = $region8
    $region5: #{tpu_custom_call.1} parent=1 // loop_body
      %s25 = ssub.s32 %s20, 1
      %s26 = ssub.s32 %s20, 2
      %s27 = sadd.s32 %s20, 1
      %s28 = ssub.s32 %s20, %s27
      %p29 = scmp.eq.s32.totalorder %s28, 0
      %s31 = sadd.s32 %s30, 1
      %s32 = scalar_select %p29, %s30, %s31
      %p35 = pneg %p29
      %p36 = scmp.eq.s32.totalorder %s20, 1
      %p37 = por %p35, %p36
      %p38 = scmp.ne.s32.totalorder %s30, %s33
      %p39 = scmp.eq.s32.totalorder %s20, 0
      %p40 = por %p38, %p39
      %p41 = scmp.ne.s32.totalorder %s30, %s33
      %p42 = scmp.eq.s32.totalorder %s25, 1
      %p43 = por %p41, %p42
      %p44 = scmp.ne.s32.totalorder %s33, %s34
      %p45 = scmp.eq.s32.totalorder %s25, 0
      %p46 = por %p44, %p45
      %p47 = scmp.ne.s32.totalorder %s33, %s34
      %p48 = scmp.eq.s32.totalorder %s26, 1
      %p49 = por %p47, %p48
      %p51 = scmp.ne.s32.totalorder %s34, %s50
      %p52 = scmp.eq.s32.totalorder %s26, 0
      %p53 = por %p51, %p52
      %s55 = sadd.s32 %s54, 1
      %p58 = scmp.eq.s32.totalorder %s20, 1
      %p59 = scmp.ne.s32.totalorder %s54, %s56
      %p60 = scmp.eq.s32.totalorder %s20, 0
      %p61 = por %p59, %p60
      %p62 = scmp.ne.s32.totalorder %s54, %s56
      %p63 = scmp.eq.s32.totalorder %s25, 1
      %p64 = por %p62, %p63
      %p65 = scmp.ne.s32.totalorder %s56, %s57
      %p66 = scmp.eq.s32.totalorder %s25, 0
      %p67 = por %p65, %p66
      %p68 = scmp.ne.s32.totalorder %s56, %s57
      %p69 = scmp.eq.s32.totalorder %s26, 1
      %p70 = por %p68, %p69
      %p72 = scmp.ne.s32.totalorder %s57, %s71
      %p73 = scmp.eq.s32.totalorder %s26, 0
      %p74 = por %p72, %p73
      %s76 = sadd.s32 %s75, 1
      %p79 = scmp.eq.s32.totalorder %s20, 1
      %p80 = scmp.ne.s32.totalorder %s75, %s77
      %p81 = scmp.eq.s32.totalorder %s20, 0
      %p82 = por %p80, %p81
      %p83 = scmp.ne.s32.totalorder %s75, %s77
      %p84 = scmp.eq.s32.totalorder %s25, 1
      %p85 = por %p83, %p84
      %p86 = scmp.ne.s32.totalorder %s77, %s78
      %p87 = scmp.eq.s32.totalorder %s25, 0
      %p88 = por %p86, %p87
      %p89 = scmp.ne.s32.totalorder %s77, %s78
      %p90 = scmp.eq.s32.totalorder %s26, 1
      %p91 = por %p89, %p90
      %p93 = scmp.ne.s32.totalorder %s78, %s92
      %p94 = scmp.eq.s32.totalorder %s26, 0
      %p95 = por %p93, %p94
      %s97 = sadd.s32 %s96, 1
      %p100 = scmp.eq.s32.totalorder %s20, 1
      %p101 = scmp.ne.s32.totalorder %s96, %s98
      %p102 = scmp.eq.s32.totalorder %s20, 0
      %p103 = por %p101, %p102
      %p104 = scmp.ne.s32.totalorder %s96, %s98
      %p105 = scmp.eq.s32.totalorder %s25, 1
      %p106 = por %p104, %p105
      %p107 = scmp.ne.s32.totalorder %s98, %s99
      %p108 = scmp.eq.s32.totalorder %s25, 0
      %p109 = por %p107, %p108
      %p110 = scmp.ne.s32.totalorder %s98, %s99
      %p111 = scmp.eq.s32.totalorder %s26, 1
      %p112 = por %p110, %p111
      %p114 = scmp.ne.s32.totalorder %s99, %s113
      %p115 = scmp.eq.s32.totalorder %s26, 0
      %p116 = por %p114, %p115
      %s118 = sadd.s32 %s117, 1
      %p121 = scmp.eq.s32.totalorder %s20, 1
      %p122 = scmp.ne.s32.totalorder %s117, %s119
      %p123 = scmp.eq.s32.totalorder %s20, 0
      %p124 = por %p122, %p123
      %p125 = scmp.ne.s32.totalorder %s117, %s119
      %p126 = scmp.eq.s32.totalorder %s25, 1
      %p127 = por %p125, %p126
      %p128 = scmp.ne.s32.totalorder %s119, %s120
      %p129 = scmp.eq.s32.totalorder %s25, 0
      %p130 = por %p128, %p129
      %p131 = scmp.ne.s32.totalorder %s119, %s120
      %p132 = scmp.eq.s32.totalorder %s26, 1
      %p133 = por %p131, %p132
      %p135 = scmp.ne.s32.totalorder %s120, %s134
      %p136 = scmp.eq.s32.totalorder %s26, 0
      %p137 = por %p135, %p136
      %s139 = sadd.s32 %s138, 1
      %p142 = scmp.eq.s32.totalorder %s20, 1
      %p143 = scmp.ne.s32.totalorder %s138, %s140
      %p144 = scmp.eq.s32.totalorder %s20, 0
      %p145 = por %p143, %p144
      %p146 = scmp.ne.s32.totalorder %s138, %s140
      %p147 = scmp.eq.s32.totalorder %s25, 1
      %p148 = por %p146, %p147
      %p149 = scmp.ne.s32.totalorder %s140, %s141
      %p150 = scmp.eq.s32.totalorder %s25, 0
      %p151 = por %p149, %p150
      %p152 = scmp.ne.s32.totalorder %s140, %s141
      %p153 = scmp.eq.s32.totalorder %s26, 1
      %p154 = por %p152, %p153
      %p156 = scmp.ne.s32.totalorder %s141, %s155
      %p157 = scmp.eq.s32.totalorder %s26, 0
      %p158 = por %p156, %p157
      %s160 = sadd.s32 %s159, 1
      %p163 = scmp.eq.s32.totalorder %s20, 1
      %p164 = scmp.ne.s32.totalorder %s159, %s161
      %p165 = scmp.eq.s32.totalorder %s20, 0
      %p166 = por %p164, %p165
      %p167 = scmp.ne.s32.totalorder %s159, %s161
      %p168 = scmp.eq.s32.totalorder %s25, 1
      %p169 = por %p167, %p168
      %p170 = scmp.ne.s32.totalorder %s161, %s162
      %p171 = scmp.eq.s32.totalorder %s25, 0
      %p172 = por %p170, %p171
      %p173 = scmp.ne.s32.totalorder %s161, %s162
      %p174 = scmp.eq.s32.totalorder %s26, 1
      %p175 = por %p173, %p174
      %p177 = scmp.ne.s32.totalorder %s162, %s176
      %p178 = scmp.eq.s32.totalorder %s26, 0
      %p179 = por %p177, %p178
      %s181 = sadd.s32 %s180, 1
      %p184 = scmp.eq.s32.totalorder %s20, 1
      %p185 = scmp.ne.s32.totalorder %s180, %s182
      %p186 = scmp.eq.s32.totalorder %s20, 0
      %p187 = por %p185, %p186
      %p188 = scmp.ne.s32.totalorder %s180, %s182
      %p189 = scmp.eq.s32.totalorder %s25, 1
      %p190 = por %p188, %p189
      %p191 = scmp.ne.s32.totalorder %s182, %s183
      %p192 = scmp.eq.s32.totalorder %s25, 0
      %p193 = por %p191, %p192
      %p194 = scmp.ne.s32.totalorder %s182, %s183
      %p195 = scmp.eq.s32.totalorder %s26, 1
      %p196 = por %p194, %p195
      %p198 = scmp.ne.s32.totalorder %s183, %s197
      %p199 = scmp.eq.s32.totalorder %s26, 0
      %p200 = por %p198, %p199
      %s202 = sadd.s32 %s201, 1
      %p205 = scmp.eq.s32.totalorder %s20, 1
      %p206 = scmp.ne.s32.totalorder %s201, %s203
      %p207 = scmp.eq.s32.totalorder %s20, 0
      %p208 = por %p206, %p207
      %p209 = scmp.ne.s32.totalorder %s201, %s203
      %p210 = scmp.eq.s32.totalorder %s25, 1
      %p211 = por %p209, %p210
      %p212 = scmp.ne.s32.totalorder %s203, %s204
      %p213 = scmp.eq.s32.totalorder %s25, 0
      %p214 = por %p212, %p213
      %p215 = scmp.ne.s32.totalorder %s203, %s204
      %p216 = scmp.eq.s32.totalorder %s26, 1
      %p217 = por %p215, %p216
      %p219 = scmp.ne.s32.totalorder %s204, %s218
      %p220 = scmp.eq.s32.totalorder %s26, 0
      %p221 = por %p219, %p220
      %s222 = ssub.s32 %s20, %s27
      %p223 = scmp.eq.s32.totalorder %s222, 0
      %s225 = sadd.s32 %s224, 1
      %s226 = scalar_select %p223, %s224, %s225
      %p229 = pneg %p223
      %p230 = scmp.eq.s32.totalorder %s20, 1
      %p231 = por %p229, %p230
      %p232 = scmp.ne.s32.totalorder %s224, %s227
      %p233 = scmp.eq.s32.totalorder %s20, 0
      %p234 = por %p232, %p233
      %p235 = scmp.ne.s32.totalorder %s224, %s227
      %p236 = scmp.eq.s32.totalorder %s25, 1
      %p237 = por %p235, %p236
      %p238 = scmp.ne.s32.totalorder %s227, %s228
      %p239 = scmp.eq.s32.totalorder %s25, 0
      %p240 = por %p238, %p239
      %p241 = scmp.ne.s32.totalorder %s227, %s228
      %p242 = scmp.eq.s32.totalorder %s26, 1
      %p243 = por %p241, %p242
      %p245 = scmp.ne.s32.totalorder %s228, %s244
      %p246 = scmp.eq.s32.totalorder %s26, 0
      %p247 = por %p245, %p246
      %p248 = scmp.le.s32.totalorder 1, %s20
      %p249 = scmp.lt.s32.totalorder %s20, 3
      %p250 = pnand %p248, %p249
      %p251 = pneg %p250
      // Predicated region
      $region9: #{tpu_custom_call.1} parent=5 // pred_check
        _
      $region10: #{tpu_custom_call.1} parent=5 // pred_check_branch
        %253 = sbr.rel (%p250) target = $region12
      $region11: #{tpu_custom_call.1} parent=5 // pred_region
        %s254 = ssub.s32 %s20, 1
        // Predicated region
        $region13: #{tpu_custom_call.1} parent=11 // pred_check
          %p255 = pneg %p67
        $region14: #{tpu_custom_call.1} parent=11 // pred_check_branch
          %257 = sbr.rel (%p255) target = $region16
        $region15: #{tpu_custom_call.1} parent=11 // pred_region
          _
        $region16: #{tpu_custom_call.1} parent=11 // pred_fallthru
          _
        // Predicated region
        $region17: #{tpu_custom_call.1} parent=11 // pred_check
          %p258 = pneg %p88
        $region18: #{tpu_custom_call.1} parent=11 // pred_check_branch
          %260 = sbr.rel (%p258) target = $region20
        $region19: #{tpu_custom_call.1} parent=11 // pred_region
          _
        $region20: #{tpu_custom_call.1} parent=11 // pred_fallthru
          _
        // Predicated region
        $region21: #{tpu_custom_call.1} parent=11 // pred_check
          %p261 = pneg %p109
        $region22: #{tpu_custom_call.1} parent=11 // pred_check_branch
          %263 = sbr.rel (%p261) target = $region24
        $region23: #{tpu_custom_call.1} parent=11 // pred_region
          %s265 = ssub.s32 8192, 8192
          %266 = vsyncadd [#allocation3], %s265
          %s267 = sshll.u32 [#allocation2], 4
          %s268 = int_to_ptr.vmem [resolvable:$true] %s267
          %273 = dma.hbm_to_vmem [thread:$0]  %s3, 8192, %s268, [#allocation3], 256, 256, 16
        $region24: #{tpu_custom_call.1} parent=11 // pred_fallthru
          _
        // Predicated region
        $region25: #{tpu_custom_call.1} parent=11 // pred_check
          %p274 = pneg %p130
        $region26: #{tpu_custom_call.1} parent=11 // pred_check_branch
          %276 = sbr.rel (%p274) target = $region28
        $region27: #{tpu_custom_call.1} parent=11 // pred_region
          _
        $region28: #{tpu_custom_call.1} parent=11 // pred_fallthru
          _
        // Predicated region
        $region29: #{tpu_custom_call.1} parent=11 // pred_check
          %p277 = pneg %p151
        $region30: #{tpu_custom_call.1} parent=11 // pred_check_branch
          %279 = sbr.rel (%p277) target = $region32
        $region31: #{tpu_custom_call.1} parent=11 // pred_region
          %s281 = ssub.s32 8192, 8192
          %282 = vsyncadd [#allocation6], %s281
          %s283 = sshll.u32 [#allocation5], 4
          %s284 = int_to_ptr.vmem [resolvable:$true] %s283
          %289 = dma.hbm_to_vmem [thread:$0]  %s5, 8192, %s284, [#allocation6], 128, 128, 8
        $region32: #{tpu_custom_call.1} parent=11 // pred_fallthru
          _
        // Predicated region
        $region33: #{tpu_custom_call.1} parent=11 // pred_check
          %p290 = pneg %p172
        $region34: #{tpu_custom_call.1} parent=11 // pred_check_branch
          %292 = sbr.rel (%p290) target = $region36
        $region35: #{tpu_custom_call.1} parent=11 // pred_region
          _
        $region36: #{tpu_custom_call.1} parent=11 // pred_fallthru
          _
        // Predicated region
        $region37: #{tpu_custom_call.1} parent=11 // pred_check
          %p293 = pneg %p193
        $region38: #{tpu_custom_call.1} parent=11 // pred_check_branch
          %295 = sbr.rel (%p293) target = $region40
        $region39: #{tpu_custom_call.1} parent=11 // pred_region
          %s297 = ssub.s32 4096, 4096
          %298 = vsyncadd [#allocation6], %s297
          %s299 = sshll.u32 [#allocation7], 4
          %s300 = int_to_ptr.vmem [resolvable:$true] %s299
          %305 = dma.hbm_to_vmem [thread:$0]  %s7, 4096, %s300, [#allocation6], 128, 128, 8
        $region40: #{tpu_custom_call.1} parent=11 // pred_fallthru
          _
        // Predicated region
        $region41: #{tpu_custom_call.1} parent=11 // pred_check
          %p306 = pneg %p214
        $region42: #{tpu_custom_call.1} parent=11 // pred_check_branch
          %308 = sbr.rel (%p306) target = $region44
        $region43: #{tpu_custom_call.1} parent=11 // pred_region
          _
        $region44: #{tpu_custom_call.1} parent=11 // pred_fallthru
          _
      $region12: #{tpu_custom_call.1} parent=5 // pred_fallthru
        _
      %p309 = scmp.lt.s32.totalorder %s20, 2
      // Predicated region
      $region45: #{tpu_custom_call.1} parent=5 // pred_check
        %p310 = pneg %p309
      $region46: #{tpu_custom_call.1} parent=5 // pred_check_branch
        %312 = sbr.rel (%p310) target = $region48
      $region47: #{tpu_custom_call.1} parent=5 // pred_region
        // Predicated region
        $region49: #{tpu_custom_call.1} parent=47 // pred_check
          %p313 = pneg %p40
        $region50: #{tpu_custom_call.1} parent=47 // pred_check_branch
          %315 = sbr.rel (%p313) target = $region52
        $region51: #{tpu_custom_call.1} parent=47 // pred_region
          %s316 = smul.u32 13, %s20
          %p317 = scmp.lt.s32.totalorder %s316, 25
          %s318 = scalar_select %p317, %s316, 25
          %s319 = smul.addr %s318, 8
          %s320 = scalar_lea.vmem %s0, %s319
          %s321 = smul.u32 13, %s20
        $region52: #{tpu_custom_call.1} parent=47 // pred_fallthru
          _
      $region48: #{tpu_custom_call.1} parent=5 // pred_fallthru
        _
      %p322 = scmp.le.s32.totalorder 1, %s20
      %p323 = scmp.lt.s32.totalorder %s20, 3
      %p324 = pnand %p322, %p323
      %p325 = pneg %p324
      // Predicated region
      $region53: #{tpu_custom_call.1} parent=5 // pred_check
        _
      $region54: #{tpu_custom_call.1} parent=5 // pred_check_branch
        %327 = sbr.rel (%p324) target = $region56
      $region55: #{tpu_custom_call.1} parent=5 // pred_region
        %s328 = ssub.s32 %s20, 1
        // Predicated region
        $region57: #{tpu_custom_call.1} parent=55 // pred_check
          %p329 = pneg %p109
        $region58: #{tpu_custom_call.1} parent=55 // pred_check_branch
          %331 = sbr.rel (%p329) target = $region60
        $region59: #{tpu_custom_call.1} parent=55 // pred_region
          %332 = dma.done [#allocation3], 8192
        $region60: #{tpu_custom_call.1} parent=55 // pred_fallthru
          _
        // Predicated region
        $region61: #{tpu_custom_call.1} parent=55 // pred_check
          %p333 = pneg %p151
        $region62: #{tpu_custom_call.1} parent=55 // pred_check_branch
          %335 = sbr.rel (%p333) target = $region64
        $region63: #{tpu_custom_call.1} parent=55 // pred_region
          %336 = dma.done [#allocation6], 8192
        $region64: #{tpu_custom_call.1} parent=55 // pred_fallthru
          _
        // Predicated region
        $region65: #{tpu_custom_call.1} parent=55 // pred_check
          %p337 = pneg %p193
        $region66: #{tpu_custom_call.1} parent=55 // pred_check_branch
          %339 = sbr.rel (%p337) target = $region68
        $region67: #{tpu_custom_call.1} parent=55 // pred_region
          %340 = dma.done [#allocation6], 4096
        $region68: #{tpu_custom_call.1} parent=55 // pred_fallthru
          _
        %s341 = smul.u32 13, %s25
        %p342 = scmp.lt.s32.totalorder %s341, 25
        %s343 = scalar_select %p342, %s341, 25
        %s344 = smul.addr %s343, 8
        %s345 = scalar_lea.vmem %s0, %s344
        %p346 = pneg %p46
        %p347 = pneg %p43
        %p348 = pneg %p67
        %p349 = pneg %p64
        %p350 = pneg %p88
        %p351 = pneg %p85
        %p352 = pneg %p109
        %p353 = pneg %p106
        %p354 = pneg %p130
        %p355 = pneg %p127
        %p356 = pneg %p151
        %p357 = pneg %p148
        %p358 = pneg %p172
        %p359 = pneg %p169
        %p360 = pneg %p193
        %p361 = pneg %p190
        %p362 = pneg %p214
        %p363 = pneg %p211
        %p364 = pneg %p240
        %p365 = pneg %p237
        %s366 = sand.u32 %s227, 1
        %s367 = scalar_lea.sflag [#allocation4], %s366
        %s368 = sand.u32 %s227, 1
        %s369 = smul.addr %s368, 208
        %s370 = scalar_lea.vmem [#allocation8], %s369
        %s371 = smul.u32 13, %s25
        %p372 = scmp.lt.s32.totalorder %s371, 25
        %s373 = scalar_select %p372, %s371, 25
        %s374 = smul.addr %s373, 8
        %s375 = scalar_lea.vmem %s0, %s374
        %s376 = smul.u32 13, %s25
        %s377 = smul.u32 13, %s25
        %v379 = vld [vmem:[%s375] sm:$0xff]
        %v380 = vld [vmem:[%s375 + $0x8] sm:$0xff]
        %v381 = vld [vmem:[%s375 + $0x10] sm:$0xff]
        %v382 = vld [vmem:[%s375 + $0x18] sm:$0xff]
        %v383 = vld [vmem:[%s375 + $0x20] sm:$0xff]
        %v384 = vld [vmem:[%s375 + $0x28] sm:$0xff]
        %v385 = vld [vmem:[%s375 + $0x30] sm:$0xff]
        %v386 = vld [vmem:[%s375 + $0x38] sm:$0xff]
        %v387 = vld [vmem:[%s375 + $0x40] sm:$0xff]
        %v388 = vld [vmem:[%s375 + $0x48] sm:$0xff]
        %v389 = vld [vmem:[%s375 + $0x50] sm:$0xff]
        %v390 = vld [vmem:[%s375 + $0x58] sm:$0xff]
        %v391 = vld [vmem:[%s375 + $0x60] sm:$0xff]
        %v392 = vpack.c.bf16 %v380, %v379
        %v393 = vpack.c.bf16 %v382, %v381
        %v394 = vpack.c.bf16 %v384, %v383
        %v395 = vpack.c.bf16 %v386, %v385
        %v396 = vpack.c.bf16 %v388, %v387
        %v397 = vpack.c.bf16 %v390, %v389
        %v398 = vpack.c.bf16 %v391, %v391
        %v399 = vld [vmem:[%s1] sm:$0xff]
        %v400 = vld [vmem:[%s1 + $0x8] sm:$0xff]
        %v401 = vld [vmem:[%s2] sm:$0x3]
        %v403 = vlaneseq
        %v404 = vshrl.u32 %v403, 7
        %v405 = vsub.s32 0, %v404
        %v406 = vrot.slane %v401, %v405
        %v407 = vlaneseq
        %v408 = vshrl.u32 %v407, 7
        %v409 = vsub.s32 1, %v408
        %v410 = vrot.slane %v401, %v409
        %v415 = vunpack.c.l.b16 %v399
        %v416 = vunpack.c.h.b16 %v399
        %v417 = vunpack.c.l.b16 %v400
        %v418 = vunpack.c.h.b16 %v400
        %v419 = vpack.c.b16 %v417, %v415
        %v420 = vpack.c.b16 %v418, %v416
        %vm423 = vcmask 130048
        %v425 = vsel %vm423, %v392, 0
        %v428 = vsel %vm423, %v393, 0
        %v431 = vsel %vm423, %v394, 0
        %v434 = vsel %vm423, %v395, 0
        %v437 = vsel %vm423, %v396, 0
        %v440 = vsel %vm423, %v397, 0
        %v443 = vsel %vm423, %v398, 0
        %445 = vmatprep.subr.bf16.mxu0 0
        %446 = vmatpush1.bf16.msra.mxu0 0
        %447 = vmatprep.subr.bf16.mxu0 0
        %448 = vmatpush1.bf16.msra.mxu0 0
        %449 = vmatprep.subr.bf16.mxu0 0
        %450 = vmatpush1.bf16.msra.mxu0 0
        %451 = vmatprep.subr.bf16.mxu0 0
        %452 = vmatpush1.bf16.msra.mxu0 0
        %453 = vmatprep.subr.bf16.mxu0 0
        %454 = vmatpush1.bf16.msra.mxu0 0
        %455 = vmatprep.subr.bf16.mxu0 0
        %456 = vmatpush1.bf16.msra.mxu0 0
        %457 = vmatprep.subr.bf16.mxu0 0
        %458 = vmatpush1.bf16.msra.mxu0 0
        %459 = vmatprep.subr.bf16.mxu0 %v420
        %460 = vmatpush1.bf16.msra.mxu0 %v419
        %461 = vmatprep.subr.bf16.mxu0 0
        %462 = vmatpush2.bf16.msra.mxu0 0
        %463 = vmatprep.subr.bf16.mxu0 0
        %464 = vmatpush2.bf16.msra.mxu0 0
        %465 = vmatprep.subr.bf16.mxu0 0
        %466 = vmatpush2.bf16.msra.mxu0 0
        %467 = vmatprep.subr.bf16.mxu0 0
        %468 = vmatpush2.bf16.msra.mxu0 0
        %469 = vmatprep.subr.bf16.mxu0 0
        %470 = vmatpush2.bf16.msra.mxu0 0
        %471 = vmatprep.subr.bf16.mxu0 0
        %472 = vmatpush2.bf16.msra.mxu0 0
        %473 = vmatprep.subr.bf16.mxu0 0
        %474 = vmatpush2.bf16.msra.mxu0 0
        %475 = vmatprep.subr.bf16.mxu0 0
        %476 = vmatpush2.bf16.msra.mxu0 0
        %477 = vmatprep.mubr.bf16.mxu0 0
        %478 = vmatmul.mubr.bf16.gmra.mxu0 %v425
        %v479 = vpop.f32.mrf.mxu0
        %v480 = vadd.f32 %v406, %v479
        %v481 = vpop.f32.mrf.mxu0
        %v482 = vadd.f32 %v410, %v481
        %v483 = vpop.f32.mrf.mxu0
        %v484 = vadd.f32 %v406, %v483
        %v485 = vpop.f32.mrf.mxu0
        %v486 = vadd.f32 %v410, %v485
        %487 = vmatprep.mubr.bf16.mxu0 0
        %488 = vmatmul.mubr.bf16.gmra.mxu0 %v428
        %v489 = vpop.f32.mrf.mxu0
        %v490 = vadd.f32 %v406, %v489
        %v491 = vpop.f32.mrf.mxu0
        %v492 = vadd.f32 %v410, %v491
        %v493 = vpop.f32.mrf.mxu0
        %v494 = vadd.f32 %v406, %v493
        %v495 = vpop.f32.mrf.mxu0
        %v496 = vadd.f32 %v410, %v495
        %497 = vmatprep.mubr.bf16.mxu0 0
        %498 = vmatmul.mubr.bf16.gmra.mxu0 %v431
        %v499 = vpop.f32.mrf.mxu0
        %v500 = vadd.f32 %v406, %v499
        %v501 = vpop.f32.mrf.mxu0
        %v502 = vadd.f32 %v410, %v501
        %v503 = vpop.f32.mrf.mxu0
        %v504 = vadd.f32 %v406, %v503
        %v505 = vpop.f32.mrf.mxu0
        %v506 = vadd.f32 %v410, %v505
        %507 = vmatprep.mubr.bf16.mxu0 0
        %508 = vmatmul.mubr.bf16.gmra.mxu0 %v434
        %v509 = vpop.f32.mrf.mxu0
        %v510 = vadd.f32 %v406, %v509
        %v511 = vpop.f32.mrf.mxu0
        %v512 = vadd.f32 %v410, %v511
        %v513 = vpop.f32.mrf.mxu0
        %v514 = vadd.f32 %v406, %v513
        %v515 = vpop.f32.mrf.mxu0
        %v516 = vadd.f32 %v410, %v515
        %517 = vmatprep.mubr.bf16.mxu0 0
        %518 = vmatmul.mubr.bf16.gmra.mxu0 %v437
        %v519 = vpop.f32.mrf.mxu0
        %v520 = vadd.f32 %v406, %v519
        %v521 = vpop.f32.mrf.mxu0
        %v522 = vadd.f32 %v410, %v521
        %v523 = vpop.f32.mrf.mxu0
        %v524 = vadd.f32 %v406, %v523
        %v525 = vpop.f32.mrf.mxu0
        %v526 = vadd.f32 %v410, %v525
        %527 = vmatprep.mubr.bf16.mxu0 0
        %528 = vmatmul.mubr.bf16.gmra.mxu0 %v440
        %v529 = vpop.f32.mrf.mxu0
        %v530 = vadd.f32 %v406, %v529
        %v531 = vpop.f32.mrf.mxu0
        %v532 = vadd.f32 %v410, %v531
        %v533 = vpop.f32.mrf.mxu0
        %v534 = vadd.f32 %v406, %v533
        %v535 = vpop.f32.mrf.mxu0
        %v536 = vadd.f32 %v410, %v535
        %537 = vmatprep.mubr.bf16.mxu0 0
        %538 = vmatmul.mubr.bf16.gmra.mxu0 %v443
        %v539 = vpop.f32.mrf.mxu0
        %v540 = vadd.f32 %v406, %v539
        %v541 = vpop.f32.mrf.mxu0
        %v542 = vadd.f32 %v410, %v541
        %v543 = vpop.f32.mrf.mxu0
        %v544 = vpop.f32.mrf.mxu0
        %545 = vdwg.mxu0
        %v546 = vmax.f32 %v480, 0.0
        %v547 = vmax.f32 %v482, 0.0
        %v548 = vmax.f32 %v484, 0.0
        %v549 = vmax.f32 %v486, 0.0
        %v550 = vmax.f32 %v490, 0.0
        %v551 = vmax.f32 %v492, 0.0
        %v552 = vmax.f32 %v494, 0.0
        %v553 = vmax.f32 %v496, 0.0
        %v554 = vmax.f32 %v500, 0.0
        %v555 = vmax.f32 %v502, 0.0
        %v556 = vmax.f32 %v504, 0.0
        %v557 = vmax.f32 %v506, 0.0
        %v558 = vmax.f32 %v510, 0.0
        %v559 = vmax.f32 %v512, 0.0
        %v560 = vmax.f32 %v514, 0.0
        %v561 = vmax.f32 %v516, 0.0
        %v562 = vmax.f32 %v520, 0.0
        %v563 = vmax.f32 %v522, 0.0
        %v564 = vmax.f32 %v524, 0.0
        %v565 = vmax.f32 %v526, 0.0
        %v566 = vmax.f32 %v530, 0.0
        %v567 = vmax.f32 %v532, 0.0
        %v568 = vmax.f32 %v534, 0.0
        %v569 = vmax.f32 %v536, 0.0
        %v570 = vmax.f32 %v540, 0.0
        %v571 = vmax.f32 %v542, 0.0
        %v572 = vpack.c.bf16 %v548, %v546
        %v573 = vpack.c.bf16 %v549, %v547
        %v574 = vpack.c.bf16 %v552, %v550
        %v575 = vpack.c.bf16 %v553, %v551
        %v576 = vpack.c.bf16 %v556, %v554
        %v577 = vpack.c.bf16 %v557, %v555
        %v578 = vpack.c.bf16 %v560, %v558
        %v579 = vpack.c.bf16 %v561, %v559
        %v580 = vpack.c.bf16 %v564, %v562
        %v581 = vpack.c.bf16 %v565, %v563
        %v582 = vpack.c.bf16 %v568, %v566
        %v583 = vpack.c.bf16 %v569, %v567
        %v584 = vpack.c.bf16 %v570, %v570
        %v585 = vpack.c.bf16 %v571, %v571
        %v586 = vld [vmem:[#allocation2] sm:$0xff]
        %v587 = vld [vmem:[#allocation2 + $0x8] sm:$0xff]
        %v588 = vld [vmem:[#allocation2 + $0x10] sm:$0xff]
        %v589 = vld [vmem:[#allocation2 + $0x18] sm:$0xff]
        %v590 = vld [vmem:[#allocation2 + $0x20] sm:$0xff]
        %v591 = vld [vmem:[#allocation2 + $0x28] sm:$0xff]
        %v592 = vld [vmem:[#allocation2 + $0x30] sm:$0xff]
        %v593 = vld [vmem:[#allocation2 + $0x38] sm:$0xff]
        %v594 = vld [vmem:[#allocation2 + $0x40] sm:$0xff]
        %v595 = vld [vmem:[#allocation2 + $0x48] sm:$0xff]
        %v596 = vld [vmem:[#allocation2 + $0x50] sm:$0xff]
        %v597 = vld [vmem:[#allocation2 + $0x58] sm:$0xff]
        %v598 = vld [vmem:[#allocation2 + $0x60] sm:$0xff]
        %v599 = vld [vmem:[#allocation2 + $0x68] sm:$0xff]
        %v600 = vld [vmem:[#allocation2 + $0x70] sm:$0xff]
        %v601 = vld [vmem:[#allocation2 + $0x78] sm:$0xff]
        %v602 = vld [vmem:[#allocation2 + $0x80] sm:$0xff]
        %v603 = vld [vmem:[#allocation2 + $0x88] sm:$0xff]
        %v604 = vld [vmem:[#allocation2 + $0x90] sm:$0xff]
        %v605 = vld [vmem:[#allocation2 + $0x98] sm:$0xff]
        %v606 = vld [vmem:[#allocation2 + $0xa0] sm:$0xff]
        %v607 = vld [vmem:[#allocation2 + $0xa8] sm:$0xff]
        %v608 = vld [vmem:[#allocation2 + $0xb0] sm:$0xff]
        %v609 = vld [vmem:[#allocation2 + $0xb8] sm:$0xff]
        %v610 = vld [vmem:[#allocation2 + $0xc0] sm:$0xff]
        %v611 = vld [vmem:[#allocation2 + $0xc8] sm:$0xff]
        %v612 = vld [vmem:[#allocation2 + $0xd0] sm:$0xff]
        %v613 = vld [vmem:[#allocation2 + $0xd8] sm:$0xff]
        %v614 = vld [vmem:[#allocation2 + $0xe0] sm:$0xff]
        %v615 = vld [vmem:[#allocation2 + $0xe8] sm:$0xff]
        %v616 = vld [vmem:[#allocation2 + $0xf0] sm:$0xff]
        %v617 = vld [vmem:[#allocation2 + $0xf8] sm:$0xff]
        %v618 = vld [vmem:[#allocation2 + $0x100] sm:$0xff]
        %v619 = vld [vmem:[#allocation2 + $0x108] sm:$0xff]
        %v620 = vld [vmem:[#allocation2 + $0x110] sm:$0xff]
        %v621 = vld [vmem:[#allocation2 + $0x118] sm:$0xff]
        %v622 = vld [vmem:[#allocation2 + $0x120] sm:$0xff]
        %v623 = vld [vmem:[#allocation2 + $0x128] sm:$0xff]
        %v624 = vld [vmem:[#allocation2 + $0x130] sm:$0xff]
        %v625 = vld [vmem:[#allocation2 + $0x138] sm:$0xff]
        %v626 = vld [vmem:[#allocation2 + $0x140] sm:$0xff]
        %v627 = vld [vmem:[#allocation2 + $0x148] sm:$0xff]
        %v628 = vld [vmem:[#allocation2 + $0x150] sm:$0xff]
        %v629 = vld [vmem:[#allocation2 + $0x158] sm:$0xff]
        %v630 = vld [vmem:[#allocation2 + $0x160] sm:$0xff]
        %v631 = vld [vmem:[#allocation2 + $0x168] sm:$0xff]
        %v632 = vld [vmem:[#allocation2 + $0x170] sm:$0xff]
        %v633 = vld [vmem:[#allocation2 + $0x178] sm:$0xff]
        %v634 = vld [vmem:[#allocation2 + $0x180] sm:$0xff]
        %v635 = vld [vmem:[#allocation2 + $0x188] sm:$0xff]
        %v636 = vld [vmem:[#allocation2 + $0x190] sm:$0xff]
        %v637 = vld [vmem:[#allocation2 + $0x198] sm:$0xff]
        %v638 = vld [vmem:[#allocation2 + $0x1a0] sm:$0xff]
        %v639 = vld [vmem:[#allocation2 + $0x1a8] sm:$0xff]
        %v640 = vld [vmem:[#allocation2 + $0x1b0] sm:$0xff]
        %v641 = vld [vmem:[#allocation2 + $0x1b8] sm:$0xff]
        %v642 = vld [vmem:[#allocation2 + $0x1c0] sm:$0xff]
        %v643 = vld [vmem:[#allocation2 + $0x1c8] sm:$0xff]
        %v644 = vld [vmem:[#allocation2 + $0x1d0] sm:$0xff]
        %v645 = vld [vmem:[#allocation2 + $0x1d8] sm:$0xff]
        %v646 = vld [vmem:[#allocation2 + $0x1e0] sm:$0xff]
        %v647 = vld [vmem:[#allocation2 + $0x1e8] sm:$0xff]
        %v648 = vld [vmem:[#allocation2 + $0x1f0] sm:$0xff]
        %v649 = vld [vmem:[#allocation2 + $0x1f8] sm:$0xff]
        %v650 = vld [vmem:[%s4] sm:$0xf]
        %v652 = vlaneseq
        %v653 = vshrl.u32 %v652, 7
        %v654 = vsub.s32 0, %v653
        %v655 = vrot.slane %v650, %v654
        %v656 = vlaneseq
        %v657 = vshrl.u32 %v656, 7
        %v658 = vsub.s32 1, %v657
        %v659 = vrot.slane %v650, %v658
        %v660 = vlaneseq
        %v661 = vshrl.u32 %v660, 7
        %v662 = vsub.s32 2, %v661
        %v663 = vrot.slane %v650, %v662
        %v664 = vlaneseq
        %v665 = vshrl.u32 %v664, 7
        %v666 = vsub.s32 3, %v665
        %v667 = vrot.slane %v650, %v666
        %v736 = vunpack.c.l.b16 %v586
        %v737 = vunpack.c.h.b16 %v586
        %v738 = vunpack.c.l.b16 %v587
        %v739 = vunpack.c.h.b16 %v587
        %v740 = vunpack.c.l.b16 %v588
        %v741 = vunpack.c.h.b16 %v588
        %v742 = vunpack.c.l.b16 %v589
        %v743 = vunpack.c.h.b16 %v589
        %v744 = vunpack.c.l.b16 %v590
        %v745 = vunpack.c.h.b16 %v590
        %v746 = vunpack.c.l.b16 %v591
        %v747 = vunpack.c.h.b16 %v591
        %v748 = vunpack.c.l.b16 %v592
        %v749 = vunpack.c.h.b16 %v592
        %v750 = vunpack.c.l.b16 %v593
        %v751 = vunpack.c.h.b16 %v593
        %v752 = vunpack.c.l.b16 %v594
        %v753 = vunpack.c.h.b16 %v594
        %v754 = vunpack.c.l.b16 %v595
        %v755 = vunpack.c.h.b16 %v595
        %v756 = vunpack.c.l.b16 %v596
        %v757 = vunpack.c.h.b16 %v596
        %v758 = vunpack.c.l.b16 %v597
        %v759 = vunpack.c.h.b16 %v597
        %v760 = vunpack.c.l.b16 %v598
        %v761 = vunpack.c.h.b16 %v598
        %v762 = vunpack.c.l.b16 %v599
        %v763 = vunpack.c.h.b16 %v599
        %v764 = vunpack.c.l.b16 %v600
        %v765 = vunpack.c.h.b16 %v600
        %v766 = vunpack.c.l.b16 %v601
        %v767 = vunpack.c.h.b16 %v601
        %v768 = vunpack.c.l.b16 %v602
        %v769 = vunpack.c.h.b16 %v602
        %v770 = vunpack.c.l.b16 %v603
        %v771 = vunpack.c.h.b16 %v603
        %v772 = vunpack.c.l.b16 %v604
        %v773 = vunpack.c.h.b16 %v604
        %v774 = vunpack.c.l.b16 %v605
        %v775 = vunpack.c.h.b16 %v605
        %v776 = vunpack.c.l.b16 %v606
        %v777 = vunpack.c.h.b16 %v606
        %v778 = vunpack.c.l.b16 %v607
        %v779 = vunpack.c.h.b16 %v607
        %v780 = vunpack.c.l.b16 %v608
        %v781 = vunpack.c.h.b16 %v608
        %v782 = vunpack.c.l.b16 %v609
        %v783 = vunpack.c.h.b16 %v609
        %v784 = vunpack.c.l.b16 %v610
        %v785 = vunpack.c.h.b16 %v610
        %v786 = vunpack.c.l.b16 %v611
        %v787 = vunpack.c.h.b16 %v611
        %v788 = vunpack.c.l.b16 %v612
        %v789 = vunpack.c.h.b16 %v612
        %v790 = vunpack.c.l.b16 %v613
        %v791 = vunpack.c.h.b16 %v613
        %v792 = vunpack.c.l.b16 %v614
        %v793 = vunpack.c.h.b16 %v614
        %v794 = vunpack.c.l.b16 %v615
        %v795 = vunpack.c.h.b16 %v615
        %v796 = vunpack.c.l.b16 %v616
        %v797 = vunpack.c.h.b16 %v616
        %v798 = vunpack.c.l.b16 %v617
        %v799 = vunpack.c.h.b16 %v617
        %v800 = vunpack.c.l.b16 %v618
        %v801 = vunpack.c.h.b16 %v618
        %v802 = vunpack.c.l.b16 %v619
        %v803 = vunpack.c.h.b16 %v619
        %v804 = vunpack.c.l.b16 %v620
        %v805 = vunpack.c.h.b16 %v620
        %v806 = vunpack.c.l.b16 %v621
        %v807 = vunpack.c.h.b16 %v621
        %v808 = vunpack.c.l.b16 %v622
        %v809 = vunpack.c.h.b16 %v622
        %v810 = vunpack.c.l.b16 %v623
        %v811 = vunpack.c.h.b16 %v623
        %v812 = vunpack.c.l.b16 %v624
        %v813 = vunpack.c.h.b16 %v624
        %v814 = vunpack.c.l.b16 %v625
        %v815 = vunpack.c.h.b16 %v625
        %v816 = vunpack.c.l.b16 %v626
        %v817 = vunpack.c.h.b16 %v626
        %v818 = vunpack.c.l.b16 %v627
        %v819 = vunpack.c.h.b16 %v627
        %v820 = vunpack.c.l.b16 %v628
        %v821 = vunpack.c.h.b16 %v628
        %v822 = vunpack.c.l.b16 %v629
        %v823 = vunpack.c.h.b16 %v629
        %v824 = vunpack.c.l.b16 %v630
        %v825 = vunpack.c.h.b16 %v630
        %v826 = vunpack.c.l.b16 %v631
        %v827 = vunpack.c.h.b16 %v631
        %v828 = vunpack.c.l.b16 %v632
        %v829 = vunpack.c.h.b16 %v632
        %v830 = vunpack.c.l.b16 %v633
        %v831 = vunpack.c.h.b16 %v633
        %v832 = vunpack.c.l.b16 %v634
        %v833 = vunpack.c.h.b16 %v634
        %v834 = vunpack.c.l.b16 %v635
        %v835 = vunpack.c.h.b16 %v635
        %v836 = vunpack.c.l.b16 %v636
        %v837 = vunpack.c.h.b16 %v636
        %v838 = vunpack.c.l.b16 %v637
        %v839 = vunpack.c.h.b16 %v637
        %v840 = vunpack.c.l.b16 %v638
        %v841 = vunpack.c.h.b16 %v638
        %v842 = vunpack.c.l.b16 %v639
        %v843 = vunpack.c.h.b16 %v639
        %v844 = vunpack.c.l.b16 %v640
        %v845 = vunpack.c.h.b16 %v640
        %v846 = vunpack.c.l.b16 %v641
        %v847 = vunpack.c.h.b16 %v641
        %v848 = vunpack.c.l.b16 %v642
        %v849 = vunpack.c.h.b16 %v642
        %v850 = vunpack.c.l.b16 %v643
        %v851 = vunpack.c.h.b16 %v643
        %v852 = vunpack.c.l.b16 %v644
        %v853 = vunpack.c.h.b16 %v644
        %v854 = vunpack.c.l.b16 %v645
        %v855 = vunpack.c.h.b16 %v645
        %v856 = vunpack.c.l.b16 %v646
        %v857 = vunpack.c.h.b16 %v646
        %v858 = vunpack.c.l.b16 %v647
        %v859 = vunpack.c.h.b16 %v647
        %v860 = vunpack.c.l.b16 %v648
        %v861 = vunpack.c.h.b16 %v648
        %v862 = vunpack.c.l.b16 %v649
        %v863 = vunpack.c.h.b16 %v649
        %v864 = vpack.c.b16 %v740, %v736
        %v865 = vpack.c.b16 %v741, %v737
        %v866 = vpack.c.b16 %v742, %v738
        %v867 = vpack.c.b16 %v743, %v739
        %v868 = vpack.c.b16 %v748, %v744
        %v869 = vpack.c.b16 %v749, %v745
        %v870 = vpack.c.b16 %v750, %v746
        %v871 = vpack.c.b16 %v751, %v747
        %v872 = vpack.c.b16 %v756, %v752
        %v873 = vpack.c.b16 %v757, %v753
        %v874 = vpack.c.b16 %v758, %v754
        %v875 = vpack.c.b16 %v759, %v755
        %v876 = vpack.c.b16 %v764, %v760
        %v877 = vpack.c.b16 %v765, %v761
        %v878 = vpack.c.b16 %v766, %v762
        %v879 = vpack.c.b16 %v767, %v763
        %v880 = vpack.c.b16 %v772, %v768
        %v881 = vpack.c.b16 %v773, %v769
        %v882 = vpack.c.b16 %v774, %v770
        %v883 = vpack.c.b16 %v775, %v771
        %v884 = vpack.c.b16 %v780, %v776
        %v885 = vpack.c.b16 %v781, %v777
        %v886 = vpack.c.b16 %v782, %v778
        %v887 = vpack.c.b16 %v783, %v779
        %v888 = vpack.c.b16 %v788, %v784
        %v889 = vpack.c.b16 %v789, %v785
        %v890 = vpack.c.b16 %v790, %v786
        %v891 = vpack.c.b16 %v791, %v787
        %v892 = vpack.c.b16 %v796, %v792
        %v893 = vpack.c.b16 %v797, %v793
        %v894 = vpack.c.b16 %v798, %v794
        %v895 = vpack.c.b16 %v799, %v795
        %v896 = vpack.c.b16 %v804, %v800
        %v897 = vpack.c.b16 %v805, %v801
        %v898 = vpack.c.b16 %v806, %v802
        %v899 = vpack.c.b16 %v807, %v803
        %v900 = vpack.c.b16 %v812, %v808
        %v901 = vpack.c.b16 %v813, %v809
        %v902 = vpack.c.b16 %v814, %v810
        %v903 = vpack.c.b16 %v815, %v811
        %v904 = vpack.c.b16 %v820, %v816
        %v905 = vpack.c.b16 %v821, %v817
        %v906 = vpack.c.b16 %v822, %v818
        %v907 = vpack.c.b16 %v823, %v819
        %v908 = vpack.c.b16 %v828, %v824
        %v909 = vpack.c.b16 %v829, %v825
        %v910 = vpack.c.b16 %v830, %v826
        %v911 = vpack.c.b16 %v831, %v827
        %v912 = vpack.c.b16 %v836, %v832
        %v913 = vpack.c.b16 %v837, %v833
        %v914 = vpack.c.b16 %v838, %v834
        %v915 = vpack.c.b16 %v839, %v835
        %v916 = vpack.c.b16 %v844, %v840
        %v917 = vpack.c.b16 %v845, %v841
        %v918 = vpack.c.b16 %v846, %v842
        %v919 = vpack.c.b16 %v847, %v843
        %v920 = vpack.c.b16 %v852, %v848
        %v921 = vpack.c.b16 %v853, %v849
        %v922 = vpack.c.b16 %v854, %v850
        %v923 = vpack.c.b16 %v855, %v851
        %v924 = vpack.c.b16 %v860, %v856
        %v925 = vpack.c.b16 %v861, %v857
        %v926 = vpack.c.b16 %v862, %v858
        %v927 = vpack.c.b16 %v863, %v859
        %992 = vmatprep.subr.bf16.mxu0 %v893
        %993 = vmatpush1.bf16.msra.mxu0 %v892
        %994 = vmatprep.subr.bf16.mxu0 %v889
        %995 = vmatpush1.bf16.msra.mxu0 %v888
        %996 = vmatprep.subr.bf16.mxu0 %v885
        %997 = vmatpush1.bf16.msra.mxu0 %v884
        %998 = vmatprep.subr.bf16.mxu0 %v881
        %999 = vmatpush1.bf16.msra.mxu0 %v880
        %1000 = vmatprep.subr.bf16.mxu0 %v877
        %1001 = vmatpush1.bf16.msra.mxu0 %v876
        %1002 = vmatprep.subr.bf16.mxu0 %v873
        %1003 = vmatpush1.bf16.msra.mxu0 %v872
        %1004 = vmatprep.subr.bf16.mxu0 %v869
        %1005 = vmatpush1.bf16.msra.mxu0 %v868
        %1006 = vmatprep.subr.bf16.mxu0 %v865
        %1007 = vmatpush1.bf16.msra.mxu0 %v864
        %1008 = vmatprep.subr.bf16.mxu0 %v925
        %1009 = vmatpush2.bf16.msra.mxu0 %v924
        %1010 = vmatprep.subr.bf16.mxu0 %v921
        %1011 = vmatpush2.bf16.msra.mxu0 %v920
        %1012 = vmatprep.subr.bf16.mxu0 %v917
        %1013 = vmatpush2.bf16.msra.mxu0 %v916
        %1014 = vmatprep.subr.bf16.mxu0 %v913
        %1015 = vmatpush2.bf16.msra.mxu0 %v912
        %1016 = vmatprep.subr.bf16.mxu0 %v909
        %1017 = vmatpush2.bf16.msra.mxu0 %v908
        %1018 = vmatprep.subr.bf16.mxu0 %v905
        %1019 = vmatpush2.bf16.msra.mxu0 %v904
        %1020 = vmatprep.subr.bf16.mxu0 %v901
        %1021 = vmatpush2.bf16.msra.mxu0 %v900
        %1022 = vmatprep.subr.bf16.mxu0 %v897
        %1023 = vmatpush2.bf16.msra.mxu0 %v896
        %1024 = vmatprep.mubr.bf16.mxu0 %v573
        %1025 = vmatmul.mubr.bf16.gmra.mxu0 %v572
        %v1026 = vpop.f32.mrf.mxu0
        %v1027 = vadd.f32 %v655, %v1026
        %v1028 = vpop.f32.mrf.mxu0
        %v1029 = vadd.f32 %v659, %v1028
        %v1030 = vpop.f32.mrf.mxu0
        %v1031 = vadd.f32 %v655, %v1030
        %v1032 = vpop.f32.mrf.mxu0
        %v1033 = vadd.f32 %v659, %v1032
        %1034 = vmatprep.mubr.bf16.mxu0 %v575
        %1035 = vmatmul.mubr.bf16.gmra.mxu0 %v574
        %v1036 = vpop.f32.mrf.mxu0
        %v1037 = vadd.f32 %v655, %v1036
        %v1038 = vpop.f32.mrf.mxu0
        %v1039 = vadd.f32 %v659, %v1038
        %v1040 = vpop.f32.mrf.mxu0
        %v1041 = vadd.f32 %v655, %v1040
        %v1042 = vpop.f32.mrf.mxu0
        %v1043 = vadd.f32 %v659, %v1042
        %1044 = vmatprep.mubr.bf16.mxu0 %v577
        %1045 = vmatmul.mubr.bf16.gmra.mxu0 %v576
        %v1046 = vpop.f32.mrf.mxu0
        %v1047 = vadd.f32 %v655, %v1046
        %v1048 = vpop.f32.mrf.mxu0
        %v1049 = vadd.f32 %v659, %v1048
        %v1050 = vpop.f32.mrf.mxu0
        %v1051 = vadd.f32 %v655, %v1050
        %v1052 = vpop.f32.mrf.mxu0
        %v1053 = vadd.f32 %v659, %v1052
        %1054 = vmatprep.mubr.bf16.mxu0 %v579
        %1055 = vmatmul.mubr.bf16.gmra.mxu0 %v578
        %v1056 = vpop.f32.mrf.mxu0
        %v1057 = vadd.f32 %v655, %v1056
        %v1058 = vpop.f32.mrf.mxu0
        %v1059 = vadd.f32 %v659, %v1058
        %v1060 = vpop.f32.mrf.mxu0
        %v1061 = vadd.f32 %v655, %v1060
        %v1062 = vpop.f32.mrf.mxu0
        %v1063 = vadd.f32 %v659, %v1062
        %1064 = vmatprep.mubr.bf16.mxu0 %v581
        %1065 = vmatmul.mubr.bf16.gmra.mxu0 %v580
        %v1066 = vpop.f32.mrf.mxu0
        %v1067 = vadd.f32 %v655, %v1066
        %v1068 = vpop.f32.mrf.mxu0
        %v1069 = vadd.f32 %v659, %v1068
        %v1070 = vpop.f32.mrf.mxu0
        %v1071 = vadd.f32 %v655, %v1070
        %v1072 = vpop.f32.mrf.mxu0
        %v1073 = vadd.f32 %v659, %v1072
        %1074 = vmatprep.mubr.bf16.mxu0 %v583
        %1075 = vmatmul.mubr.bf16.gmra.mxu0 %v582
        %v1076 = vpop.f32.mrf.mxu0
        %v1077 = vadd.f32 %v655, %v1076
        %v1078 = vpop.f32.mrf.mxu0
        %v1079 = vadd.f32 %v659, %v1078
        %v1080 = vpop.f32.mrf.mxu0
        %v1081 = vadd.f32 %v655, %v1080
        %v1082 = vpop.f32.mrf.mxu0
        %v1083 = vadd.f32 %v659, %v1082
        %1084 = vmatprep.mubr.bf16.mxu0 %v585
        %1085 = vmatmul.mubr.bf16.gmra.mxu0 %v584
        %v1086 = vpop.f32.mrf.mxu0
        %v1087 = vadd.f32 %v655, %v1086
        %v1088 = vpop.f32.mrf.mxu0
        %v1089 = vadd.f32 %v659, %v1088
        %v1090 = vpop.f32.mrf.mxu0
        %v1091 = vpop.f32.mrf.mxu0
        %1092 = vdwg.mxu0
        %1093 = vmatprep.subr.bf16.mxu0 %v895
        %1094 = vmatpush1.bf16.msra.mxu0 %v894
        %1095 = vmatprep.subr.bf16.mxu0 %v891
        %1096 = vmatpush1.bf16.msra.mxu0 %v890
        %1097 = vmatprep.subr.bf16.mxu0 %v887
        %1098 = vmatpush1.bf16.msra.mxu0 %v886
        %1099 = vmatprep.subr.bf16.mxu0 %v883
        %1100 = vmatpush1.bf16.msra.mxu0 %v882
        %1101 = vmatprep.subr.bf16.mxu0 %v879
        %1102 = vmatpush1.bf16.msra.mxu0 %v878
        %1103 = vmatprep.subr.bf16.mxu0 %v875
        %1104 = vmatpush1.bf16.msra.mxu0 %v874
        %1105 = vmatprep.subr.bf16.mxu0 %v871
        %1106 = vmatpush1.bf16.msra.mxu0 %v870
        %1107 = vmatprep.subr.bf16.mxu0 %v867
        %1108 = vmatpush1.bf16.msra.mxu0 %v866
        %1109 = vmatprep.subr.bf16.mxu0 %v927
        %1110 = vmatpush2.bf16.msra.mxu0 %v926
        %1111 = vmatprep.subr.bf16.mxu0 %v923
        %1112 = vmatpush2.bf16.msra.mxu0 %v922
        %1113 = vmatprep.subr.bf16.mxu0 %v919
        %1114 = vmatpush2.bf16.msra.mxu0 %v918
        %1115 = vmatprep.subr.bf16.mxu0 %v915
        %1116 = vmatpush2.bf16.msra.mxu0 %v914
        %1117 = vmatprep.subr.bf16.mxu0 %v911
        %1118 = vmatpush2.bf16.msra.mxu0 %v910
        %1119 = vmatprep.subr.bf16.mxu0 %v907
        %1120 = vmatpush2.bf16.msra.mxu0 %v906
        %1121 = vmatprep.subr.bf16.mxu0 %v903
        %1122 = vmatpush2.bf16.msra.mxu0 %v902
        %1123 = vmatprep.subr.bf16.mxu0 %v899
        %1124 = vmatpush2.bf16.msra.mxu0 %v898
        %1125 = vmatprep.mubr.bf16.mxu0 %v573
        %1126 = vmatmul.mubr.bf16.gmra.mxu0 %v572
        %v1127 = vpop.f32.mrf.mxu0
        %v1128 = vadd.f32 %v663, %v1127
        %v1129 = vpop.f32.mrf.mxu0
        %v1130 = vadd.f32 %v667, %v1129
        %v1131 = vpop.f32.mrf.mxu0
        %v1132 = vadd.f32 %v663, %v1131
        %v1133 = vpop.f32.mrf.mxu0
        %v1134 = vadd.f32 %v667, %v1133
        %1135 = vmatprep.mubr.bf16.mxu0 %v575
        %1136 = vmatmul.mubr.bf16.gmra.mxu0 %v574
        %v1137 = vpop.f32.mrf.mxu0
        %v1138 = vadd.f32 %v663, %v1137
        %v1139 = vpop.f32.mrf.mxu0
        %v1140 = vadd.f32 %v667, %v1139
        %v1141 = vpop.f32.mrf.mxu0
        %v1142 = vadd.f32 %v663, %v1141
        %v1143 = vpop.f32.mrf.mxu0
        %v1144 = vadd.f32 %v667, %v1143
        %1145 = vmatprep.mubr.bf16.mxu0 %v577
        %1146 = vmatmul.mubr.bf16.gmra.mxu0 %v576
        %v1147 = vpop.f32.mrf.mxu0
        %v1148 = vadd.f32 %v663, %v1147
        %v1149 = vpop.f32.mrf.mxu0
        %v1150 = vadd.f32 %v667, %v1149
        %v1151 = vpop.f32.mrf.mxu0
        %v1152 = vadd.f32 %v663, %v1151
        %v1153 = vpop.f32.mrf.mxu0
        %v1154 = vadd.f32 %v667, %v1153
        %1155 = vmatprep.mubr.bf16.mxu0 %v579
        %1156 = vmatmul.mubr.bf16.gmra.mxu0 %v578
        %v1157 = vpop.f32.mrf.mxu0
        %v1158 = vadd.f32 %v663, %v1157
        %v1159 = vpop.f32.mrf.mxu0
        %v1160 = vadd.f32 %v667, %v1159
        %v1161 = vpop.f32.mrf.mxu0
        %v1162 = vadd.f32 %v663, %v1161
        %v1163 = vpop.f32.mrf.mxu0
        %v1164 = vadd.f32 %v667, %v1163
        %1165 = vmatprep.mubr.bf16.mxu0 %v581
        %1166 = vmatmul.mubr.bf16.gmra.mxu0 %v580
        %v1167 = vpop.f32.mrf.mxu0
        %v1168 = vadd.f32 %v663, %v1167
        %v1169 = vpop.f32.mrf.mxu0
        %v1170 = vadd.f32 %v667, %v1169
        %v1171 = vpop.f32.mrf.mxu0
        %v1172 = vadd.f32 %v663, %v1171
        %v1173 = vpop.f32.mrf.mxu0
        %v1174 = vadd.f32 %v667, %v1173
        %1175 = vmatprep.mubr.bf16.mxu0 %v583
        %1176 = vmatmul.mubr.bf16.gmra.mxu0 %v582
        %v1177 = vpop.f32.mrf.mxu0
        %v1178 = vadd.f32 %v663, %v1177
        %v1179 = vpop.f32.mrf.mxu0
        %v1180 = vadd.f32 %v667, %v1179
        %v1181 = vpop.f32.mrf.mxu0
        %v1182 = vadd.f32 %v663, %v1181
        %v1183 = vpop.f32.mrf.mxu0
        %v1184 = vadd.f32 %v667, %v1183
        %1185 = vmatprep.mubr.bf16.mxu0 %v585
        %1186 = vmatmul.mubr.bf16.gmra.mxu0 %v584
        %v1187 = vpop.f32.mrf.mxu0
        %v1188 = vadd.f32 %v663, %v1187
        %v1189 = vpop.f32.mrf.mxu0
        %v1190 = vadd.f32 %v667, %v1189
        %v1191 = vpop.f32.mrf.mxu0
        %v1192 = vpop.f32.mrf.mxu0
        %1193 = vdwg.mxu0
        %v1194 = vmax.f32 %v1027, 0.0
        %v1195 = vmax.f32 %v1029, 0.0
        %v1196 = vmax.f32 %v1128, 0.0
        %v1197 = vmax.f32 %v1130, 0.0
        %v1198 = vmax.f32 %v1031, 0.0
        %v1199 = vmax.f32 %v1033, 0.0
        %v1200 = vmax.f32 %v1132, 0.0
        %v1201 = vmax.f32 %v1134, 0.0
        %v1202 = vmax.f32 %v1037, 0.0
        %v1203 = vmax.f32 %v1039, 0.0
        %v1204 = vmax.f32 %v1138, 0.0
        %v1205 = vmax.f32 %v1140, 0.0
        %v1206 = vmax.f32 %v1041, 0.0
        %v1207 = vmax.f32 %v1043, 0.0
        %v1208 = vmax.f32 %v1142, 0.0
        %v1209 = vmax.f32 %v1144, 0.0
        %v1210 = vmax.f32 %v1047, 0.0
        %v1211 = vmax.f32 %v1049, 0.0
        %v1212 = vmax.f32 %v1148, 0.0
        %v1213 = vmax.f32 %v1150, 0.0
        %v1214 = vmax.f32 %v1051, 0.0
        %v1215 = vmax.f32 %v1053, 0.0
        %v1216 = vmax.f32 %v1152, 0.0
        %v1217 = vmax.f32 %v1154, 0.0
        %v1218 = vmax.f32 %v1057, 0.0
        %v1219 = vmax.f32 %v1059, 0.0
        %v1220 = vmax.f32 %v1158, 0.0
        %v1221 = vmax.f32 %v1160, 0.0
        %v1222 = vmax.f32 %v1061, 0.0
        %v1223 = vmax.f32 %v1063, 0.0
        %v1224 = vmax.f32 %v1162, 0.0
        %v1225 = vmax.f32 %v1164, 0.0
        %v1226 = vmax.f32 %v1067, 0.0
        %v1227 = vmax.f32 %v1069, 0.0
        %v1228 = vmax.f32 %v1168, 0.0
        %v1229 = vmax.f32 %v1170, 0.0
        %v1230 = vmax.f32 %v1071, 0.0
        %v1231 = vmax.f32 %v1073, 0.0
        %v1232 = vmax.f32 %v1172, 0.0
        %v1233 = vmax.f32 %v1174, 0.0
        %v1234 = vmax.f32 %v1077, 0.0
        %v1235 = vmax.f32 %v1079, 0.0
        %v1236 = vmax.f32 %v1178, 0.0
        %v1237 = vmax.f32 %v1180, 0.0
        %v1238 = vmax.f32 %v1081, 0.0
        %v1239 = vmax.f32 %v1083, 0.0
        %v1240 = vmax.f32 %v1182, 0.0
        %v1241 = vmax.f32 %v1184, 0.0
        %v1242 = vmax.f32 %v1087, 0.0
        %v1243 = vmax.f32 %v1089, 0.0
        %v1244 = vmax.f32 %v1188, 0.0
        %v1245 = vmax.f32 %v1190, 0.0
        %v1246 = vpack.c.bf16 %v1198, %v1194
        %v1247 = vpack.c.bf16 %v1199, %v1195
        %v1248 = vpack.c.bf16 %v1200, %v1196
        %v1249 = vpack.c.bf16 %v1201, %v1197
        %v1250 = vpack.c.bf16 %v1206, %v1202
        %v1251 = vpack.c.bf16 %v1207, %v1203
        %v1252 = vpack.c.bf16 %v1208, %v1204
        %v1253 = vpack.c.bf16 %v1209, %v1205
        %v1254 = vpack.c.bf16 %v1214, %v1210
        %v1255 = vpack.c.bf16 %v1215, %v1211
        %v1256 = vpack.c.bf16 %v1216, %v1212
        %v1257 = vpack.c.bf16 %v1217, %v1213
        %v1258 = vpack.c.bf16 %v1222, %v1218
        %v1259 = vpack.c.bf16 %v1223, %v1219
        %v1260 = vpack.c.bf16 %v1224, %v1220
        %v1261 = vpack.c.bf16 %v1225, %v1221
        %v1262 = vpack.c.bf16 %v1230, %v1226
        %v1263 = vpack.c.bf16 %v1231, %v1227
        %v1264 = vpack.c.bf16 %v1232, %v1228
        %v1265 = vpack.c.bf16 %v1233, %v1229
        %v1266 = vpack.c.bf16 %v1238, %v1234
        %v1267 = vpack.c.bf16 %v1239, %v1235
        %v1268 = vpack.c.bf16 %v1240, %v1236
        %v1269 = vpack.c.bf16 %v1241, %v1237
        %v1270 = vpack.c.bf16 %v1242, %v1242
        %v1271 = vpack.c.bf16 %v1243, %v1243
        %v1272 = vpack.c.bf16 %v1244, %v1244
        %v1273 = vpack.c.bf16 %v1245, %v1245
        %v1274 = vld [vmem:[#allocation5] sm:$0xff]
        %v1275 = vld [vmem:[#allocation5 + $0x8] sm:$0xff]
        %v1276 = vld [vmem:[#allocation5 + $0x10] sm:$0xff]
        %v1277 = vld [vmem:[#allocation5 + $0x18] sm:$0xff]
        %v1278 = vld [vmem:[#allocation5 + $0x20] sm:$0xff]
        %v1279 = vld [vmem:[#allocation5 + $0x28] sm:$0xff]
        %v1280 = vld [vmem:[#allocation5 + $0x30] sm:$0xff]
        %v1281 = vld [vmem:[#allocation5 + $0x38] sm:$0xff]
        %v1282 = vld [vmem:[#allocation5 + $0x40] sm:$0xff]
        %v1283 = vld [vmem:[#allocation5 + $0x48] sm:$0xff]
        %v1284 = vld [vmem:[#allocation5 + $0x50] sm:$0xff]
        %v1285 = vld [vmem:[#allocation5 + $0x58] sm:$0xff]
        %v1286 = vld [vmem:[#allocation5 + $0x60] sm:$0xff]
        %v1287 = vld [vmem:[#allocation5 + $0x68] sm:$0xff]
        %v1288 = vld [vmem:[#allocation5 + $0x70] sm:$0xff]
        %v1289 = vld [vmem:[#allocation5 + $0x78] sm:$0xff]
        %v1290 = vld [vmem:[#allocation5 + $0x80] sm:$0xff]
        %v1291 = vld [vmem:[#allocation5 + $0x88] sm:$0xff]
        %v1292 = vld [vmem:[#allocation5 + $0x90] sm:$0xff]
        %v1293 = vld [vmem:[#allocation5 + $0x98] sm:$0xff]
        %v1294 = vld [vmem:[#allocation5 + $0xa0] sm:$0xff]
        %v1295 = vld [vmem:[#allocation5 + $0xa8] sm:$0xff]
        %v1296 = vld [vmem:[#allocation5 + $0xb0] sm:$0xff]
        %v1297 = vld [vmem:[#allocation5 + $0xb8] sm:$0xff]
        %v1298 = vld [vmem:[#allocation5 + $0xc0] sm:$0xff]
        %v1299 = vld [vmem:[#allocation5 + $0xc8] sm:$0xff]
        %v1300 = vld [vmem:[#allocation5 + $0xd0] sm:$0xff]
        %v1301 = vld [vmem:[#allocation5 + $0xd8] sm:$0xff]
        %v1302 = vld [vmem:[#allocation5 + $0xe0] sm:$0xff]
        %v1303 = vld [vmem:[#allocation5 + $0xe8] sm:$0xff]
        %v1304 = vld [vmem:[#allocation5 + $0xf0] sm:$0xff]
        %v1305 = vld [vmem:[#allocation5 + $0xf8] sm:$0xff]
        %v1306 = vld [vmem:[#allocation5 + $0x100] sm:$0xff]
        %v1307 = vld [vmem:[#allocation5 + $0x108] sm:$0xff]
        %v1308 = vld [vmem:[#allocation5 + $0x110] sm:$0xff]
        %v1309 = vld [vmem:[#allocation5 + $0x118] sm:$0xff]
        %v1310 = vld [vmem:[#allocation5 + $0x120] sm:$0xff]
        %v1311 = vld [vmem:[#allocation5 + $0x128] sm:$0xff]
        %v1312 = vld [vmem:[#allocation5 + $0x130] sm:$0xff]
        %v1313 = vld [vmem:[#allocation5 + $0x138] sm:$0xff]
        %v1314 = vld [vmem:[#allocation5 + $0x140] sm:$0xff]
        %v1315 = vld [vmem:[#allocation5 + $0x148] sm:$0xff]
        %v1316 = vld [vmem:[#allocation5 + $0x150] sm:$0xff]
        %v1317 = vld [vmem:[#allocation5 + $0x158] sm:$0xff]
        %v1318 = vld [vmem:[#allocation5 + $0x160] sm:$0xff]
        %v1319 = vld [vmem:[#allocation5 + $0x168] sm:$0xff]
        %v1320 = vld [vmem:[#allocation5 + $0x170] sm:$0xff]
        %v1321 = vld [vmem:[#allocation5 + $0x178] sm:$0xff]
        %v1322 = vld [vmem:[#allocation5 + $0x180] sm:$0xff]
        %v1323 = vld [vmem:[#allocation5 + $0x188] sm:$0xff]
        %v1324 = vld [vmem:[#allocation5 + $0x190] sm:$0xff]
        %v1325 = vld [vmem:[#allocation5 + $0x198] sm:$0xff]
        %v1326 = vld [vmem:[#allocation5 + $0x1a0] sm:$0xff]
        %v1327 = vld [vmem:[#allocation5 + $0x1a8] sm:$0xff]
        %v1328 = vld [vmem:[#allocation5 + $0x1b0] sm:$0xff]
        %v1329 = vld [vmem:[#allocation5 + $0x1b8] sm:$0xff]
        %v1330 = vld [vmem:[#allocation5 + $0x1c0] sm:$0xff]
        %v1331 = vld [vmem:[#allocation5 + $0x1c8] sm:$0xff]
        %v1332 = vld [vmem:[#allocation5 + $0x1d0] sm:$0xff]
        %v1333 = vld [vmem:[#allocation5 + $0x1d8] sm:$0xff]
        %v1334 = vld [vmem:[#allocation5 + $0x1e0] sm:$0xff]
        %v1335 = vld [vmem:[#allocation5 + $0x1e8] sm:$0xff]
        %v1336 = vld [vmem:[#allocation5 + $0x1f0] sm:$0xff]
        %v1337 = vld [vmem:[#allocation5 + $0x1f8] sm:$0xff]
        %v1338 = vld [vmem:[%s6] sm:$0x3]
        %v1340 = vlaneseq
        %v1341 = vshrl.u32 %v1340, 7
        %v1342 = vsub.s32 0, %v1341
        %v1343 = vrot.slane %v1338, %v1342
        %v1344 = vlaneseq
        %v1345 = vshrl.u32 %v1344, 7
        %v1346 = vsub.s32 1, %v1345
        %v1347 = vrot.slane %v1338, %v1346
        %v1414 = vunpack.c.l.b16 %v1274
        %v1415 = vunpack.c.h.b16 %v1274
        %v1416 = vunpack.c.l.b16 %v1275
        %v1417 = vunpack.c.h.b16 %v1275
        %v1418 = vunpack.c.l.b16 %v1276
        %v1419 = vunpack.c.h.b16 %v1276
        %v1420 = vunpack.c.l.b16 %v1277
        %v1421 = vunpack.c.h.b16 %v1277
        %v1422 = vunpack.c.l.b16 %v1278
        %v1423 = vunpack.c.h.b16 %v1278
        %v1424 = vunpack.c.l.b16 %v1279
        %v1425 = vunpack.c.h.b16 %v1279
        %v1426 = vunpack.c.l.b16 %v1280
        %v1427 = vunpack.c.h.b16 %v1280
        %v1428 = vunpack.c.l.b16 %v1281
        %v1429 = vunpack.c.h.b16 %v1281
        %v1430 = vunpack.c.l.b16 %v1282
        %v1431 = vunpack.c.h.b16 %v1282
        %v1432 = vunpack.c.l.b16 %v1283
        %v1433 = vunpack.c.h.b16 %v1283
        %v1434 = vunpack.c.l.b16 %v1284
        %v1435 = vunpack.c.h.b16 %v1284
        %v1436 = vunpack.c.l.b16 %v1285
        %v1437 = vunpack.c.h.b16 %v1285
        %v1438 = vunpack.c.l.b16 %v1286
        %v1439 = vunpack.c.h.b16 %v1286
        %v1440 = vunpack.c.l.b16 %v1287
        %v1441 = vunpack.c.h.b16 %v1287
        %v1442 = vunpack.c.l.b16 %v1288
        %v1443 = vunpack.c.h.b16 %v1288
        %v1444 = vunpack.c.l.b16 %v1289
        %v1445 = vunpack.c.h.b16 %v1289
        %v1446 = vunpack.c.l.b16 %v1290
        %v1447 = vunpack.c.h.b16 %v1290
        %v1448 = vunpack.c.l.b16 %v1291
        %v1449 = vunpack.c.h.b16 %v1291
        %v1450 = vunpack.c.l.b16 %v1292
        %v1451 = vunpack.c.h.b16 %v1292
        %v1452 = vunpack.c.l.b16 %v1293
        %v1453 = vunpack.c.h.b16 %v1293
        %v1454 = vunpack.c.l.b16 %v1294
        %v1455 = vunpack.c.h.b16 %v1294
        %v1456 = vunpack.c.l.b16 %v1295
        %v1457 = vunpack.c.h.b16 %v1295
        %v1458 = vunpack.c.l.b16 %v1296
        %v1459 = vunpack.c.h.b16 %v1296
        %v1460 = vunpack.c.l.b16 %v1297
        %v1461 = vunpack.c.h.b16 %v1297
        %v1462 = vunpack.c.l.b16 %v1298
        %v1463 = vunpack.c.h.b16 %v1298
        %v1464 = vunpack.c.l.b16 %v1299
        %v1465 = vunpack.c.h.b16 %v1299
        %v1466 = vunpack.c.l.b16 %v1300
        %v1467 = vunpack.c.h.b16 %v1300
        %v1468 = vunpack.c.l.b16 %v1301
        %v1469 = vunpack.c.h.b16 %v1301
        %v1470 = vunpack.c.l.b16 %v1302
        %v1471 = vunpack.c.h.b16 %v1302
        %v1472 = vunpack.c.l.b16 %v1303
        %v1473 = vunpack.c.h.b16 %v1303
        %v1474 = vunpack.c.l.b16 %v1304
        %v1475 = vunpack.c.h.b16 %v1304
        %v1476 = vunpack.c.l.b16 %v1305
        %v1477 = vunpack.c.h.b16 %v1305
        %v1478 = vunpack.c.l.b16 %v1306
        %v1479 = vunpack.c.h.b16 %v1306
        %v1480 = vunpack.c.l.b16 %v1307
        %v1481 = vunpack.c.h.b16 %v1307
        %v1482 = vunpack.c.l.b16 %v1308
        %v1483 = vunpack.c.h.b16 %v1308
        %v1484 = vunpack.c.l.b16 %v1309
        %v1485 = vunpack.c.h.b16 %v1309
        %v1486 = vunpack.c.l.b16 %v1310
        %v1487 = vunpack.c.h.b16 %v1310
        %v1488 = vunpack.c.l.b16 %v1311
        %v1489 = vunpack.c.h.b16 %v1311
        %v1490 = vunpack.c.l.b16 %v1312
        %v1491 = vunpack.c.h.b16 %v1312
        %v1492 = vunpack.c.l.b16 %v1313
        %v1493 = vunpack.c.h.b16 %v1313
        %v1494 = vunpack.c.l.b16 %v1314
        %v1495 = vunpack.c.h.b16 %v1314
        %v1496 = vunpack.c.l.b16 %v1315
        %v1497 = vunpack.c.h.b16 %v1315
        %v1498 = vunpack.c.l.b16 %v1316
        %v1499 = vunpack.c.h.b16 %v1316
        %v1500 = vunpack.c.l.b16 %v1317
        %v1501 = vunpack.c.h.b16 %v1317
        %v1502 = vunpack.c.l.b16 %v1318
        %v1503 = vunpack.c.h.b16 %v1318
        %v1504 = vunpack.c.l.b16 %v1319
        %v1505 = vunpack.c.h.b16 %v1319
        %v1506 = vunpack.c.l.b16 %v1320
        %v1507 = vunpack.c.h.b16 %v1320
        %v1508 = vunpack.c.l.b16 %v1321
        %v1509 = vunpack.c.h.b16 %v1321
        %v1510 = vunpack.c.l.b16 %v1322
        %v1511 = vunpack.c.h.b16 %v1322
        %v1512 = vunpack.c.l.b16 %v1323
        %v1513 = vunpack.c.h.b16 %v1323
        %v1514 = vunpack.c.l.b16 %v1324
        %v1515 = vunpack.c.h.b16 %v1324
        %v1516 = vunpack.c.l.b16 %v1325
        %v1517 = vunpack.c.h.b16 %v1325
        %v1518 = vunpack.c.l.b16 %v1326
        %v1519 = vunpack.c.h.b16 %v1326
        %v1520 = vunpack.c.l.b16 %v1327
        %v1521 = vunpack.c.h.b16 %v1327
        %v1522 = vunpack.c.l.b16 %v1328
        %v1523 = vunpack.c.h.b16 %v1328
        %v1524 = vunpack.c.l.b16 %v1329
        %v1525 = vunpack.c.h.b16 %v1329
        %v1526 = vunpack.c.l.b16 %v1330
        %v1527 = vunpack.c.h.b16 %v1330
        %v1528 = vunpack.c.l.b16 %v1331
        %v1529 = vunpack.c.h.b16 %v1331
        %v1530 = vunpack.c.l.b16 %v1332
        %v1531 = vunpack.c.h.b16 %v1332
        %v1532 = vunpack.c.l.b16 %v1333
        %v1533 = vunpack.c.h.b16 %v1333
        %v1534 = vunpack.c.l.b16 %v1334
        %v1535 = vunpack.c.h.b16 %v1334
        %v1536 = vunpack.c.l.b16 %v1335
        %v1537 = vunpack.c.h.b16 %v1335
        %v1538 = vunpack.c.l.b16 %v1336
        %v1539 = vunpack.c.h.b16 %v1336
        %v1540 = vunpack.c.l.b16 %v1337
        %v1541 = vunpack.c.h.b16 %v1337
        %v1542 = vpack.c.b16 %v1416, %v1414
        %v1543 = vpack.c.b16 %v1417, %v1415
        %v1544 = vpack.c.b16 %v1420, %v1418
        %v1545 = vpack.c.b16 %v1421, %v1419
        %v1546 = vpack.c.b16 %v1424, %v1422
        %v1547 = vpack.c.b16 %v1425, %v1423
        %v1548 = vpack.c.b16 %v1428, %v1426
        %v1549 = vpack.c.b16 %v1429, %v1427
        %v1550 = vpack.c.b16 %v1432, %v1430
        %v1551 = vpack.c.b16 %v1433, %v1431
        %v1552 = vpack.c.b16 %v1436, %v1434
        %v1553 = vpack.c.b16 %v1437, %v1435
        %v1554 = vpack.c.b16 %v1440, %v1438
        %v1555 = vpack.c.b16 %v1441, %v1439
        %v1556 = vpack.c.b16 %v1444, %v1442
        %v1557 = vpack.c.b16 %v1445, %v1443
        %v1558 = vpack.c.b16 %v1448, %v1446
        %v1559 = vpack.c.b16 %v1449, %v1447
        %v1560 = vpack.c.b16 %v1452, %v1450
        %v1561 = vpack.c.b16 %v1453, %v1451
        %v1562 = vpack.c.b16 %v1456, %v1454
        %v1563 = vpack.c.b16 %v1457, %v1455
        %v1564 = vpack.c.b16 %v1460, %v1458
        %v1565 = vpack.c.b16 %v1461, %v1459
        %v1566 = vpack.c.b16 %v1464, %v1462
        %v1567 = vpack.c.b16 %v1465, %v1463
        %v1568 = vpack.c.b16 %v1468, %v1466
        %v1569 = vpack.c.b16 %v1469, %v1467
        %v1570 = vpack.c.b16 %v1472, %v1470
        %v1571 = vpack.c.b16 %v1473, %v1471
        %v1572 = vpack.c.b16 %v1476, %v1474
        %v1573 = vpack.c.b16 %v1477, %v1475
        %v1574 = vpack.c.b16 %v1480, %v1478
        %v1575 = vpack.c.b16 %v1481, %v1479
        %v1576 = vpack.c.b16 %v1484, %v1482
        %v1577 = vpack.c.b16 %v1485, %v1483
        %v1578 = vpack.c.b16 %v1488, %v1486
        %v1579 = vpack.c.b16 %v1489, %v1487
        %v1580 = vpack.c.b16 %v1492, %v1490
        %v1581 = vpack.c.b16 %v1493, %v1491
        %v1582 = vpack.c.b16 %v1496, %v1494
        %v1583 = vpack.c.b16 %v1497, %v1495
        %v1584 = vpack.c.b16 %v1500, %v1498
        %v1585 = vpack.c.b16 %v1501, %v1499
        %v1586 = vpack.c.b16 %v1504, %v1502
        %v1587 = vpack.c.b16 %v1505, %v1503
        %v1588 = vpack.c.b16 %v1508, %v1506
        %v1589 = vpack.c.b16 %v1509, %v1507
        %v1590 = vpack.c.b16 %v1512, %v1510
        %v1591 = vpack.c.b16 %v1513, %v1511
        %v1592 = vpack.c.b16 %v1516, %v1514
        %v1593 = vpack.c.b16 %v1517, %v1515
        %v1594 = vpack.c.b16 %v1520, %v1518
        %v1595 = vpack.c.b16 %v1521, %v1519
        %v1596 = vpack.c.b16 %v1524, %v1522
        %v1597 = vpack.c.b16 %v1525, %v1523
        %v1598 = vpack.c.b16 %v1528, %v1526
        %v1599 = vpack.c.b16 %v1529, %v1527
        %v1600 = vpack.c.b16 %v1532, %v1530
        %v1601 = vpack.c.b16 %v1533, %v1531
        %v1602 = vpack.c.b16 %v1536, %v1534
        %v1603 = vpack.c.b16 %v1537, %v1535
        %v1604 = vpack.c.b16 %v1540, %v1538
        %v1605 = vpack.c.b16 %v1541, %v1539
        %1670 = vmatprep.subr.bf16.mxu0 %v1557
        %1671 = vmatpush1.bf16.msra.mxu0 %v1556
        %1672 = vmatprep.subr.bf16.mxu0 %v1555
        %1673 = vmatpush1.bf16.msra.mxu0 %v1554
        %1674 = vmatprep.subr.bf16.mxu0 %v1553
        %1675 = vmatpush1.bf16.msra.mxu0 %v1552
        %1676 = vmatprep.subr.bf16.mxu0 %v1551
        %1677 = vmatpush1.bf16.msra.mxu0 %v1550
        %1678 = vmatprep.subr.bf16.mxu0 %v1549
        %1679 = vmatpush1.bf16.msra.mxu0 %v1548
        %1680 = vmatprep.subr.bf16.mxu0 %v1547
        %1681 = vmatpush1.bf16.msra.mxu0 %v1546
        %1682 = vmatprep.subr.bf16.mxu0 %v1545
        %1683 = vmatpush1.bf16.msra.mxu0 %v1544
        %1684 = vmatprep.subr.bf16.mxu0 %v1543
        %1685 = vmatpush1.bf16.msra.mxu0 %v1542
        %1686 = vmatprep.subr.bf16.mxu0 %v1573
        %1687 = vmatpush2.bf16.msra.mxu0 %v1572
        %1688 = vmatprep.subr.bf16.mxu0 %v1571
        %1689 = vmatpush2.bf16.msra.mxu0 %v1570
        %1690 = vmatprep.subr.bf16.mxu0 %v1569
        %1691 = vmatpush2.bf16.msra.mxu0 %v1568
        %1692 = vmatprep.subr.bf16.mxu0 %v1567
        %1693 = vmatpush2.bf16.msra.mxu0 %v1566
        %1694 = vmatprep.subr.bf16.mxu0 %v1565
        %1695 = vmatpush2.bf16.msra.mxu0 %v1564
        %1696 = vmatprep.subr.bf16.mxu0 %v1563
        %1697 = vmatpush2.bf16.msra.mxu0 %v1562
        %1698 = vmatprep.subr.bf16.mxu0 %v1561
        %1699 = vmatpush2.bf16.msra.mxu0 %v1560
        %1700 = vmatprep.subr.bf16.mxu0 %v1559
        %1701 = vmatpush2.bf16.msra.mxu0 %v1558
        %1702 = vmatprep.mubr.bf16.mxu0 %v1247
        %1703 = vmatmul.mubr.bf16.gmra.mxu0 %v1246
        %v1704 = vpop.f32.mrf.mxu0
        %v1705 = vadd.f32 %v1343, %v1704
        %v1706 = vpop.f32.mrf.mxu0
        %v1707 = vadd.f32 %v1347, %v1706
        %v1708 = vpop.f32.mrf.mxu0
        %v1709 = vadd.f32 %v1343, %v1708
        %v1710 = vpop.f32.mrf.mxu0
        %v1711 = vadd.f32 %v1347, %v1710
        %1712 = vmatprep.mubr.bf16.mxu0 %v1251
        %1713 = vmatmul.mubr.bf16.gmra.mxu0 %v1250
        %v1714 = vpop.f32.mrf.mxu0
        %v1715 = vadd.f32 %v1343, %v1714
        %v1716 = vpop.f32.mrf.mxu0
        %v1717 = vadd.f32 %v1347, %v1716
        %v1718 = vpop.f32.mrf.mxu0
        %v1719 = vadd.f32 %v1343, %v1718
        %v1720 = vpop.f32.mrf.mxu0
        %v1721 = vadd.f32 %v1347, %v1720
        %1722 = vmatprep.mubr.bf16.mxu0 %v1255
        %1723 = vmatmul.mubr.bf16.gmra.mxu0 %v1254
        %v1724 = vpop.f32.mrf.mxu0
        %v1725 = vadd.f32 %v1343, %v1724
        %v1726 = vpop.f32.mrf.mxu0
        %v1727 = vadd.f32 %v1347, %v1726
        %v1728 = vpop.f32.mrf.mxu0
        %v1729 = vadd.f32 %v1343, %v1728
        %v1730 = vpop.f32.mrf.mxu0
        %v1731 = vadd.f32 %v1347, %v1730
        %1732 = vmatprep.mubr.bf16.mxu0 %v1259
        %1733 = vmatmul.mubr.bf16.gmra.mxu0 %v1258
        %v1734 = vpop.f32.mrf.mxu0
        %v1735 = vadd.f32 %v1343, %v1734
        %v1736 = vpop.f32.mrf.mxu0
        %v1737 = vadd.f32 %v1347, %v1736
        %v1738 = vpop.f32.mrf.mxu0
        %v1739 = vadd.f32 %v1343, %v1738
        %v1740 = vpop.f32.mrf.mxu0
        %v1741 = vadd.f32 %v1347, %v1740
        %1742 = vmatprep.mubr.bf16.mxu0 %v1263
        %1743 = vmatmul.mubr.bf16.gmra.mxu0 %v1262
        %v1744 = vpop.f32.mrf.mxu0
        %v1745 = vadd.f32 %v1343, %v1744
        %v1746 = vpop.f32.mrf.mxu0
        %v1747 = vadd.f32 %v1347, %v1746
        %v1748 = vpop.f32.mrf.mxu0
        %v1749 = vadd.f32 %v1343, %v1748
        %v1750 = vpop.f32.mrf.mxu0
        %v1751 = vadd.f32 %v1347, %v1750
        %1752 = vmatprep.mubr.bf16.mxu0 %v1267
        %1753 = vmatmul.mubr.bf16.gmra.mxu0 %v1266
        %v1754 = vpop.f32.mrf.mxu0
        %v1755 = vadd.f32 %v1343, %v1754
        %v1756 = vpop.f32.mrf.mxu0
        %v1757 = vadd.f32 %v1347, %v1756
        %v1758 = vpop.f32.mrf.mxu0
        %v1759 = vadd.f32 %v1343, %v1758
        %v1760 = vpop.f32.mrf.mxu0
        %v1761 = vadd.f32 %v1347, %v1760
        %1762 = vmatprep.mubr.bf16.mxu0 %v1271
        %1763 = vmatmul.mubr.bf16.gmra.mxu0 %v1270
        %v1764 = vpop.f32.mrf.mxu0
        %v1765 = vadd.f32 %v1343, %v1764
        %v1766 = vpop.f32.mrf.mxu0
        %v1767 = vadd.f32 %v1347, %v1766
        %v1768 = vpop.f32.mrf.mxu0
        %v1769 = vpop.f32.mrf.mxu0
        %1770 = vdwg.mxu0
        %1771 = vmatprep.subr.bf16.mxu0 %v1589
        %1772 = vmatpush1.bf16.msra.mxu0 %v1588
        %1773 = vmatprep.subr.bf16.mxu0 %v1587
        %1774 = vmatpush1.bf16.msra.mxu0 %v1586
        %1775 = vmatprep.subr.bf16.mxu0 %v1585
        %1776 = vmatpush1.bf16.msra.mxu0 %v1584
        %1777 = vmatprep.subr.bf16.mxu0 %v1583
        %1778 = vmatpush1.bf16.msra.mxu0 %v1582
        %1779 = vmatprep.subr.bf16.mxu0 %v1581
        %1780 = vmatpush1.bf16.msra.mxu0 %v1580
        %1781 = vmatprep.subr.bf16.mxu0 %v1579
        %1782 = vmatpush1.bf16.msra.mxu0 %v1578
        %1783 = vmatprep.subr.bf16.mxu0 %v1577
        %1784 = vmatpush1.bf16.msra.mxu0 %v1576
        %1785 = vmatprep.subr.bf16.mxu0 %v1575
        %1786 = vmatpush1.bf16.msra.mxu0 %v1574
        %1787 = vmatprep.subr.bf16.mxu0 %v1605
        %1788 = vmatpush2.bf16.msra.mxu0 %v1604
        %1789 = vmatprep.subr.bf16.mxu0 %v1603
        %1790 = vmatpush2.bf16.msra.mxu0 %v1602
        %1791 = vmatprep.subr.bf16.mxu0 %v1601
        %1792 = vmatpush2.bf16.msra.mxu0 %v1600
        %1793 = vmatprep.subr.bf16.mxu0 %v1599
        %1794 = vmatpush2.bf16.msra.mxu0 %v1598
        %1795 = vmatprep.subr.bf16.mxu0 %v1597
        %1796 = vmatpush2.bf16.msra.mxu0 %v1596
        %1797 = vmatprep.subr.bf16.mxu0 %v1595
        %1798 = vmatpush2.bf16.msra.mxu0 %v1594
        %1799 = vmatprep.subr.bf16.mxu0 %v1593
        %1800 = vmatpush2.bf16.msra.mxu0 %v1592
        %1801 = vmatprep.subr.bf16.mxu0 %v1591
        %1802 = vmatpush2.bf16.msra.mxu0 %v1590
        %1803 = vmatprep.mubr.bf16.mxu0 %v1249
        %1804 = vmatmul.mubr.bf16.gmra.mxu0 %v1248
        %v1805 = vpop.f32.mrf.mxu0
        %v1806 = vadd.f32 %v1705, %v1805
        %v1807 = vpop.f32.mrf.mxu0
        %v1808 = vadd.f32 %v1707, %v1807
        %v1809 = vpop.f32.mrf.mxu0
        %v1810 = vadd.f32 %v1709, %v1809
        %v1811 = vpop.f32.mrf.mxu0
        %v1812 = vadd.f32 %v1711, %v1811
        %1813 = vmatprep.mubr.bf16.mxu0 %v1253
        %1814 = vmatmul.mubr.bf16.gmra.mxu0 %v1252
        %v1815 = vpop.f32.mrf.mxu0
        %v1816 = vadd.f32 %v1715, %v1815
        %v1817 = vpop.f32.mrf.mxu0
        %v1818 = vadd.f32 %v1717, %v1817
        %v1819 = vpop.f32.mrf.mxu0
        %v1820 = vadd.f32 %v1719, %v1819
        %v1821 = vpop.f32.mrf.mxu0
        %v1822 = vadd.f32 %v1721, %v1821
        %1823 = vmatprep.mubr.bf16.mxu0 %v1257
        %1824 = vmatmul.mubr.bf16.gmra.mxu0 %v1256
        %v1825 = vpop.f32.mrf.mxu0
        %v1826 = vadd.f32 %v1725, %v1825
        %v1827 = vpop.f32.mrf.mxu0
        %v1828 = vadd.f32 %v1727, %v1827
        %v1829 = vpop.f32.mrf.mxu0
        %v1830 = vadd.f32 %v1729, %v1829
        %v1831 = vpop.f32.mrf.mxu0
        %v1832 = vadd.f32 %v1731, %v1831
        %1833 = vmatprep.mubr.bf16.mxu0 %v1261
        %1834 = vmatmul.mubr.bf16.gmra.mxu0 %v1260
        %v1835 = vpop.f32.mrf.mxu0
        %v1836 = vadd.f32 %v1735, %v1835
        %v1837 = vpop.f32.mrf.mxu0
        %v1838 = vadd.f32 %v1737, %v1837
        %v1839 = vpop.f32.mrf.mxu0
        %v1840 = vadd.f32 %v1739, %v1839
        %v1841 = vpop.f32.mrf.mxu0
        %v1842 = vadd.f32 %v1741, %v1841
        %1843 = vmatprep.mubr.bf16.mxu0 %v1265
        %1844 = vmatmul.mubr.bf16.gmra.mxu0 %v1264
        %v1845 = vpop.f32.mrf.mxu0
        %v1846 = vadd.f32 %v1745, %v1845
        %v1847 = vpop.f32.mrf.mxu0
        %v1848 = vadd.f32 %v1747, %v1847
        %v1849 = vpop.f32.mrf.mxu0
        %v1850 = vadd.f32 %v1749, %v1849
        %v1851 = vpop.f32.mrf.mxu0
        %v1852 = vadd.f32 %v1751, %v1851
        %1853 = vmatprep.mubr.bf16.mxu0 %v1269
        %1854 = vmatmul.mubr.bf16.gmra.mxu0 %v1268
        %v1855 = vpop.f32.mrf.mxu0
        %v1856 = vadd.f32 %v1755, %v1855
        %v1857 = vpop.f32.mrf.mxu0
        %v1858 = vadd.f32 %v1757, %v1857
        %v1859 = vpop.f32.mrf.mxu0
        %v1860 = vadd.f32 %v1759, %v1859
        %v1861 = vpop.f32.mrf.mxu0
        %v1862 = vadd.f32 %v1761, %v1861
        %1863 = vmatprep.mubr.bf16.mxu0 %v1273
        %1864 = vmatmul.mubr.bf16.gmra.mxu0 %v1272
        %v1865 = vpop.f32.mrf.mxu0
        %v1866 = vadd.f32 %v1765, %v1865
        %v1867 = vpop.f32.mrf.mxu0
        %v1868 = vadd.f32 %v1767, %v1867
        %v1869 = vpop.f32.mrf.mxu0
        %v1870 = vpop.f32.mrf.mxu0
        %1871 = vdwg.mxu0
        %v1872 = vmax.f32 %v1806, 0.0
        %v1873 = vmax.f32 %v1808, 0.0
        %v1874 = vmax.f32 %v1810, 0.0
        %v1875 = vmax.f32 %v1812, 0.0
        %v1876 = vmax.f32 %v1816, 0.0
        %v1877 = vmax.f32 %v1818, 0.0
        %v1878 = vmax.f32 %v1820, 0.0
        %v1879 = vmax.f32 %v1822, 0.0
        %v1880 = vmax.f32 %v1826, 0.0
        %v1881 = vmax.f32 %v1828, 0.0
        %v1882 = vmax.f32 %v1830, 0.0
        %v1883 = vmax.f32 %v1832, 0.0
        %v1884 = vmax.f32 %v1836, 0.0
        %v1885 = vmax.f32 %v1838, 0.0
        %v1886 = vmax.f32 %v1840, 0.0
        %v1887 = vmax.f32 %v1842, 0.0
        %v1888 = vmax.f32 %v1846, 0.0
        %v1889 = vmax.f32 %v1848, 0.0
        %v1890 = vmax.f32 %v1850, 0.0
        %v1891 = vmax.f32 %v1852, 0.0
        %v1892 = vmax.f32 %v1856, 0.0
        %v1893 = vmax.f32 %v1858, 0.0
        %v1894 = vmax.f32 %v1860, 0.0
        %v1895 = vmax.f32 %v1862, 0.0
        %v1896 = vmax.f32 %v1866, 0.0
        %v1897 = vmax.f32 %v1868, 0.0
        %v1898 = vpack.c.bf16 %v1874, %v1872
        %v1899 = vpack.c.bf16 %v1875, %v1873
        %v1900 = vpack.c.bf16 %v1878, %v1876
        %v1901 = vpack.c.bf16 %v1879, %v1877
        %v1902 = vpack.c.bf16 %v1882, %v1880
        %v1903 = vpack.c.bf16 %v1883, %v1881
        %v1904 = vpack.c.bf16 %v1886, %v1884
        %v1905 = vpack.c.bf16 %v1887, %v1885
        %v1906 = vpack.c.bf16 %v1890, %v1888
        %v1907 = vpack.c.bf16 %v1891, %v1889
        %v1908 = vpack.c.bf16 %v1894, %v1892
        %v1909 = vpack.c.bf16 %v1895, %v1893
        %v1910 = vpack.c.bf16 %v1896, %v1896
        %v1911 = vpack.c.bf16 %v1897, %v1897
        %v1912 = vld [vmem:[#allocation7] sm:$0xff]
        %v1913 = vld [vmem:[#allocation7 + $0x8] sm:$0xff]
        %v1914 = vld [vmem:[#allocation7 + $0x10] sm:$0xff]
        %v1915 = vld [vmem:[#allocation7 + $0x18] sm:$0xff]
        %v1916 = vld [vmem:[#allocation7 + $0x20] sm:$0xff]
        %v1917 = vld [vmem:[#allocation7 + $0x28] sm:$0xff]
        %v1918 = vld [vmem:[#allocation7 + $0x30] sm:$0xff]
        %v1919 = vld [vmem:[#allocation7 + $0x38] sm:$0xff]
        %v1920 = vld [vmem:[#allocation7 + $0x40] sm:$0xff]
        %v1921 = vld [vmem:[#allocation7 + $0x48] sm:$0xff]
        %v1922 = vld [vmem:[#allocation7 + $0x50] sm:$0xff]
        %v1923 = vld [vmem:[#allocation7 + $0x58] sm:$0xff]
        %v1924 = vld [vmem:[#allocation7 + $0x60] sm:$0xff]
        %v1925 = vld [vmem:[#allocation7 + $0x68] sm:$0xff]
        %v1926 = vld [vmem:[#allocation7 + $0x70] sm:$0xff]
        %v1927 = vld [vmem:[#allocation7 + $0x78] sm:$0xff]
        %v1928 = vld [vmem:[#allocation7 + $0x80] sm:$0xff]
        %v1929 = vld [vmem:[#allocation7 + $0x88] sm:$0xff]
        %v1930 = vld [vmem:[#allocation7 + $0x90] sm:$0xff]
        %v1931 = vld [vmem:[#allocation7 + $0x98] sm:$0xff]
        %v1932 = vld [vmem:[#allocation7 + $0xa0] sm:$0xff]
        %v1933 = vld [vmem:[#allocation7 + $0xa8] sm:$0xff]
        %v1934 = vld [vmem:[#allocation7 + $0xb0] sm:$0xff]
        %v1935 = vld [vmem:[#allocation7 + $0xb8] sm:$0xff]
        %v1936 = vld [vmem:[#allocation7 + $0xc0] sm:$0xff]
        %v1937 = vld [vmem:[#allocation7 + $0xc8] sm:$0xff]
        %v1938 = vld [vmem:[#allocation7 + $0xd0] sm:$0xff]
        %v1939 = vld [vmem:[#allocation7 + $0xd8] sm:$0xff]
        %v1940 = vld [vmem:[#allocation7 + $0xe0] sm:$0xff]
        %v1941 = vld [vmem:[#allocation7 + $0xe8] sm:$0xff]
        %v1942 = vld [vmem:[#allocation7 + $0xf0] sm:$0xff]
        %v1943 = vld [vmem:[#allocation7 + $0xf8] sm:$0xff]
        %v1944 = vld [vmem:[%s8] sm:$0x3]
        %v1946 = vlaneseq
        %v1947 = vshrl.u32 %v1946, 7
        %v1948 = vsub.s32 0, %v1947
        %v1949 = vrot.slane %v1944, %v1948
        %v1950 = vlaneseq
        %v1951 = vshrl.u32 %v1950, 7
        %v1952 = vsub.s32 1, %v1951
        %v1953 = vrot.slane %v1944, %v1952
        %v1988 = vunpack.c.l.b16 %v1912
        %v1989 = vunpack.c.h.b16 %v1912
        %v1990 = vunpack.c.l.b16 %v1913
        %v1991 = vunpack.c.h.b16 %v1913
        %v1992 = vunpack.c.l.b16 %v1914
        %v1993 = vunpack.c.h.b16 %v1914
        %v1994 = vunpack.c.l.b16 %v1915
        %v1995 = vunpack.c.h.b16 %v1915
        %v1996 = vunpack.c.l.b16 %v1916
        %v1997 = vunpack.c.h.b16 %v1916
        %v1998 = vunpack.c.l.b16 %v1917
        %v1999 = vunpack.c.h.b16 %v1917
        %v2000 = vunpack.c.l.b16 %v1918
        %v2001 = vunpack.c.h.b16 %v1918
        %v2002 = vunpack.c.l.b16 %v1919
        %v2003 = vunpack.c.h.b16 %v1919
        %v2004 = vunpack.c.l.b16 %v1920
        %v2005 = vunpack.c.h.b16 %v1920
        %v2006 = vunpack.c.l.b16 %v1921
        %v2007 = vunpack.c.h.b16 %v1921
        %v2008 = vunpack.c.l.b16 %v1922
        %v2009 = vunpack.c.h.b16 %v1922
        %v2010 = vunpack.c.l.b16 %v1923
        %v2011 = vunpack.c.h.b16 %v1923
        %v2012 = vunpack.c.l.b16 %v1924
        %v2013 = vunpack.c.h.b16 %v1924
        %v2014 = vunpack.c.l.b16 %v1925
        %v2015 = vunpack.c.h.b16 %v1925
        %v2016 = vunpack.c.l.b16 %v1926
        %v2017 = vunpack.c.h.b16 %v1926
        %v2018 = vunpack.c.l.b16 %v1927
        %v2019 = vunpack.c.h.b16 %v1927
        %v2020 = vunpack.c.l.b16 %v1928
        %v2021 = vunpack.c.h.b16 %v1928
        %v2022 = vunpack.c.l.b16 %v1929
        %v2023 = vunpack.c.h.b16 %v1929
        %v2024 = vunpack.c.l.b16 %v1930
        %v2025 = vunpack.c.h.b16 %v1930
        %v2026 = vunpack.c.l.b16 %v1931
        %v2027 = vunpack.c.h.b16 %v1931
        %v2028 = vunpack.c.l.b16 %v1932
        %v2029 = vunpack.c.h.b16 %v1932
        %v2030 = vunpack.c.l.b16 %v1933
        %v2031 = vunpack.c.h.b16 %v1933
        %v2032 = vunpack.c.l.b16 %v1934
        %v2033 = vunpack.c.h.b16 %v1934
        %v2034 = vunpack.c.l.b16 %v1935
        %v2035 = vunpack.c.h.b16 %v1935
        %v2036 = vunpack.c.l.b16 %v1936
        %v2037 = vunpack.c.h.b16 %v1936
        %v2038 = vunpack.c.l.b16 %v1937
        %v2039 = vunpack.c.h.b16 %v1937
        %v2040 = vunpack.c.l.b16 %v1938
        %v2041 = vunpack.c.h.b16 %v1938
        %v2042 = vunpack.c.l.b16 %v1939
        %v2043 = vunpack.c.h.b16 %v1939
        %v2044 = vunpack.c.l.b16 %v1940
        %v2045 = vunpack.c.h.b16 %v1940
        %v2046 = vunpack.c.l.b16 %v1941
        %v2047 = vunpack.c.h.b16 %v1941
        %v2048 = vunpack.c.l.b16 %v1942
        %v2049 = vunpack.c.h.b16 %v1942
        %v2050 = vunpack.c.l.b16 %v1943
        %v2051 = vunpack.c.h.b16 %v1943
        %v2052 = vpack.c.b16 %v1990, %v1988
        %v2053 = vpack.c.b16 %v1991, %v1989
        %v2054 = vpack.c.b16 %v1994, %v1992
        %v2055 = vpack.c.b16 %v1995, %v1993
        %v2056 = vpack.c.b16 %v1998, %v1996
        %v2057 = vpack.c.b16 %v1999, %v1997
        %v2058 = vpack.c.b16 %v2002, %v2000
        %v2059 = vpack.c.b16 %v2003, %v2001
        %v2060 = vpack.c.b16 %v2006, %v2004
        %v2061 = vpack.c.b16 %v2007, %v2005
        %v2062 = vpack.c.b16 %v2010, %v2008
        %v2063 = vpack.c.b16 %v2011, %v2009
        %v2064 = vpack.c.b16 %v2014, %v2012
        %v2065 = vpack.c.b16 %v2015, %v2013
        %v2066 = vpack.c.b16 %v2018, %v2016
        %v2067 = vpack.c.b16 %v2019, %v2017
        %v2068 = vpack.c.b16 %v2022, %v2020
        %v2069 = vpack.c.b16 %v2023, %v2021
        %v2070 = vpack.c.b16 %v2026, %v2024
        %v2071 = vpack.c.b16 %v2027, %v2025
        %v2072 = vpack.c.b16 %v2030, %v2028
        %v2073 = vpack.c.b16 %v2031, %v2029
        %v2074 = vpack.c.b16 %v2034, %v2032
        %v2075 = vpack.c.b16 %v2035, %v2033
        %v2076 = vpack.c.b16 %v2038, %v2036
        %v2077 = vpack.c.b16 %v2039, %v2037
        %v2078 = vpack.c.b16 %v2042, %v2040
        %v2079 = vpack.c.b16 %v2043, %v2041
        %v2080 = vpack.c.b16 %v2046, %v2044
        %v2081 = vpack.c.b16 %v2047, %v2045
        %v2082 = vpack.c.b16 %v2050, %v2048
        %v2083 = vpack.c.b16 %v2051, %v2049
        %2116 = vmatprep.subr.bf16.mxu0 %v2067
        %2117 = vmatpush1.bf16.msra.mxu0 %v2066
        %2118 = vmatprep.subr.bf16.mxu0 %v2065
        %2119 = vmatpush1.bf16.msra.mxu0 %v2064
        %2120 = vmatprep.subr.bf16.mxu0 %v2063
        %2121 = vmatpush1.bf16.msra.mxu0 %v2062
        %2122 = vmatprep.subr.bf16.mxu0 %v2061
        %2123 = vmatpush1.bf16.msra.mxu0 %v2060
        %2124 = vmatprep.subr.bf16.mxu0 %v2059
        %2125 = vmatpush1.bf16.msra.mxu0 %v2058
        %2126 = vmatprep.subr.bf16.mxu0 %v2057
        %2127 = vmatpush1.bf16.msra.mxu0 %v2056
        %2128 = vmatprep.subr.bf16.mxu0 %v2055
        %2129 = vmatpush1.bf16.msra.mxu0 %v2054
        %2130 = vmatprep.subr.bf16.mxu0 %v2053
        %2131 = vmatpush1.bf16.msra.mxu0 %v2052
        %2132 = vmatprep.subr.bf16.mxu0 %v2083
        %2133 = vmatpush2.bf16.msra.mxu0 %v2082
        %2134 = vmatprep.subr.bf16.mxu0 %v2081
        %2135 = vmatpush2.bf16.msra.mxu0 %v2080
        %2136 = vmatprep.subr.bf16.mxu0 %v2079
        %2137 = vmatpush2.bf16.msra.mxu0 %v2078
        %2138 = vmatprep.subr.bf16.mxu0 %v2077
        %2139 = vmatpush2.bf16.msra.mxu0 %v2076
        %2140 = vmatprep.subr.bf16.mxu0 %v2075
        %2141 = vmatpush2.bf16.msra.mxu0 %v2074
        %2142 = vmatprep.subr.bf16.mxu0 %v2073
        %2143 = vmatpush2.bf16.msra.mxu0 %v2072
        %2144 = vmatprep.subr.bf16.mxu0 %v2071
        %2145 = vmatpush2.bf16.msra.mxu0 %v2070
        %2146 = vmatprep.subr.bf16.mxu0 %v2069
        %2147 = vmatpush2.bf16.msra.mxu0 %v2068
        %2148 = vmatprep.mubr.bf16.mxu0 %v1899
        %2149 = vmatmul.mubr.bf16.gmra.mxu0 %v1898
        %v2150 = vpop.f32.mrf.mxu0
        %v2151 = vadd.f32 %v1949, %v2150
        %v2152 = vpop.f32.mrf.mxu0
        %v2153 = vadd.f32 %v1953, %v2152
        %v2154 = vpop.f32.mrf.mxu0
        %v2155 = vadd.f32 %v1949, %v2154
        %v2156 = vpop.f32.mrf.mxu0
        %v2157 = vadd.f32 %v1953, %v2156
        %2158 = vmatprep.mubr.bf16.mxu0 %v1901
        %2159 = vmatmul.mubr.bf16.gmra.mxu0 %v1900
        %v2160 = vpop.f32.mrf.mxu0
        %v2161 = vadd.f32 %v1949, %v2160
        %v2162 = vpop.f32.mrf.mxu0
        %v2163 = vadd.f32 %v1953, %v2162
        %v2164 = vpop.f32.mrf.mxu0
        %v2165 = vadd.f32 %v1949, %v2164
        %v2166 = vpop.f32.mrf.mxu0
        %v2167 = vadd.f32 %v1953, %v2166
        %2168 = vmatprep.mubr.bf16.mxu0 %v1903
        %2169 = vmatmul.mubr.bf16.gmra.mxu0 %v1902
        %v2170 = vpop.f32.mrf.mxu0
        %v2171 = vadd.f32 %v1949, %v2170
        %v2172 = vpop.f32.mrf.mxu0
        %v2173 = vadd.f32 %v1953, %v2172
        %v2174 = vpop.f32.mrf.mxu0
        %v2175 = vadd.f32 %v1949, %v2174
        %v2176 = vpop.f32.mrf.mxu0
        %v2177 = vadd.f32 %v1953, %v2176
        %2178 = vmatprep.mubr.bf16.mxu0 %v1905
        %2179 = vmatmul.mubr.bf16.gmra.mxu0 %v1904
        %v2180 = vpop.f32.mrf.mxu0
        %v2181 = vadd.f32 %v1949, %v2180
        %v2182 = vpop.f32.mrf.mxu0
        %v2183 = vadd.f32 %v1953, %v2182
        %v2184 = vpop.f32.mrf.mxu0
        %v2185 = vadd.f32 %v1949, %v2184
        %v2186 = vpop.f32.mrf.mxu0
        %v2187 = vadd.f32 %v1953, %v2186
        %2188 = vmatprep.mubr.bf16.mxu0 %v1907
        %2189 = vmatmul.mubr.bf16.gmra.mxu0 %v1906
        %v2190 = vpop.f32.mrf.mxu0
        %v2191 = vadd.f32 %v1949, %v2190
        %v2192 = vpop.f32.mrf.mxu0
        %v2193 = vadd.f32 %v1953, %v2192
        %v2194 = vpop.f32.mrf.mxu0
        %v2195 = vadd.f32 %v1949, %v2194
        %v2196 = vpop.f32.mrf.mxu0
        %v2197 = vadd.f32 %v1953, %v2196
        %2198 = vmatprep.mubr.bf16.mxu0 %v1909
        %2199 = vmatmul.mubr.bf16.gmra.mxu0 %v1908
        %v2200 = vpop.f32.mrf.mxu0
        %v2201 = vadd.f32 %v1949, %v2200
        %v2202 = vpop.f32.mrf.mxu0
        %v2203 = vadd.f32 %v1953, %v2202
        %v2204 = vpop.f32.mrf.mxu0
        %v2205 = vadd.f32 %v1949, %v2204
        %v2206 = vpop.f32.mrf.mxu0
        %v2207 = vadd.f32 %v1953, %v2206
        %2208 = vmatprep.mubr.bf16.mxu0 %v1911
        %2209 = vmatmul.mubr.bf16.gmra.mxu0 %v1910
        %v2210 = vpop.f32.mrf.mxu0
        %v2211 = vadd.f32 %v1949, %v2210
        %v2212 = vpop.f32.mrf.mxu0
        %v2213 = vadd.f32 %v1953, %v2212
        %v2214 = vpop.f32.mrf.mxu0
        %v2215 = vpop.f32.mrf.mxu0
        %2216 = vdwg.mxu0
        %2217 = vst [vmem:[%s370] sm:$0xff] %v2151
        %2218 = vst [vmem:[%s370 + $0x8] sm:$0xff] %v2153
        %2219 = vst [vmem:[%s370 + $0x10] sm:$0xff] %v2155
        %2220 = vst [vmem:[%s370 + $0x18] sm:$0xff] %v2157
        %2221 = vst [vmem:[%s370 + $0x20] sm:$0xff] %v2161
        %2222 = vst [vmem:[%s370 + $0x28] sm:$0xff] %v2163
        %2223 = vst [vmem:[%s370 + $0x30] sm:$0xff] %v2165
        %2224 = vst [vmem:[%s370 + $0x38] sm:$0xff] %v2167
        %2225 = vst [vmem:[%s370 + $0x40] sm:$0xff] %v2171
        %2226 = vst [vmem:[%s370 + $0x48] sm:$0xff] %v2173
        %2227 = vst [vmem:[%s370 + $0x50] sm:$0xff] %v2175
        %2228 = vst [vmem:[%s370 + $0x58] sm:$0xff] %v2177
        %2229 = vst [vmem:[%s370 + $0x60] sm:$0xff] %v2181
        %2230 = vst [vmem:[%s370 + $0x68] sm:$0xff] %v2183
        %2231 = vst [vmem:[%s370 + $0x70] sm:$0xff] %v2185
        %2232 = vst [vmem:[%s370 + $0x78] sm:$0xff] %v2187
        %2233 = vst [vmem:[%s370 + $0x80] sm:$0xff] %v2191
        %2234 = vst [vmem:[%s370 + $0x88] sm:$0xff] %v2193
        %2235 = vst [vmem:[%s370 + $0x90] sm:$0xff] %v2195
        %2236 = vst [vmem:[%s370 + $0x98] sm:$0xff] %v2197
        %2237 = vst [vmem:[%s370 + $0xa0] sm:$0xff] %v2201
        %2238 = vst [vmem:[%s370 + $0xa8] sm:$0xff] %v2203
        %2239 = vst [vmem:[%s370 + $0xb0] sm:$0xff] %v2205
        %2240 = vst [vmem:[%s370 + $0xb8] sm:$0xff] %v2207
        %2241 = vst [vmem:[%s370 + $0xc0] sm:$0xff] %v2211
        %2242 = vst [vmem:[%s370 + $0xc8] sm:$0xff] %v2213
        %s2243 = sand.u32 %s227, 1
        %s2244 = scalar_lea.sflag [#allocation4], %s2243
        %s2245 = sand.u32 %s227, 1
        %s2246 = smul.addr %s2245, 208
        %s2247 = scalar_lea.vmem [#allocation8], %s2246
        // Predicated region
        $region69: #{tpu_custom_call.1} parent=55 // pred_check
          %p2248 = pneg %p237
        $region70: #{tpu_custom_call.1} parent=55 // pred_check_branch
          %2250 = sbr.rel (%p2248) target = $region72
        $region71: #{tpu_custom_call.1} parent=55 // pred_region
          %s2251 = smul.u32 13, %s25
          %s2253 = ssub.s32 3328, 3328
          %2254 = vsyncadd %s2244, %s2253
          %s2255 = smul.addr %s2251, 2
          %s2256 = smul.addr %s2255, 128
          %s2257 = scalar_lea.hbm %s9, %s2256
          %s2258 = sshll.u32 %s2247, 4
          %s2259 = int_to_ptr.vmem [resolvable:$true] %s2258
          %2264 = dma.vmem_to_hbm [thread:$0]  %s2259, 3328, %s2257, %s2244, 256, 256, 16
        $region72: #{tpu_custom_call.1} parent=55 // pred_fallthru
          _
      $region56: #{tpu_custom_call.1} parent=5 // pred_fallthru
        _
      %p2265 = scmp.le.s32.totalorder 2, %s20
      // Predicated region
      $region73: #{tpu_custom_call.1} parent=5 // pred_check
        %p2266 = pneg %p2265
      $region74: #{tpu_custom_call.1} parent=5 // pred_check_branch
        %2268 = sbr.rel (%p2266) target = $region76
      $region75: #{tpu_custom_call.1} parent=5 // pred_region
        %s2269 = ssub.s32 %s20, 2
        // Predicated region
        $region77: #{tpu_custom_call.1} parent=75 // pred_check
          %p2270 = pneg %p243
        $region78: #{tpu_custom_call.1} parent=75 // pred_check_branch
          %2272 = sbr.rel (%p2270) target = $region80
        $region79: #{tpu_custom_call.1} parent=75 // pred_region
          %s2273 = sand.u32 %s228, 1
          %s2274 = scalar_lea.sflag [#allocation4], %s2273
          %s2275 = sand.u32 %s228, 1
          %s2276 = smul.addr %s2275, 208
          %s2277 = scalar_lea.vmem [#allocation8], %s2276
          %2278 = dma.done %s2274, 3328
        $region80: #{tpu_custom_call.1} parent=75 // pred_fallthru
          _
      $region76: #{tpu_custom_call.1} parent=5 // pred_fallthru
        _
    $region6: #{tpu_custom_call.1} parent=1 // loop_footer
      %s24 = sadd.s32 1, %s20
    $region7: #{tpu_custom_call.1} parent=1 // loop_footer_branch
      %19 = sbr.rel target = $region3
    $region8: #{tpu_custom_call.1} parent=1 // loop_exit
      _
    %2279 = vsyncpa [#allocation3], 1
    %s2280 = scalar_lea.sflag [#allocation3], 1
    %2281 = vsyncpa %s2280, 1
    %2282 = vsyncpa [#allocation6], 1
    %2283 = vsyncpa [#allocation4], 1
    %s2284 = scalar_lea.sflag [#allocation4], 1
    %2285 = vsyncpa %s2284, 1

</llo_original>
